<compile_context>
chip_gen: v6e
topology: v6e:2x2x1
jax: 0.10.0
libtpu: 0.0.40
codegen_flags: <defaults>
</compile_context>

<pallas_src>
import functools
import math

import jax
import jax.numpy as jnp
from jax.experimental import pallas as pl
from jax.experimental.pallas import tpu as pltpu


def _layernorm(x, gamma, beta, eps=1e-5):
    mean = jnp.mean(x, axis=-1, keepdims=True)
    var = jnp.mean((x - mean) ** 2, axis=-1, keepdims=True)
    return (x - mean) * jax.lax.rsqrt(var + eps) * gamma + beta


def _tencoder_kernel(
    x_ref,      # (B, D, S)   channel-major input (spatial already flattened)
    pe_ref,     # (S, D)      positional-encoding rows
    wqkv_ref,   # (N, D, 3D)  fused Q|K|V projection (x @ W layout)
    bqkv_ref,   # (N, 1, 3D)
    wo_ref,     # (N, D, D)   attention output projection
    bo_ref,     # (N, 1, D)
    w1_ref,     # (N, D, F)   FFN
    b1_ref,     # (N, 1, F)
    w2_ref,     # (N, F, D)
    b2_ref,     # (N, 1, D)
    g2_ref,     # (N, 1, D)   per-layer norm2 weight (norm1 exists but is unused)
    bt2_ref,    # (N, 1, D)   per-layer norm2 bias
    gf_ref,     # (1, D)      final LayerNorm weight
    bf_ref,     # (1, D)      final LayerNorm bias
    o_ref,      # (B, D, S)   channel-major output
    xt_ref,     # scratch VMEM (B, S, D) f32
    *, n_heads: int, n_layers: int,
):
    B, D, S = x_ref.shape
    H = n_heads
    Dh = D // H
    M = B * S
    scale = 1.0 / math.sqrt(Dh)

    # ---- layout: (B, D, S) -> (B, S, D) on VMEM data (no wrapper HBM transpose) ----
    for b in range(B):                                     # static loop, B is small
        xt_ref[b] = x_ref[b].T.astype(jnp.float32)
    x = xt_ref[...]                                        # (B, S, D) f32

    # x = x + PositionalEncoding(x) = x + (x + pe)
    pe = pe_ref[...].astype(jnp.float32)
    x = x + (x + pe[None, :, :])

    for l in range(n_layers):                              # static loop over cloned layers
        gamma = g2_ref[l].astype(jnp.float32)              # (1, D)
        beta = bt2_ref[l].astype(jnp.float32)
        wqkv = wqkv_ref[l]                                 # hoisted weight loads
        wo = wo_ref[l]

        # ---- sublayer 1: pre-norm + multi-head self-attention + residual ----
        residual = x
        h = _layernorm(x, gamma, beta).reshape(M, D)       # batch folded into M

        qkv = jnp.dot(h, wqkv, preferred_element_type=jnp.float32) + bqkv_ref[l]  # (M, 3D)

        attn = jnp.zeros((M, D), jnp.float32)
        for hd in range(H):                                # static per-head loop
            lo = hd * Dh
            qh = (qkv[:, lo:lo + Dh] * scale).reshape(B, S, Dh)
            kh = qkv[:, D + lo:D + lo + Dh].reshape(B, S, Dh)
            vh = qkv[:, 2 * D + lo:2 * D + lo + Dh].reshape(B, S, Dh)

            s = jnp.einsum("bqd,bkd->bqk", qh, kh,
                           preferred_element_type=jnp.float32)        # (B, S, S)
            s = s - jnp.max(s, axis=-1, keepdims=True)
            p = jnp.exp(s)
            # TODO(synk): switch to approx=True (EUP slot, ~free) at production sizes;
            # kept exact here so the f32 reference check stays tight.
            p = p * pl.reciprocal(jnp.sum(p, axis=-1, keepdims=True), approx=False)

            ctx = jnp.einsum("bqk,bkd->bqd", p, vh,
                             preferred_element_type=jnp.float32)      # (B, S, Dh)
            # accumulate this head's contribution of the output projection
            attn = attn + jnp.dot(ctx.reshape(M, Dh), wo[lo:lo + Dh, :],
                                  preferred_element_type=jnp.float32)

        x = (attn + bo_ref[l]).reshape(B, S, D) + residual

        # ---- sublayer 2: pre-norm (norm2 reused) + FFN + residual ----
        residual = x
        h = _layernorm(x, gamma, beta).reshape(M, D)
        h = jnp.dot(h, w1_ref[l], preferred_element_type=jnp.float32) + b1_ref[l]
        h = jnp.maximum(h, 0.0)                            # ReLU
        h = jnp.dot(h, w2_ref[l], preferred_element_type=jnp.float32) + b2_ref[l]
        x = h.reshape(B, S, D) + residual

    # ---- final LayerNorm (TEncoder.norm) ----
    x = _layernorm(x, gf_ref[...].astype(jnp.float32), bf_ref[...].astype(jnp.float32))

    # ---- layout back: (B, S, D) -> (B, D, S), stored straight into the output block ----
    for b in range(B):
        o_ref[b] = x[b].T.astype(o_ref.dtype)


def tencoder_pallas(x_bchw, pe, params, n_heads):
    """x_bchw: (B, C, W, H) with C == d_model. Returns (B, C, W, H)."""
    B, C, W, Hs = x_bchw.shape
    D = C
    S = W * Hs
    n_layers = params["wqkv"].shape[0]

    x_bcs = x_bchw.reshape(B, C, S)                        # flatten(2): free reshape
    vmem_full = pl.BlockSpec(memory_space=pltpu.MemorySpace.VMEM)

    out = pl.pallas_call(
        functools.partial(_tencoder_kernel, n_heads=n_heads, n_layers=n_layers),
        out_shape=jax.ShapeDtypeStruct((B, D, S), x_bchw.dtype),
        in_specs=[vmem_full] * 14,
        out_specs=vmem_full,
        scratch_shapes=[pltpu.VMEM((B, S, D), jnp.float32)],
        compiler_params=pltpu.CompilerParams(
            # explicit VMEM budget; at production sizes, size this to the resident
            # weight+activation footprint (leave headroom on v7x's 64 MiB).
            vmem_limit_bytes=32 * 1024 * 1024,
        ),
    )(
        x_bcs, pe[:S],
        params["wqkv"], params["bqkv"],
        params["wo"], params["bo"],
        params["w1"], params["b1"],
        params["w2"], params["b2"],
        params["ln_g"], params["ln_b"],
        params["gf"], params["bf"],
    )
    return out.reshape(B, C, W, Hs)                        # final permute done in-kernel


def make_positional_encoding(d_model, max_len=5000):
    # Mirrors PositionalEncoding.__init__ with its intended max_len.
    # NOTE: the given TEncoder passes `dropout` as max_len (apparent bug) which collapses
    # the table to constant rows; the kernel is agnostic to the table contents.
    position = jnp.arange(max_len, dtype=jnp.float32)[:, None]
    div_term = jnp.exp(jnp.arange(0, d_model, 2, dtype=jnp.float32)
                       * (-math.log(10000.0) / d_model))
    pe = jnp.zeros((max_len, d_model), jnp.float32)
    pe = pe.at[:, 0::2].set(jnp.sin(position * div_term))
    pe = pe.at[:, 1::2].set(jnp.cos(position * div_term))
    return pe                                              # (max_len, d_model)


def make_params(key, d_model, d_ff, n_layers):
    D, F, N = d_model, d_ff, n_layers
    ks = jax.random.split(key, 12)
    sd = 0.05
    return {
        # fused Q|K|V projection, stored (in, out) so the kernel computes h @ W
        "wqkv": sd * jax.random.normal(ks[0], (N, D, 3 * D), jnp.float32),
        "bqkv": sd * jax.random.normal(ks[1], (N, 1, 3 * D), jnp.float32),
        "wo": sd * jax.random.normal(ks[2], (N, D, D), jnp.float32),
        "bo": sd * jax.random.normal(ks[3], (N, 1, D), jnp.float32),
        # FFN
        "w1": sd * jax.random.normal(ks[4], (N, D, F), jnp.float32),
        "b1": sd * jax.random.normal(ks[5], (N, 1, F), jnp.float32),
        "w2": sd * jax.random.normal(ks[6], (N, F, D), jnp.float32),
        "b2": sd * jax.random.normal(ks[7], (N, 1, D), jnp.float32),
        # per-layer norm2 (norm1 exists in the module but is never used in forward)
        "ln_g": 1.0 + sd * jax.random.normal(ks[8], (N, 1, D), jnp.float32),
        "ln_b": sd * jax.random.normal(ks[9], (N, 1, D), jnp.float32),
        # final TEncoder.norm
        "gf": 1.0 + sd * jax.random.normal(ks[10], (1, D), jnp.float32),
        "bf": sd * jax.random.normal(ks[11], (1, D), jnp.float32),
    }


def _reference(x_bchw, pe, params, n_heads):
    """Pure-JAX reference of the full TEncoder forward (eval mode)."""
    B, C, W, Hs = x_bchw.shape
    S, D = W * Hs, C
    Hn, Dh = n_heads, C // n_heads
    N = params["wqkv"].shape[0]

    x = x_bchw.reshape(B, C, S).transpose(0, 2, 1).astype(jnp.float32)   # (B, S, D)
    x = x + (x + pe[:S][None])

    def ln(z, g, b):
        m = z.mean(-1, keepdims=True)
        v = ((z - m) ** 2).mean(-1, keepdims=True)
        return (z - m) / jnp.sqrt(v + 1e-5) * g + b

    for l in range(N):
        g, bt = params["ln_g"][l], params["ln_b"][l]
        r = x
        h = ln(x, g, bt)
        qkv = h @ params["wqkv"][l] + params["bqkv"][l]
        q, k, v = qkv[..., :D], qkv[..., D:2 * D], qkv[..., 2 * D:]
        q = q.reshape(B, S, Hn, Dh).transpose(0, 2, 1, 3)
        k = k.reshape(B, S, Hn, Dh).transpose(0, 2, 1, 3)
        v = v.reshape(B, S, Hn, Dh).transpose(0, 2, 1, 3)
        s = jnp.einsum("bhqd,bhkd->bhqk", q, k) / math.sqrt(Dh)
        p = jax.nn.softmax(s, axis=-1)
        ctx = jnp.einsum("bhqk,bhkd->bhqd", p, v).transpose(0, 2, 1, 3).reshape(B, S, D)
        x = ctx @ params["wo"][l] + params["bo"][l] + r

        r = x
        h = ln(x, g, bt)
        h = jnp.maximum(h @ params["w1"][l] + params["b1"][l], 0.0)
        x = h @ params["w2"][l] + params["b2"][l] + r

    x = ln(x, params["gf"], params["bf"])
    return x.transpose(0, 2, 1).reshape(B, C, W, Hs)


if __name__ == "__main__":
    # (B, C, W, H): channels == d_model; S = W*H = 16, n_heads = 4, d_ff = 64, N = 2 layers
    B, C, W, Hs = 2, 32, 4, 4
    n_heads, d_ff, n_layers = 4, 64, 2

    key = jax.random.PRNGKey(0)
    kx, kp = jax.random.split(key)
    x = jax.random.normal(kx, (B, C, W, Hs), jnp.float32)
    params = make_params(kp, C, d_ff, n_layers)
    pe = make_positional_encoding(C)

    out = tencoder_pallas(x, pe, params, n_heads=n_heads)
    out = jax.block_until_ready(out)

    ref = _reference(x, pe, params, n_heads=n_heads)
    assert out.shape == (B, C, W, Hs)
    max_err = float(jnp.max(jnp.abs(out - ref)))
    assert jnp.allclose(out, ref, atol=1e-3, rtol=1e-3), max_err

    print("KERNEL_OK")
</pallas_src>

<mosaic_0001>
module attributes {stable_mosaic.version = 11 : i64} {
  func.func @_tencoder_kernel(%arg0: memref<2x32x16xf32, #tpu.memory_space<vmem>>, %arg1: memref<16x32xf32, #tpu.memory_space<vmem>>, %arg2: memref<2x32x96xf32, #tpu.memory_space<vmem>>, %arg3: memref<2x1x96xf32, #tpu.memory_space<vmem>>, %arg4: memref<2x32x32xf32, #tpu.memory_space<vmem>>, %arg5: memref<2x1x32xf32, #tpu.memory_space<vmem>>, %arg6: memref<2x32x64xf32, #tpu.memory_space<vmem>>, %arg7: memref<2x1x64xf32, #tpu.memory_space<vmem>>, %arg8: memref<2x64x32xf32, #tpu.memory_space<vmem>>, %arg9: memref<2x1x32xf32, #tpu.memory_space<vmem>>, %arg10: memref<2x1x32xf32, #tpu.memory_space<vmem>>, %arg11: memref<2x1x32xf32, #tpu.memory_space<vmem>>, %arg12: memref<1x32xf32, #tpu.memory_space<vmem>>, %arg13: memref<1x32xf32, #tpu.memory_space<vmem>>, %arg14: memref<2x32x16xf32, #tpu.memory_space<vmem>>, %arg15: memref<2x16x32xf32, #tpu.memory_space<vmem>>) attributes {dimension_semantics = [], scalar_prefetch = 0 : i64, scratch_operands = 1 : i64, tpu.core_type = #tpu.core_type<tc>} {
    %c0 = arith.constant 0 : index
    %c0_0 = arith.constant 0 : index
    %c0_1 = arith.constant 0 : index
    %0 = vector.load %arg0[%c0, %c0_0, %c0_1] : memref<2x32x16xf32, #tpu.memory_space<vmem>>, vector<1x32x16xf32>
    %1 = vector.shape_cast %0 : vector<1x32x16xf32> to vector<32x16xf32>
    %2 = tpu.transpose %1, [1, 0] : vector<32x16xf32> -> vector<16x32xf32>
    %c0_2 = arith.constant 0 : index
    %c0_3 = arith.constant 0 : index
    %c0_4 = arith.constant 0 : index
    %3 = vector.load %arg15[%c0_2, %c0_3, %c0_4] : memref<2x16x32xf32, #tpu.memory_space<vmem>>, vector<1x16x32xf32>
    %4 = vector.shape_cast %3 : vector<1x16x32xf32> to vector<16x32xf32>
    %5 = vector.shape_cast %2 : vector<16x32xf32> to vector<1x16x32xf32>
    tpu.vector_store %arg15[%c0_2, %c0_3, %c0_4], %5 {strides = array<i32>} : memref<2x16x32xf32, #tpu.memory_space<vmem>>, vector<1x16x32xf32>,
    %c1 = arith.constant 1 : index
    %c0_5 = arith.constant 0 : index
    %c0_6 = arith.constant 0 : index
    %6 = vector.load %arg0[%c1, %c0_5, %c0_6] : memref<2x32x16xf32, #tpu.memory_space<vmem>>, vector<1x32x16xf32>
    %7 = vector.shape_cast %6 : vector<1x32x16xf32> to vector<32x16xf32>
    %8 = tpu.transpose %7, [1, 0] : vector<32x16xf32> -> vector<16x32xf32>
    %c1_7 = arith.constant 1 : index
    %c0_8 = arith.constant 0 : index
    %c0_9 = arith.constant 0 : index
    %9 = vector.load %arg15[%c1_7, %c0_8, %c0_9] : memref<2x16x32xf32, #tpu.memory_space<vmem>>, vector<1x16x32xf32>
    %10 = vector.shape_cast %9 : vector<1x16x32xf32> to vector<16x32xf32>
    %11 = vector.shape_cast %8 : vector<16x32xf32> to vector<1x16x32xf32>
    tpu.vector_store %arg15[%c1_7, %c0_8, %c0_9], %11 {strides = array<i32>} : memref<2x16x32xf32, #tpu.memory_space<vmem>>, vector<1x16x32xf32>,
    %c0_10 = arith.constant 0 : index
    %c0_11 = arith.constant 0 : index
    %c0_12 = arith.constant 0 : index
    %12 = vector.load %arg15[%c0_10, %c0_11, %c0_12] : memref<2x16x32xf32, #tpu.memory_space<vmem>>, vector<2x16x32xf32>
    %c0_13 = arith.constant 0 : index
    %c0_14 = arith.constant 0 : index
    %13 = vector.load %arg1[%c0_13, %c0_14] : memref<16x32xf32, #tpu.memory_space<vmem>>, vector<16x32xf32>
    %14 = vector.shape_cast %13 : vector<16x32xf32> to vector<1x16x32xf32>
    %15 = vector.broadcast %14 : vector<1x16x32xf32> to vector<2x16x32xf32>
    %16 = arith.addf %12, %15 : vector<2x16x32xf32>
    %17 = arith.addf %12, %16 : vector<2x16x32xf32>
    %c0_15 = arith.constant 0 : index
    %c0_16 = arith.constant 0 : index
    %c0_17 = arith.constant 0 : index
    %18 = vector.load %arg10[%c0_15, %c0_16, %c0_17] : memref<2x1x32xf32, #tpu.memory_space<vmem>>, vector<1x1x32xf32>
    %19 = vector.shape_cast %18 : vector<1x1x32xf32> to vector<1x32xf32>
    %c0_18 = arith.constant 0 : index
    %c0_19 = arith.constant 0 : index
    %c0_20 = arith.constant 0 : index
    %20 = vector.load %arg11[%c0_18, %c0_19, %c0_20] : memref<2x1x32xf32, #tpu.memory_space<vmem>>, vector<1x1x32xf32>
    %21 = vector.shape_cast %20 : vector<1x1x32xf32> to vector<1x32xf32>
    %c0_21 = arith.constant 0 : index
    %c0_22 = arith.constant 0 : index
    %c0_23 = arith.constant 0 : index
    %22 = vector.load %arg2[%c0_21, %c0_22, %c0_23] : memref<2x32x96xf32, #tpu.memory_space<vmem>>, vector<1x32x96xf32>
    %23 = vector.shape_cast %22 : vector<1x32x96xf32> to vector<32x96xf32>
    %c0_24 = arith.constant 0 : index
    %c0_25 = arith.constant 0 : index
    %c0_26 = arith.constant 0 : index
    %24 = vector.load %arg4[%c0_24, %c0_25, %c0_26] : memref<2x32x32xf32, #tpu.memory_space<vmem>>, vector<1x32x32xf32>
    %25 = vector.shape_cast %24 : vector<1x32x32xf32> to vector<32x32xf32>
    %cst = arith.constant dense<0.000000e+00> : vector<2x16xf32>
    %26 = vector.multi_reduction <add>, %17, %cst [2] : vector<2x16x32xf32> to vector<2x16xf32>
    %27 = vector.shape_cast %26 : vector<2x16xf32> to vector<2x16x1xf32>
    %cst_27 = arith.constant 3.200000e+01 : f32
    %28 = vector.broadcast %cst_27 : f32 to vector<2x16x1xf32>
    %29 = arith.divf %27, %28 : vector<2x16x1xf32>
    %30 = vector.broadcast %29 : vector<2x16x1xf32> to vector<2x16x32xf32>
    %31 = arith.subf %17, %30 : vector<2x16x32xf32>
    %32 = arith.mulf %31, %31 : vector<2x16x32xf32>
    %cst_28 = arith.constant dense<0.000000e+00> : vector<2x16xf32>
    %33 = vector.multi_reduction <add>, %32, %cst_28 [2] : vector<2x16x32xf32> to vector<2x16xf32>
    %34 = vector.shape_cast %33 : vector<2x16xf32> to vector<2x16x1xf32>
    %cst_29 = arith.constant 3.200000e+01 : f32
    %35 = vector.broadcast %cst_29 : f32 to vector<2x16x1xf32>
    %36 = arith.divf %34, %35 : vector<2x16x1xf32>
    %37 = vector.broadcast %29 : vector<2x16x1xf32> to vector<2x16x32xf32>
    %38 = arith.subf %17, %37 : vector<2x16x32xf32>
    %cst_30 = arith.constant 9.99999974E-6 : f32
    %39 = vector.broadcast %cst_30 : f32 to vector<2x16x1xf32>
    %40 = arith.addf %36, %39 : vector<2x16x1xf32>
    %41 = math.rsqrt %40 : vector<2x16x1xf32>
    %42 = vector.broadcast %41 : vector<2x16x1xf32> to vector<2x16x32xf32>
    %43 = arith.mulf %38, %42 : vector<2x16x32xf32>
    %44 = vector.shape_cast %19 : vector<1x32xf32> to vector<1x1x32xf32>
    %45 = vector.broadcast %44 : vector<1x1x32xf32> to vector<2x16x32xf32>
    %46 = arith.mulf %43, %45 : vector<2x16x32xf32>
    %47 = vector.shape_cast %21 : vector<1x32xf32> to vector<1x1x32xf32>
    %48 = vector.broadcast %47 : vector<1x1x32xf32> to vector<2x16x32xf32>
    %49 = arith.addf %46, %48 : vector<2x16x32xf32>
    %50 = vector.shape_cast %49 : vector<2x16x32xf32> to vector<32x32xf32>
    %cst_31 = arith.constant dense<0.000000e+00> : vector<32x96xf32>
    %51 = tpu.matmul %50, %23, %cst_31 {dimension_numbers = #tpu.dot_dimension_numbers<[1], [0], [0], [1], [0, 0, 1, 1], [], []>} : vector<32x32xf32>, vector<32x96xf32>, vector<32x96xf32> -> vector<32x96xf32>
    %c0_32 = arith.constant 0 : index
    %c0_33 = arith.constant 0 : index
    %c0_34 = arith.constant 0 : index
    %52 = vector.load %arg3[%c0_32, %c0_33, %c0_34] : memref<2x1x96xf32, #tpu.memory_space<vmem>>, vector<1x1x96xf32>
    %53 = vector.shape_cast %52 : vector<1x1x96xf32> to vector<1x96xf32>
    %54 = vector.broadcast %53 : vector<1x96xf32> to vector<32x96xf32>
    %55 = arith.addf %51, %54 : vector<32x96xf32>
    %cst_35 = arith.constant 0.000000e+00 : f32
    %56 = vector.broadcast %cst_35 : f32 to vector<32x32xf32>
    %57 = vector.extract_strided_slice %55 {offsets = [0, 0], sizes = [32, 8], strides = [1, 1]} : vector<32x96xf32> to vector<32x8xf32>
    %cst_36 = arith.constant 0.353553385 : f32
    %58 = vector.broadcast %cst_36 : f32 to vector<32x8xf32>
    %59 = arith.mulf %57, %58 : vector<32x8xf32>
    %60 = vector.shape_cast %59 : vector<32x8xf32> to vector<2x16x8xf32>
    %61 = vector.extract_strided_slice %55 {offsets = [0, 32], sizes = [32, 8], strides = [1, 1]} : vector<32x96xf32> to vector<32x8xf32>
    %62 = vector.shape_cast %61 : vector<32x8xf32> to vector<2x16x8xf32>
    %63 = vector.extract_strided_slice %55 {offsets = [0, 64], sizes = [32, 8], strides = [1, 1]} : vector<32x96xf32> to vector<32x8xf32>
    %64 = vector.shape_cast %63 : vector<32x8xf32> to vector<2x16x8xf32>
    "tpu.trace_start"() <{level = 10 : i32, message = "bqd,bkd->bqk"}> : () -> ()
    %cst_37 = arith.constant dense<0.000000e+00> : vector<2x16x16xf32>
    %65 = tpu.matmul %60, %62, %cst_37 {dimension_numbers = #tpu.dot_dimension_numbers<[2], [2], [1], [1], [0, 0, 0, 1, 1, 1], [0], [0]>} : vector<2x16x8xf32>, vector<2x16x8xf32>, vector<2x16x16xf32> -> vector<2x16x16xf32>
    "tpu.trace_stop"() : () -> ()
    %cst_38 = arith.constant dense<0xFF800000> : vector<2x16xf32>
    %66 = vector.multi_reduction <maximumf>, %65, %cst_38 [2] : vector<2x16x16xf32> to vector<2x16xf32>
    %67 = vector.shape_cast %66 : vector<2x16xf32> to vector<2x16x1xf32>
    %68 = vector.broadcast %67 : vector<2x16x1xf32> to vector<2x16x16xf32>
    %69 = arith.subf %65, %68 : vector<2x16x16xf32>
    %70 = math.exp %69 : vector<2x16x16xf32>
    %cst_39 = arith.constant dense<0.000000e+00> : vector<2x16xf32>
    %71 = vector.multi_reduction <add>, %70, %cst_39 [2] : vector<2x16x16xf32> to vector<2x16xf32>
    %72 = vector.shape_cast %71 : vector<2x16xf32> to vector<2x16x1xf32>
    %73 = tpu.reciprocal %72 : vector<2x16x1xf32> -> vector<2x16x1xf32>
    %74 = vector.broadcast %73 : vector<2x16x1xf32> to vector<2x16x16xf32>
    %75 = arith.mulf %70, %74 : vector<2x16x16xf32>
    "tpu.trace_start"() <{level = 10 : i32, message = "bqk,bkd->bqd"}> : () -> ()
    %cst_40 = arith.constant dense<0.000000e+00> : vector<2x16x8xf32>
    %76 = tpu.matmul %75, %64, %cst_40 {dimension_numbers = #tpu.dot_dimension_numbers<[2], [1], [1], [2], [0, 0, 0, 1, 1, 2], [0], [0]>} : vector<2x16x16xf32>, vector<2x16x8xf32>, vector<2x16x8xf32> -> vector<2x16x8xf32>
    "tpu.trace_stop"() : () -> ()
    %77 = vector.shape_cast %76 : vector<2x16x8xf32> to vector<32x8xf32>
    %78 = vector.extract_strided_slice %25 {offsets = [0, 0], sizes = [8, 32], strides = [1, 1]} : vector<32x32xf32> to vector<8x32xf32>
    %cst_41 = arith.constant dense<0.000000e+00> : vector<32x32xf32>
    %79 = tpu.matmul %77, %78, %cst_41 {dimension_numbers = #tpu.dot_dimension_numbers<[1], [0], [0], [1], [0, 0, 1, 1], [], []>} : vector<32x8xf32>, vector<8x32xf32>, vector<32x32xf32> -> vector<32x32xf32>
    %80 = arith.addf %56, %79 : vector<32x32xf32>
    %81 = vector.extract_strided_slice %55 {offsets = [0, 8], sizes = [32, 8], strides = [1, 1]} : vector<32x96xf32> to vector<32x8xf32>
    %cst_42 = arith.constant 0.353553385 : f32
    %82 = vector.broadcast %cst_42 : f32 to vector<32x8xf32>
    %83 = arith.mulf %81, %82 : vector<32x8xf32>
    %84 = vector.shape_cast %83 : vector<32x8xf32> to vector<2x16x8xf32>
    %85 = vector.extract_strided_slice %55 {offsets = [0, 40], sizes = [32, 8], strides = [1, 1]} : vector<32x96xf32> to vector<32x8xf32>
    %86 = vector.shape_cast %85 : vector<32x8xf32> to vector<2x16x8xf32>
    %87 = vector.extract_strided_slice %55 {offsets = [0, 72], sizes = [32, 8], strides = [1, 1]} : vector<32x96xf32> to vector<32x8xf32>
    %88 = vector.shape_cast %87 : vector<32x8xf32> to vector<2x16x8xf32>
    "tpu.trace_start"() <{level = 10 : i32, message = "bqd,bkd->bqk"}> : () -> ()
    %cst_43 = arith.constant dense<0.000000e+00> : vector<2x16x16xf32>
    %89 = tpu.matmul %84, %86, %cst_43 {dimension_numbers = #tpu.dot_dimension_numbers<[2], [2], [1], [1], [0, 0, 0, 1, 1, 1], [0], [0]>} : vector<2x16x8xf32>, vector<2x16x8xf32>, vector<2x16x16xf32> -> vector<2x16x16xf32>
    "tpu.trace_stop"() : () -> ()
    %cst_44 = arith.constant dense<0xFF800000> : vector<2x16xf32>
    %90 = vector.multi_reduction <maximumf>, %89, %cst_44 [2] : vector<2x16x16xf32> to vector<2x16xf32>
    %91 = vector.shape_cast %90 : vector<2x16xf32> to vector<2x16x1xf32>
    %92 = vector.broadcast %91 : vector<2x16x1xf32> to vector<2x16x16xf32>
    %93 = arith.subf %89, %92 : vector<2x16x16xf32>
    %94 = math.exp %93 : vector<2x16x16xf32>
    %cst_45 = arith.constant dense<0.000000e+00> : vector<2x16xf32>
    %95 = vector.multi_reduction <add>, %94, %cst_45 [2] : vector<2x16x16xf32> to vector<2x16xf32>
    %96 = vector.shape_cast %95 : vector<2x16xf32> to vector<2x16x1xf32>
    %97 = tpu.reciprocal %96 : vector<2x16x1xf32> -> vector<2x16x1xf32>
    %98 = vector.broadcast %97 : vector<2x16x1xf32> to vector<2x16x16xf32>
    %99 = arith.mulf %94, %98 : vector<2x16x16xf32>
    "tpu.trace_start"() <{level = 10 : i32, message = "bqk,bkd->bqd"}> : () -> ()
    %cst_46 = arith.constant dense<0.000000e+00> : vector<2x16x8xf32>
    %100 = tpu.matmul %99, %88, %cst_46 {dimension_numbers = #tpu.dot_dimension_numbers<[2], [1], [1], [2], [0, 0, 0, 1, 1, 2], [0], [0]>} : vector<2x16x16xf32>, vector<2x16x8xf32>, vector<2x16x8xf32> -> vector<2x16x8xf32>
    "tpu.trace_stop"() : () -> ()
    %101 = vector.shape_cast %100 : vector<2x16x8xf32> to vector<32x8xf32>
    %102 = vector.extract_strided_slice %25 {offsets = [8, 0], sizes = [8, 32], strides = [1, 1]} : vector<32x32xf32> to vector<8x32xf32>
    %cst_47 = arith.constant dense<0.000000e+00> : vector<32x32xf32>
    %103 = tpu.matmul %101, %102, %cst_47 {dimension_numbers = #tpu.dot_dimension_numbers<[1], [0], [0], [1], [0, 0, 1, 1], [], []>} : vector<32x8xf32>, vector<8x32xf32>, vector<32x32xf32> -> vector<32x32xf32>
    %104 = arith.addf %80, %103 : vector<32x32xf32>
    %105 = vector.extract_strided_slice %55 {offsets = [0, 16], sizes = [32, 8], strides = [1, 1]} : vector<32x96xf32> to vector<32x8xf32>
    %cst_48 = arith.constant 0.353553385 : f32
    %106 = vector.broadcast %cst_48 : f32 to vector<32x8xf32>
    %107 = arith.mulf %105, %106 : vector<32x8xf32>
    %108 = vector.shape_cast %107 : vector<32x8xf32> to vector<2x16x8xf32>
    %109 = vector.extract_strided_slice %55 {offsets = [0, 48], sizes = [32, 8], strides = [1, 1]} : vector<32x96xf32> to vector<32x8xf32>
    %110 = vector.shape_cast %109 : vector<32x8xf32> to vector<2x16x8xf32>
    %111 = vector.extract_strided_slice %55 {offsets = [0, 80], sizes = [32, 8], strides = [1, 1]} : vector<32x96xf32> to vector<32x8xf32>
    %112 = vector.shape_cast %111 : vector<32x8xf32> to vector<2x16x8xf32>
    "tpu.trace_start"() <{level = 10 : i32, message = "bqd,bkd->bqk"}> : () -> ()
    %cst_49 = arith.constant dense<0.000000e+00> : vector<2x16x16xf32>
    %113 = tpu.matmul %108, %110, %cst_49 {dimension_numbers = #tpu.dot_dimension_numbers<[2], [2], [1], [1], [0, 0, 0, 1, 1, 1], [0], [0]>} : vector<2x16x8xf32>, vector<2x16x8xf32>, vector<2x16x16xf32> -> vector<2x16x16xf32>
    "tpu.trace_stop"() : () -> ()
    %cst_50 = arith.constant dense<0xFF800000> : vector<2x16xf32>
    %114 = vector.multi_reduction <maximumf>, %113, %cst_50 [2] : vector<2x16x16xf32> to vector<2x16xf32>
    %115 = vector.shape_cast %114 : vector<2x16xf32> to vector<2x16x1xf32>
    %116 = vector.broadcast %115 : vector<2x16x1xf32> to vector<2x16x16xf32>
    %117 = arith.subf %113, %116 : vector<2x16x16xf32>
    %118 = math.exp %117 : vector<2x16x16xf32>
    %cst_51 = arith.constant dense<0.000000e+00> : vector<2x16xf32>
    %119 = vector.multi_reduction <add>, %118, %cst_51 [2] : vector<2x16x16xf32> to vector<2x16xf32>
    %120 = vector.shape_cast %119 : vector<2x16xf32> to vector<2x16x1xf32>
    %121 = tpu.reciprocal %120 : vector<2x16x1xf32> -> vector<2x16x1xf32>
    %122 = vector.broadcast %121 : vector<2x16x1xf32> to vector<2x16x16xf32>
    %123 = arith.mulf %118, %122 : vector<2x16x16xf32>
    "tpu.trace_start"() <{level = 10 : i32, message = "bqk,bkd->bqd"}> : () -> ()
    %cst_52 = arith.constant dense<0.000000e+00> : vector<2x16x8xf32>
    %124 = tpu.matmul %123, %112, %cst_52 {dimension_numbers = #tpu.dot_dimension_numbers<[2], [1], [1], [2], [0, 0, 0, 1, 1, 2], [0], [0]>} : vector<2x16x16xf32>, vector<2x16x8xf32>, vector<2x16x8xf32> -> vector<2x16x8xf32>
    "tpu.trace_stop"() : () -> ()
    %125 = vector.shape_cast %124 : vector<2x16x8xf32> to vector<32x8xf32>
    %126 = vector.extract_strided_slice %25 {offsets = [16, 0], sizes = [8, 32], strides = [1, 1]} : vector<32x32xf32> to vector<8x32xf32>
    %cst_53 = arith.constant dense<0.000000e+00> : vector<32x32xf32>
    %127 = tpu.matmul %125, %126, %cst_53 {dimension_numbers = #tpu.dot_dimension_numbers<[1], [0], [0], [1], [0, 0, 1, 1], [], []>} : vector<32x8xf32>, vector<8x32xf32>, vector<32x32xf32> -> vector<32x32xf32>
    %128 = arith.addf %104, %127 : vector<32x32xf32>
    %129 = vector.extract_strided_slice %55 {offsets = [0, 24], sizes = [32, 8], strides = [1, 1]} : vector<32x96xf32> to vector<32x8xf32>
    %cst_54 = arith.constant 0.353553385 : f32
    %130 = vector.broadcast %cst_54 : f32 to vector<32x8xf32>
    %131 = arith.mulf %129, %130 : vector<32x8xf32>
    %132 = vector.shape_cast %131 : vector<32x8xf32> to vector<2x16x8xf32>
    %133 = vector.extract_strided_slice %55 {offsets = [0, 56], sizes = [32, 8], strides = [1, 1]} : vector<32x96xf32> to vector<32x8xf32>
    %134 = vector.shape_cast %133 : vector<32x8xf32> to vector<2x16x8xf32>
    %135 = vector.extract_strided_slice %55 {offsets = [0, 88], sizes = [32, 8], strides = [1, 1]} : vector<32x96xf32> to vector<32x8xf32>
    %136 = vector.shape_cast %135 : vector<32x8xf32> to vector<2x16x8xf32>
    "tpu.trace_start"() <{level = 10 : i32, message = "bqd,bkd->bqk"}> : () -> ()
    %cst_55 = arith.constant dense<0.000000e+00> : vector<2x16x16xf32>
    %137 = tpu.matmul %132, %134, %cst_55 {dimension_numbers = #tpu.dot_dimension_numbers<[2], [2], [1], [1], [0, 0, 0, 1, 1, 1], [0], [0]>} : vector<2x16x8xf32>, vector<2x16x8xf32>, vector<2x16x16xf32> -> vector<2x16x16xf32>
    "tpu.trace_stop"() : () -> ()
    %cst_56 = arith.constant dense<0xFF800000> : vector<2x16xf32>
    %138 = vector.multi_reduction <maximumf>, %137, %cst_56 [2] : vector<2x16x16xf32> to vector<2x16xf32>
    %139 = vector.shape_cast %138 : vector<2x16xf32> to vector<2x16x1xf32>
    %140 = vector.broadcast %139 : vector<2x16x1xf32> to vector<2x16x16xf32>
    %141 = arith.subf %137, %140 : vector<2x16x16xf32>
    %142 = math.exp %141 : vector<2x16x16xf32>
    %cst_57 = arith.constant dense<0.000000e+00> : vector<2x16xf32>
    %143 = vector.multi_reduction <add>, %142, %cst_57 [2] : vector<2x16x16xf32> to vector<2x16xf32>
    %144 = vector.shape_cast %143 : vector<2x16xf32> to vector<2x16x1xf32>
    %145 = tpu.reciprocal %144 : vector<2x16x1xf32> -> vector<2x16x1xf32>
    %146 = vector.broadcast %145 : vector<2x16x1xf32> to vector<2x16x16xf32>
    %147 = arith.mulf %142, %146 : vector<2x16x16xf32>
    "tpu.trace_start"() <{level = 10 : i32, message = "bqk,bkd->bqd"}> : () -> ()
    %cst_58 = arith.constant dense<0.000000e+00> : vector<2x16x8xf32>
    %148 = tpu.matmul %147, %136, %cst_58 {dimension_numbers = #tpu.dot_dimension_numbers<[2], [1], [1], [2], [0, 0, 0, 1, 1, 2], [0], [0]>} : vector<2x16x16xf32>, vector<2x16x8xf32>, vector<2x16x8xf32> -> vector<2x16x8xf32>
    "tpu.trace_stop"() : () -> ()
    %149 = vector.shape_cast %148 : vector<2x16x8xf32> to vector<32x8xf32>
    %150 = vector.extract_strided_slice %25 {offsets = [24, 0], sizes = [8, 32], strides = [1, 1]} : vector<32x32xf32> to vector<8x32xf32>
    %cst_59 = arith.constant dense<0.000000e+00> : vector<32x32xf32>
    %151 = tpu.matmul %149, %150, %cst_59 {dimension_numbers = #tpu.dot_dimension_numbers<[1], [0], [0], [1], [0, 0, 1, 1], [], []>} : vector<32x8xf32>, vector<8x32xf32>, vector<32x32xf32> -> vector<32x32xf32>
    %152 = arith.addf %128, %151 : vector<32x32xf32>
    %c0_60 = arith.constant 0 : index
    %c0_61 = arith.constant 0 : index
    %c0_62 = arith.constant 0 : index
    %153 = vector.load %arg5[%c0_60, %c0_61, %c0_62] : memref<2x1x32xf32, #tpu.memory_space<vmem>>, vector<1x1x32xf32>
    %154 = vector.shape_cast %153 : vector<1x1x32xf32> to vector<1x32xf32>
    %155 = vector.broadcast %154 : vector<1x32xf32> to vector<32x32xf32>
    %156 = arith.addf %152, %155 : vector<32x32xf32>
    %157 = vector.shape_cast %156 : vector<32x32xf32> to vector<2x16x32xf32>
    %158 = arith.addf %157, %17 : vector<2x16x32xf32>
    %cst_63 = arith.constant dense<0.000000e+00> : vector<2x16xf32>
    %159 = vector.multi_reduction <add>, %158, %cst_63 [2] : vector<2x16x32xf32> to vector<2x16xf32>
    %160 = vector.shape_cast %159 : vector<2x16xf32> to vector<2x16x1xf32>
    %cst_64 = arith.constant 3.200000e+01 : f32
    %161 = vector.broadcast %cst_64 : f32 to vector<2x16x1xf32>
    %162 = arith.divf %160, %161 : vector<2x16x1xf32>
    %163 = vector.broadcast %162 : vector<2x16x1xf32> to vector<2x16x32xf32>
    %164 = arith.subf %158, %163 : vector<2x16x32xf32>
    %165 = arith.mulf %164, %164 : vector<2x16x32xf32>
    %cst_65 = arith.constant dense<0.000000e+00> : vector<2x16xf32>
    %166 = vector.multi_reduction <add>, %165, %cst_65 [2] : vector<2x16x32xf32> to vector<2x16xf32>
    %167 = vector.shape_cast %166 : vector<2x16xf32> to vector<2x16x1xf32>
    %cst_66 = arith.constant 3.200000e+01 : f32
    %168 = vector.broadcast %cst_66 : f32 to vector<2x16x1xf32>
    %169 = arith.divf %167, %168 : vector<2x16x1xf32>
    %170 = vector.broadcast %162 : vector<2x16x1xf32> to vector<2x16x32xf32>
    %171 = arith.subf %158, %170 : vector<2x16x32xf32>
    %cst_67 = arith.constant 9.99999974E-6 : f32
    %172 = vector.broadcast %cst_67 : f32 to vector<2x16x1xf32>
    %173 = arith.addf %169, %172 : vector<2x16x1xf32>
    %174 = math.rsqrt %173 : vector<2x16x1xf32>
    %175 = vector.broadcast %174 : vector<2x16x1xf32> to vector<2x16x32xf32>
    %176 = arith.mulf %171, %175 : vector<2x16x32xf32>
    %177 = vector.shape_cast %19 : vector<1x32xf32> to vector<1x1x32xf32>
    %178 = vector.broadcast %177 : vector<1x1x32xf32> to vector<2x16x32xf32>
    %179 = arith.mulf %176, %178 : vector<2x16x32xf32>
    %180 = vector.shape_cast %21 : vector<1x32xf32> to vector<1x1x32xf32>
    %181 = vector.broadcast %180 : vector<1x1x32xf32> to vector<2x16x32xf32>
    %182 = arith.addf %179, %181 : vector<2x16x32xf32>
    %183 = vector.shape_cast %182 : vector<2x16x32xf32> to vector<32x32xf32>
    %c0_68 = arith.constant 0 : index
    %c0_69 = arith.constant 0 : index
    %c0_70 = arith.constant 0 : index
    %184 = vector.load %arg6[%c0_68, %c0_69, %c0_70] : memref<2x32x64xf32, #tpu.memory_space<vmem>>, vector<1x32x64xf32>
    %185 = vector.shape_cast %184 : vector<1x32x64xf32> to vector<32x64xf32>
    %cst_71 = arith.constant dense<0.000000e+00> : vector<32x64xf32>
    %186 = tpu.matmul %183, %185, %cst_71 {dimension_numbers = #tpu.dot_dimension_numbers<[1], [0], [0], [1], [0, 0, 1, 1], [], []>} : vector<32x32xf32>, vector<32x64xf32>, vector<32x64xf32> -> vector<32x64xf32>
    %c0_72 = arith.constant 0 : index
    %c0_73 = arith.constant 0 : index
    %c0_74 = arith.constant 0 : index
    %187 = vector.load %arg7[%c0_72, %c0_73, %c0_74] : memref<2x1x64xf32, #tpu.memory_space<vmem>>, vector<1x1x64xf32>
    %188 = vector.shape_cast %187 : vector<1x1x64xf32> to vector<1x64xf32>
    %189 = vector.broadcast %188 : vector<1x64xf32> to vector<32x64xf32>
    %190 = arith.addf %186, %189 : vector<32x64xf32>
    %cst_75 = arith.constant 0.000000e+00 : f32
    %191 = vector.broadcast %cst_75 : f32 to vector<32x64xf32>
    %192 = arith.maximumf %190, %191 : vector<32x64xf32>
    %c0_76 = arith.constant 0 : index
    %c0_77 = arith.constant 0 : index
    %c0_78 = arith.constant 0 : index
    %193 = vector.load %arg8[%c0_76, %c0_77, %c0_78] : memref<2x64x32xf32, #tpu.memory_space<vmem>>, vector<1x64x32xf32>
    %194 = vector.shape_cast %193 : vector<1x64x32xf32> to vector<64x32xf32>
    %cst_79 = arith.constant dense<0.000000e+00> : vector<32x32xf32>
    %195 = tpu.matmul %192, %194, %cst_79 {dimension_numbers = #tpu.dot_dimension_numbers<[1], [0], [0], [1], [0, 0, 1, 1], [], []>} : vector<32x64xf32>, vector<64x32xf32>, vector<32x32xf32> -> vector<32x32xf32>
    %c0_80 = arith.constant 0 : index
    %c0_81 = arith.constant 0 : index
    %c0_82 = arith.constant 0 : index
    %196 = vector.load %arg9[%c0_80, %c0_81, %c0_82] : memref<2x1x32xf32, #tpu.memory_space<vmem>>, vector<1x1x32xf32>
    %197 = vector.shape_cast %196 : vector<1x1x32xf32> to vector<1x32xf32>
    %198 = vector.broadcast %197 : vector<1x32xf32> to vector<32x32xf32>
    %199 = arith.addf %195, %198 : vector<32x32xf32>
    %200 = vector.shape_cast %199 : vector<32x32xf32> to vector<2x16x32xf32>
    %201 = arith.addf %200, %158 : vector<2x16x32xf32>
    %c1_83 = arith.constant 1 : index
    %c0_84 = arith.constant 0 : index
    %c0_85 = arith.constant 0 : index
    %202 = vector.load %arg10[%c1_83, %c0_84, %c0_85] : memref<2x1x32xf32, #tpu.memory_space<vmem>>, vector<1x1x32xf32>
    %203 = vector.shape_cast %202 : vector<1x1x32xf32> to vector<1x32xf32>
    %c1_86 = arith.constant 1 : index
    %c0_87 = arith.constant 0 : index
    %c0_88 = arith.constant 0 : index
    %204 = vector.load %arg11[%c1_86, %c0_87, %c0_88] : memref<2x1x32xf32, #tpu.memory_space<vmem>>, vector<1x1x32xf32>
    %205 = vector.shape_cast %204 : vector<1x1x32xf32> to vector<1x32xf32>
    %c1_89 = arith.constant 1 : index
    %c0_90 = arith.constant 0 : index
    %c0_91 = arith.constant 0 : index
    %206 = vector.load %arg2[%c1_89, %c0_90, %c0_91] : memref<2x32x96xf32, #tpu.memory_space<vmem>>, vector<1x32x96xf32>
    %207 = vector.shape_cast %206 : vector<1x32x96xf32> to vector<32x96xf32>
    %c1_92 = arith.constant 1 : index
    %c0_93 = arith.constant 0 : index
    %c0_94 = arith.constant 0 : index
    %208 = vector.load %arg4[%c1_92, %c0_93, %c0_94] : memref<2x32x32xf32, #tpu.memory_space<vmem>>, vector<1x32x32xf32>
    %209 = vector.shape_cast %208 : vector<1x32x32xf32> to vector<32x32xf32>
    %cst_95 = arith.constant dense<0.000000e+00> : vector<2x16xf32>
    %210 = vector.multi_reduction <add>, %201, %cst_95 [2] : vector<2x16x32xf32> to vector<2x16xf32>
    %211 = vector.shape_cast %210 : vector<2x16xf32> to vector<2x16x1xf32>
    %cst_96 = arith.constant 3.200000e+01 : f32
    %212 = vector.broadcast %cst_96 : f32 to vector<2x16x1xf32>
    %213 = arith.divf %211, %212 : vector<2x16x1xf32>
    %214 = vector.broadcast %213 : vector<2x16x1xf32> to vector<2x16x32xf32>
    %215 = arith.subf %201, %214 : vector<2x16x32xf32>
    %216 = arith.mulf %215, %215 : vector<2x16x32xf32>
    %cst_97 = arith.constant dense<0.000000e+00> : vector<2x16xf32>
    %217 = vector.multi_reduction <add>, %216, %cst_97 [2] : vector<2x16x32xf32> to vector<2x16xf32>
    %218 = vector.shape_cast %217 : vector<2x16xf32> to vector<2x16x1xf32>
    %cst_98 = arith.constant 3.200000e+01 : f32
    %219 = vector.broadcast %cst_98 : f32 to vector<2x16x1xf32>
    %220 = arith.divf %218, %219 : vector<2x16x1xf32>
    %221 = vector.broadcast %213 : vector<2x16x1xf32> to vector<2x16x32xf32>
    %222 = arith.subf %201, %221 : vector<2x16x32xf32>
    %cst_99 = arith.constant 9.99999974E-6 : f32
    %223 = vector.broadcast %cst_99 : f32 to vector<2x16x1xf32>
    %224 = arith.addf %220, %223 : vector<2x16x1xf32>
    %225 = math.rsqrt %224 : vector<2x16x1xf32>
    %226 = vector.broadcast %225 : vector<2x16x1xf32> to vector<2x16x32xf32>
    %227 = arith.mulf %222, %226 : vector<2x16x32xf32>
    %228 = vector.shape_cast %203 : vector<1x32xf32> to vector<1x1x32xf32>
    %229 = vector.broadcast %228 : vector<1x1x32xf32> to vector<2x16x32xf32>
    %230 = arith.mulf %227, %229 : vector<2x16x32xf32>
    %231 = vector.shape_cast %205 : vector<1x32xf32> to vector<1x1x32xf32>
    %232 = vector.broadcast %231 : vector<1x1x32xf32> to vector<2x16x32xf32>
    %233 = arith.addf %230, %232 : vector<2x16x32xf32>
    %234 = vector.shape_cast %233 : vector<2x16x32xf32> to vector<32x32xf32>
    %cst_100 = arith.constant dense<0.000000e+00> : vector<32x96xf32>
    %235 = tpu.matmul %234, %207, %cst_100 {dimension_numbers = #tpu.dot_dimension_numbers<[1], [0], [0], [1], [0, 0, 1, 1], [], []>} : vector<32x32xf32>, vector<32x96xf32>, vector<32x96xf32> -> vector<32x96xf32>
    %c1_101 = arith.constant 1 : index
    %c0_102 = arith.constant 0 : index
    %c0_103 = arith.constant 0 : index
    %236 = vector.load %arg3[%c1_101, %c0_102, %c0_103] : memref<2x1x96xf32, #tpu.memory_space<vmem>>, vector<1x1x96xf32>
    %237 = vector.shape_cast %236 : vector<1x1x96xf32> to vector<1x96xf32>
    %238 = vector.broadcast %237 : vector<1x96xf32> to vector<32x96xf32>
    %239 = arith.addf %235, %238 : vector<32x96xf32>
    %cst_104 = arith.constant 0.000000e+00 : f32
    %240 = vector.broadcast %cst_104 : f32 to vector<32x32xf32>
    %241 = vector.extract_strided_slice %239 {offsets = [0, 0], sizes = [32, 8], strides = [1, 1]} : vector<32x96xf32> to vector<32x8xf32>
    %cst_105 = arith.constant 0.353553385 : f32
    %242 = vector.broadcast %cst_105 : f32 to vector<32x8xf32>
    %243 = arith.mulf %241, %242 : vector<32x8xf32>
    %244 = vector.shape_cast %243 : vector<32x8xf32> to vector<2x16x8xf32>
    %245 = vector.extract_strided_slice %239 {offsets = [0, 32], sizes = [32, 8], strides = [1, 1]} : vector<32x96xf32> to vector<32x8xf32>
    %246 = vector.shape_cast %245 : vector<32x8xf32> to vector<2x16x8xf32>
    %247 = vector.extract_strided_slice %239 {offsets = [0, 64], sizes = [32, 8], strides = [1, 1]} : vector<32x96xf32> to vector<32x8xf32>
    %248 = vector.shape_cast %247 : vector<32x8xf32> to vector<2x16x8xf32>
    "tpu.trace_start"() <{level = 10 : i32, message = "bqd,bkd->bqk"}> : () -> ()
    %cst_106 = arith.constant dense<0.000000e+00> : vector<2x16x16xf32>
    %249 = tpu.matmul %244, %246, %cst_106 {dimension_numbers = #tpu.dot_dimension_numbers<[2], [2], [1], [1], [0, 0, 0, 1, 1, 1], [0], [0]>} : vector<2x16x8xf32>, vector<2x16x8xf32>, vector<2x16x16xf32> -> vector<2x16x16xf32>
    "tpu.trace_stop"() : () -> ()
    %cst_107 = arith.constant dense<0xFF800000> : vector<2x16xf32>
    %250 = vector.multi_reduction <maximumf>, %249, %cst_107 [2] : vector<2x16x16xf32> to vector<2x16xf32>
    %251 = vector.shape_cast %250 : vector<2x16xf32> to vector<2x16x1xf32>
    %252 = vector.broadcast %251 : vector<2x16x1xf32> to vector<2x16x16xf32>
    %253 = arith.subf %249, %252 : vector<2x16x16xf32>
    %254 = math.exp %253 : vector<2x16x16xf32>
    %cst_108 = arith.constant dense<0.000000e+00> : vector<2x16xf32>
    %255 = vector.multi_reduction <add>, %254, %cst_108 [2] : vector<2x16x16xf32> to vector<2x16xf32>
    %256 = vector.shape_cast %255 : vector<2x16xf32> to vector<2x16x1xf32>
    %257 = tpu.reciprocal %256 : vector<2x16x1xf32> -> vector<2x16x1xf32>
    %258 = vector.broadcast %257 : vector<2x16x1xf32> to vector<2x16x16xf32>
    %259 = arith.mulf %254, %258 : vector<2x16x16xf32>
    "tpu.trace_start"() <{level = 10 : i32, message = "bqk,bkd->bqd"}> : () -> ()
    %cst_109 = arith.constant dense<0.000000e+00> : vector<2x16x8xf32>
    %260 = tpu.matmul %259, %248, %cst_109 {dimension_numbers = #tpu.dot_dimension_numbers<[2], [1], [1], [2], [0, 0, 0, 1, 1, 2], [0], [0]>} : vector<2x16x16xf32>, vector<2x16x8xf32>, vector<2x16x8xf32> -> vector<2x16x8xf32>
    "tpu.trace_stop"() : () -> ()
    %261 = vector.shape_cast %260 : vector<2x16x8xf32> to vector<32x8xf32>
    %262 = vector.extract_strided_slice %209 {offsets = [0, 0], sizes = [8, 32], strides = [1, 1]} : vector<32x32xf32> to vector<8x32xf32>
    %cst_110 = arith.constant dense<0.000000e+00> : vector<32x32xf32>
    %263 = tpu.matmul %261, %262, %cst_110 {dimension_numbers = #tpu.dot_dimension_numbers<[1], [0], [0], [1], [0, 0, 1, 1], [], []>} : vector<32x8xf32>, vector<8x32xf32>, vector<32x32xf32> -> vector<32x32xf32>
    %264 = arith.addf %240, %263 : vector<32x32xf32>
    %265 = vector.extract_strided_slice %239 {offsets = [0, 8], sizes = [32, 8], strides = [1, 1]} : vector<32x96xf32> to vector<32x8xf32>
    %cst_111 = arith.constant 0.353553385 : f32
    %266 = vector.broadcast %cst_111 : f32 to vector<32x8xf32>
    %267 = arith.mulf %265, %266 : vector<32x8xf32>
    %268 = vector.shape_cast %267 : vector<32x8xf32> to vector<2x16x8xf32>
    %269 = vector.extract_strided_slice %239 {offsets = [0, 40], sizes = [32, 8], strides = [1, 1]} : vector<32x96xf32> to vector<32x8xf32>
    %270 = vector.shape_cast %269 : vector<32x8xf32> to vector<2x16x8xf32>
    %271 = vector.extract_strided_slice %239 {offsets = [0, 72], sizes = [32, 8], strides = [1, 1]} : vector<32x96xf32> to vector<32x8xf32>
    %272 = vector.shape_cast %271 : vector<32x8xf32> to vector<2x16x8xf32>
    "tpu.trace_start"() <{level = 10 : i32, message = "bqd,bkd->bqk"}> : () -> ()
    %cst_112 = arith.constant dense<0.000000e+00> : vector<2x16x16xf32>
    %273 = tpu.matmul %268, %270, %cst_112 {dimension_numbers = #tpu.dot_dimension_numbers<[2], [2], [1], [1], [0, 0, 0, 1, 1, 1], [0], [0]>} : vector<2x16x8xf32>, vector<2x16x8xf32>, vector<2x16x16xf32> -> vector<2x16x16xf32>
    "tpu.trace_stop"() : () -> ()
    %cst_113 = arith.constant dense<0xFF800000> : vector<2x16xf32>
    %274 = vector.multi_reduction <maximumf>, %273, %cst_113 [2] : vector<2x16x16xf32> to vector<2x16xf32>
    %275 = vector.shape_cast %274 : vector<2x16xf32> to vector<2x16x1xf32>
    %276 = vector.broadcast %275 : vector<2x16x1xf32> to vector<2x16x16xf32>
    %277 = arith.subf %273, %276 : vector<2x16x16xf32>
    %278 = math.exp %277 : vector<2x16x16xf32>
    %cst_114 = arith.constant dense<0.000000e+00> : vector<2x16xf32>
    %279 = vector.multi_reduction <add>, %278, %cst_114 [2] : vector<2x16x16xf32> to vector<2x16xf32>
    %280 = vector.shape_cast %279 : vector<2x16xf32> to vector<2x16x1xf32>
    %281 = tpu.reciprocal %280 : vector<2x16x1xf32> -> vector<2x16x1xf32>
    %282 = vector.broadcast %281 : vector<2x16x1xf32> to vector<2x16x16xf32>
    %283 = arith.mulf %278, %282 : vector<2x16x16xf32>
    "tpu.trace_start"() <{level = 10 : i32, message = "bqk,bkd->bqd"}> : () -> ()
    %cst_115 = arith.constant dense<0.000000e+00> : vector<2x16x8xf32>
    %284 = tpu.matmul %283, %272, %cst_115 {dimension_numbers = #tpu.dot_dimension_numbers<[2], [1], [1], [2], [0, 0, 0, 1, 1, 2], [0], [0]>} : vector<2x16x16xf32>, vector<2x16x8xf32>, vector<2x16x8xf32> -> vector<2x16x8xf32>
    "tpu.trace_stop"() : () -> ()
    %285 = vector.shape_cast %284 : vector<2x16x8xf32> to vector<32x8xf32>
    %286 = vector.extract_strided_slice %209 {offsets = [8, 0], sizes = [8, 32], strides = [1, 1]} : vector<32x32xf32> to vector<8x32xf32>
    %cst_116 = arith.constant dense<0.000000e+00> : vector<32x32xf32>
    %287 = tpu.matmul %285, %286, %cst_116 {dimension_numbers = #tpu.dot_dimension_numbers<[1], [0], [0], [1], [0, 0, 1, 1], [], []>} : vector<32x8xf32>, vector<8x32xf32>, vector<32x32xf32> -> vector<32x32xf32>
    %288 = arith.addf %264, %287 : vector<32x32xf32>
    %289 = vector.extract_strided_slice %239 {offsets = [0, 16], sizes = [32, 8], strides = [1, 1]} : vector<32x96xf32> to vector<32x8xf32>
    %cst_117 = arith.constant 0.353553385 : f32
    %290 = vector.broadcast %cst_117 : f32 to vector<32x8xf32>
    %291 = arith.mulf %289, %290 : vector<32x8xf32>
    %292 = vector.shape_cast %291 : vector<32x8xf32> to vector<2x16x8xf32>
    %293 = vector.extract_strided_slice %239 {offsets = [0, 48], sizes = [32, 8], strides = [1, 1]} : vector<32x96xf32> to vector<32x8xf32>
    %294 = vector.shape_cast %293 : vector<32x8xf32> to vector<2x16x8xf32>
    %295 = vector.extract_strided_slice %239 {offsets = [0, 80], sizes = [32, 8], strides = [1, 1]} : vector<32x96xf32> to vector<32x8xf32>
    %296 = vector.shape_cast %295 : vector<32x8xf32> to vector<2x16x8xf32>
    "tpu.trace_start"() <{level = 10 : i32, message = "bqd,bkd->bqk"}> : () -> ()
    %cst_118 = arith.constant dense<0.000000e+00> : vector<2x16x16xf32>
    %297 = tpu.matmul %292, %294, %cst_118 {dimension_numbers = #tpu.dot_dimension_numbers<[2], [2], [1], [1], [0, 0, 0, 1, 1, 1], [0], [0]>} : vector<2x16x8xf32>, vector<2x16x8xf32>, vector<2x16x16xf32> -> vector<2x16x16xf32>
    "tpu.trace_stop"() : () -> ()
    %cst_119 = arith.constant dense<0xFF800000> : vector<2x16xf32>
    %298 = vector.multi_reduction <maximumf>, %297, %cst_119 [2] : vector<2x16x16xf32> to vector<2x16xf32>
    %299 = vector.shape_cast %298 : vector<2x16xf32> to vector<2x16x1xf32>
    %300 = vector.broadcast %299 : vector<2x16x1xf32> to vector<2x16x16xf32>
    %301 = arith.subf %297, %300 : vector<2x16x16xf32>
    %302 = math.exp %301 : vector<2x16x16xf32>
    %cst_120 = arith.constant dense<0.000000e+00> : vector<2x16xf32>
    %303 = vector.multi_reduction <add>, %302, %cst_120 [2] : vector<2x16x16xf32> to vector<2x16xf32>
    %304 = vector.shape_cast %303 : vector<2x16xf32> to vector<2x16x1xf32>
    %305 = tpu.reciprocal %304 : vector<2x16x1xf32> -> vector<2x16x1xf32>
    %306 = vector.broadcast %305 : vector<2x16x1xf32> to vector<2x16x16xf32>
    %307 = arith.mulf %302, %306 : vector<2x16x16xf32>
    "tpu.trace_start"() <{level = 10 : i32, message = "bqk,bkd->bqd"}> : () -> ()
    %cst_121 = arith.constant dense<0.000000e+00> : vector<2x16x8xf32>
    %308 = tpu.matmul %307, %296, %cst_121 {dimension_numbers = #tpu.dot_dimension_numbers<[2], [1], [1], [2], [0, 0, 0, 1, 1, 2], [0], [0]>} : vector<2x16x16xf32>, vector<2x16x8xf32>, vector<2x16x8xf32> -> vector<2x16x8xf32>
    "tpu.trace_stop"() : () -> ()
    %309 = vector.shape_cast %308 : vector<2x16x8xf32> to vector<32x8xf32>
    %310 = vector.extract_strided_slice %209 {offsets = [16, 0], sizes = [8, 32], strides = [1, 1]} : vector<32x32xf32> to vector<8x32xf32>
    %cst_122 = arith.constant dense<0.000000e+00> : vector<32x32xf32>
    %311 = tpu.matmul %309, %310, %cst_122 {dimension_numbers = #tpu.dot_dimension_numbers<[1], [0], [0], [1], [0, 0, 1, 1], [], []>} : vector<32x8xf32>, vector<8x32xf32>, vector<32x32xf32> -> vector<32x32xf32>
    %312 = arith.addf %288, %311 : vector<32x32xf32>
    %313 = vector.extract_strided_slice %239 {offsets = [0, 24], sizes = [32, 8], strides = [1, 1]} : vector<32x96xf32> to vector<32x8xf32>
    %cst_123 = arith.constant 0.353553385 : f32
    %314 = vector.broadcast %cst_123 : f32 to vector<32x8xf32>
    %315 = arith.mulf %313, %314 : vector<32x8xf32>
    %316 = vector.shape_cast %315 : vector<32x8xf32> to vector<2x16x8xf32>
    %317 = vector.extract_strided_slice %239 {offsets = [0, 56], sizes = [32, 8], strides = [1, 1]} : vector<32x96xf32> to vector<32x8xf32>
    %318 = vector.shape_cast %317 : vector<32x8xf32> to vector<2x16x8xf32>
    %319 = vector.extract_strided_slice %239 {offsets = [0, 88], sizes = [32, 8], strides = [1, 1]} : vector<32x96xf32> to vector<32x8xf32>
    %320 = vector.shape_cast %319 : vector<32x8xf32> to vector<2x16x8xf32>
    "tpu.trace_start"() <{level = 10 : i32, message = "bqd,bkd->bqk"}> : () -> ()
    %cst_124 = arith.constant dense<0.000000e+00> : vector<2x16x16xf32>
    %321 = tpu.matmul %316, %318, %cst_124 {dimension_numbers = #tpu.dot_dimension_numbers<[2], [2], [1], [1], [0, 0, 0, 1, 1, 1], [0], [0]>} : vector<2x16x8xf32>, vector<2x16x8xf32>, vector<2x16x16xf32> -> vector<2x16x16xf32>
    "tpu.trace_stop"() : () -> ()
    %cst_125 = arith.constant dense<0xFF800000> : vector<2x16xf32>
    %322 = vector.multi_reduction <maximumf>, %321, %cst_125 [2] : vector<2x16x16xf32> to vector<2x16xf32>
    %323 = vector.shape_cast %322 : vector<2x16xf32> to vector<2x16x1xf32>
    %324 = vector.broadcast %323 : vector<2x16x1xf32> to vector<2x16x16xf32>
    %325 = arith.subf %321, %324 : vector<2x16x16xf32>
    %326 = math.exp %325 : vector<2x16x16xf32>
    %cst_126 = arith.constant dense<0.000000e+00> : vector<2x16xf32>
    %327 = vector.multi_reduction <add>, %326, %cst_126 [2] : vector<2x16x16xf32> to vector<2x16xf32>
    %328 = vector.shape_cast %327 : vector<2x16xf32> to vector<2x16x1xf32>
    %329 = tpu.reciprocal %328 : vector<2x16x1xf32> -> vector<2x16x1xf32>
    %330 = vector.broadcast %329 : vector<2x16x1xf32> to vector<2x16x16xf32>
    %331 = arith.mulf %326, %330 : vector<2x16x16xf32>
    "tpu.trace_start"() <{level = 10 : i32, message = "bqk,bkd->bqd"}> : () -> ()
    %cst_127 = arith.constant dense<0.000000e+00> : vector<2x16x8xf32>
    %332 = tpu.matmul %331, %320, %cst_127 {dimension_numbers = #tpu.dot_dimension_numbers<[2], [1], [1], [2], [0, 0, 0, 1, 1, 2], [0], [0]>} : vector<2x16x16xf32>, vector<2x16x8xf32>, vector<2x16x8xf32> -> vector<2x16x8xf32>
    "tpu.trace_stop"() : () -> ()
    %333 = vector.shape_cast %332 : vector<2x16x8xf32> to vector<32x8xf32>
    %334 = vector.extract_strided_slice %209 {offsets = [24, 0], sizes = [8, 32], strides = [1, 1]} : vector<32x32xf32> to vector<8x32xf32>
    %cst_128 = arith.constant dense<0.000000e+00> : vector<32x32xf32>
    %335 = tpu.matmul %333, %334, %cst_128 {dimension_numbers = #tpu.dot_dimension_numbers<[1], [0], [0], [1], [0, 0, 1, 1], [], []>} : vector<32x8xf32>, vector<8x32xf32>, vector<32x32xf32> -> vector<32x32xf32>
    %336 = arith.addf %312, %335 : vector<32x32xf32>
    %c1_129 = arith.constant 1 : index
    %c0_130 = arith.constant 0 : index
    %c0_131 = arith.constant 0 : index
    %337 = vector.load %arg5[%c1_129, %c0_130, %c0_131] : memref<2x1x32xf32, #tpu.memory_space<vmem>>, vector<1x1x32xf32>
    %338 = vector.shape_cast %337 : vector<1x1x32xf32> to vector<1x32xf32>
    %339 = vector.broadcast %338 : vector<1x32xf32> to vector<32x32xf32>
    %340 = arith.addf %336, %339 : vector<32x32xf32>
    %341 = vector.shape_cast %340 : vector<32x32xf32> to vector<2x16x32xf32>
    %342 = arith.addf %341, %201 : vector<2x16x32xf32>
    %cst_132 = arith.constant dense<0.000000e+00> : vector<2x16xf32>
    %343 = vector.multi_reduction <add>, %342, %cst_132 [2] : vector<2x16x32xf32> to vector<2x16xf32>
    %344 = vector.shape_cast %343 : vector<2x16xf32> to vector<2x16x1xf32>
    %cst_133 = arith.constant 3.200000e+01 : f32
    %345 = vector.broadcast %cst_133 : f32 to vector<2x16x1xf32>
    %346 = arith.divf %344, %345 : vector<2x16x1xf32>
    %347 = vector.broadcast %346 : vector<2x16x1xf32> to vector<2x16x32xf32>
    %348 = arith.subf %342, %347 : vector<2x16x32xf32>
    %349 = arith.mulf %348, %348 : vector<2x16x32xf32>
    %cst_134 = arith.constant dense<0.000000e+00> : vector<2x16xf32>
    %350 = vector.multi_reduction <add>, %349, %cst_134 [2] : vector<2x16x32xf32> to vector<2x16xf32>
    %351 = vector.shape_cast %350 : vector<2x16xf32> to vector<2x16x1xf32>
    %cst_135 = arith.constant 3.200000e+01 : f32
    %352 = vector.broadcast %cst_135 : f32 to vector<2x16x1xf32>
    %353 = arith.divf %351, %352 : vector<2x16x1xf32>
    %354 = vector.broadcast %346 : vector<2x16x1xf32> to vector<2x16x32xf32>
    %355 = arith.subf %342, %354 : vector<2x16x32xf32>
    %cst_136 = arith.constant 9.99999974E-6 : f32
    %356 = vector.broadcast %cst_136 : f32 to vector<2x16x1xf32>
    %357 = arith.addf %353, %356 : vector<2x16x1xf32>
    %358 = math.rsqrt %357 : vector<2x16x1xf32>
    %359 = vector.broadcast %358 : vector<2x16x1xf32> to vector<2x16x32xf32>
    %360 = arith.mulf %355, %359 : vector<2x16x32xf32>
    %361 = vector.shape_cast %203 : vector<1x32xf32> to vector<1x1x32xf32>
    %362 = vector.broadcast %361 : vector<1x1x32xf32> to vector<2x16x32xf32>
    %363 = arith.mulf %360, %362 : vector<2x16x32xf32>
    %364 = vector.shape_cast %205 : vector<1x32xf32> to vector<1x1x32xf32>
    %365 = vector.broadcast %364 : vector<1x1x32xf32> to vector<2x16x32xf32>
    %366 = arith.addf %363, %365 : vector<2x16x32xf32>
    %367 = vector.shape_cast %366 : vector<2x16x32xf32> to vector<32x32xf32>
    %c1_137 = arith.constant 1 : index
    %c0_138 = arith.constant 0 : index
    %c0_139 = arith.constant 0 : index
    %368 = vector.load %arg6[%c1_137, %c0_138, %c0_139] : memref<2x32x64xf32, #tpu.memory_space<vmem>>, vector<1x32x64xf32>
    %369 = vector.shape_cast %368 : vector<1x32x64xf32> to vector<32x64xf32>
    %cst_140 = arith.constant dense<0.000000e+00> : vector<32x64xf32>
    %370 = tpu.matmul %367, %369, %cst_140 {dimension_numbers = #tpu.dot_dimension_numbers<[1], [0], [0], [1], [0, 0, 1, 1], [], []>} : vector<32x32xf32>, vector<32x64xf32>, vector<32x64xf32> -> vector<32x64xf32>
    %c1_141 = arith.constant 1 : index
    %c0_142 = arith.constant 0 : index
    %c0_143 = arith.constant 0 : index
    %371 = vector.load %arg7[%c1_141, %c0_142, %c0_143] : memref<2x1x64xf32, #tpu.memory_space<vmem>>, vector<1x1x64xf32>
    %372 = vector.shape_cast %371 : vector<1x1x64xf32> to vector<1x64xf32>
    %373 = vector.broadcast %372 : vector<1x64xf32> to vector<32x64xf32>
    %374 = arith.addf %370, %373 : vector<32x64xf32>
    %cst_144 = arith.constant 0.000000e+00 : f32
    %375 = vector.broadcast %cst_144 : f32 to vector<32x64xf32>
    %376 = arith.maximumf %374, %375 : vector<32x64xf32>
    %c1_145 = arith.constant 1 : index
    %c0_146 = arith.constant 0 : index
    %c0_147 = arith.constant 0 : index
    %377 = vector.load %arg8[%c1_145, %c0_146, %c0_147] : memref<2x64x32xf32, #tpu.memory_space<vmem>>, vector<1x64x32xf32>
    %378 = vector.shape_cast %377 : vector<1x64x32xf32> to vector<64x32xf32>
    %cst_148 = arith.constant dense<0.000000e+00> : vector<32x32xf32>
    %379 = tpu.matmul %376, %378, %cst_148 {dimension_numbers = #tpu.dot_dimension_numbers<[1], [0], [0], [1], [0, 0, 1, 1], [], []>} : vector<32x64xf32>, vector<64x32xf32>, vector<32x32xf32> -> vector<32x32xf32>
    %c1_149 = arith.constant 1 : index
    %c0_150 = arith.constant 0 : index
    %c0_151 = arith.constant 0 : index
    %380 = vector.load %arg9[%c1_149, %c0_150, %c0_151] : memref<2x1x32xf32, #tpu.memory_space<vmem>>, vector<1x1x32xf32>
    %381 = vector.shape_cast %380 : vector<1x1x32xf32> to vector<1x32xf32>
    %382 = vector.broadcast %381 : vector<1x32xf32> to vector<32x32xf32>
    %383 = arith.addf %379, %382 : vector<32x32xf32>
    %384 = vector.shape_cast %383 : vector<32x32xf32> to vector<2x16x32xf32>
    %385 = arith.addf %384, %342 : vector<2x16x32xf32>
    %c0_152 = arith.constant 0 : index
    %c0_153 = arith.constant 0 : index
    %386 = vector.load %arg12[%c0_152, %c0_153] : memref<1x32xf32, #tpu.memory_space<vmem>>, vector<1x32xf32>
    %c0_154 = arith.constant 0 : index
    %c0_155 = arith.constant 0 : index
    %387 = vector.load %arg13[%c0_154, %c0_155] : memref<1x32xf32, #tpu.memory_space<vmem>>, vector<1x32xf32>
    %cst_156 = arith.constant dense<0.000000e+00> : vector<2x16xf32>
    %388 = vector.multi_reduction <add>, %385, %cst_156 [2] : vector<2x16x32xf32> to vector<2x16xf32>
    %389 = vector.shape_cast %388 : vector<2x16xf32> to vector<2x16x1xf32>
    %cst_157 = arith.constant 3.200000e+01 : f32
    %390 = vector.broadcast %cst_157 : f32 to vector<2x16x1xf32>
    %391 = arith.divf %389, %390 : vector<2x16x1xf32>
    %392 = vector.broadcast %391 : vector<2x16x1xf32> to vector<2x16x32xf32>
    %393 = arith.subf %385, %392 : vector<2x16x32xf32>
    %394 = arith.mulf %393, %393 : vector<2x16x32xf32>
    %cst_158 = arith.constant dense<0.000000e+00> : vector<2x16xf32>
    %395 = vector.multi_reduction <add>, %394, %cst_158 [2] : vector<2x16x32xf32> to vector<2x16xf32>
    %396 = vector.shape_cast %395 : vector<2x16xf32> to vector<2x16x1xf32>
    %cst_159 = arith.constant 3.200000e+01 : f32
    %397 = vector.broadcast %cst_159 : f32 to vector<2x16x1xf32>
    %398 = arith.divf %396, %397 : vector<2x16x1xf32>
    %399 = vector.broadcast %391 : vector<2x16x1xf32> to vector<2x16x32xf32>
    %400 = arith.subf %385, %399 : vector<2x16x32xf32>
    %cst_160 = arith.constant 9.99999974E-6 : f32
    %401 = vector.broadcast %cst_160 : f32 to vector<2x16x1xf32>
    %402 = arith.addf %398, %401 : vector<2x16x1xf32>
    %403 = math.rsqrt %402 : vector<2x16x1xf32>
    %404 = vector.broadcast %403 : vector<2x16x1xf32> to vector<2x16x32xf32>
    %405 = arith.mulf %400, %404 : vector<2x16x32xf32>
    %406 = vector.shape_cast %386 : vector<1x32xf32> to vector<1x1x32xf32>
    %407 = vector.broadcast %406 : vector<1x1x32xf32> to vector<2x16x32xf32>
    %408 = arith.mulf %405, %407 : vector<2x16x32xf32>
    %409 = vector.shape_cast %387 : vector<1x32xf32> to vector<1x1x32xf32>
    %410 = vector.broadcast %409 : vector<1x1x32xf32> to vector<2x16x32xf32>
    %411 = arith.addf %408, %410 : vector<2x16x32xf32>
    %412 = vector.extract_strided_slice %411 {offsets = [0, 0, 0], sizes = [1, 16, 32], strides = [1, 1, 1]} : vector<2x16x32xf32> to vector<1x16x32xf32>
    %413 = vector.shape_cast %412 : vector<1x16x32xf32> to vector<16x32xf32>
    %414 = tpu.transpose %413, [1, 0] : vector<16x32xf32> -> vector<32x16xf32>
    %c0_161 = arith.constant 0 : index
    %c0_162 = arith.constant 0 : index
    %c0_163 = arith.constant 0 : index
    %415 = vector.load %arg14[%c0_161, %c0_162, %c0_163] : memref<2x32x16xf32, #tpu.memory_space<vmem>>, vector<1x32x16xf32>
    %416 = vector.shape_cast %415 : vector<1x32x16xf32> to vector<32x16xf32>
    %417 = vector.shape_cast %414 : vector<32x16xf32> to vector<1x32x16xf32>
    tpu.vector_store %arg14[%c0_161, %c0_162, %c0_163], %417 {strides = array<i32>} : memref<2x32x16xf32, #tpu.memory_space<vmem>>, vector<1x32x16xf32>,
    %418 = vector.extract_strided_slice %411 {offsets = [1, 0, 0], sizes = [1, 16, 32], strides = [1, 1, 1]} : vector<2x16x32xf32> to vector<1x16x32xf32>
    %419 = vector.shape_cast %418 : vector<1x16x32xf32> to vector<16x32xf32>
    %420 = tpu.transpose %419, [1, 0] : vector<16x32xf32> -> vector<32x16xf32>
    %c1_164 = arith.constant 1 : index
    %c0_165 = arith.constant 0 : index
    %c0_166 = arith.constant 0 : index
    %421 = vector.load %arg14[%c1_164, %c0_165, %c0_166] : memref<2x32x16xf32, #tpu.memory_space<vmem>>, vector<1x32x16xf32>
    %422 = vector.shape_cast %421 : vector<1x32x16xf32> to vector<32x16xf32>
    %423 = vector.shape_cast %420 : vector<32x16xf32> to vector<1x32x16xf32>
    tpu.vector_store %arg14[%c1_164, %c0_165, %c0_166], %423 {strides = array<i32>} : memref<2x32x16xf32, #tpu.memory_space<vmem>>, vector<1x32x16xf32>,
    return
  }
}

</mosaic_0001>

<llo_original>
// kernel: tpu_custom_call.1
$region0: #{tpu_custom_call.1}
  #allocation0 [shape = 'u32[]', space=smem, size = 0x4, offset = 0x4, fixed_abs, tag = 'smem constant byte address 0x4 - core index']
  #allocation1 [shape = 'u32[144,128]{1,0:T(1,128)}', space=vmem, size = 0x12000, scoped, tag = 'internal scratch']
  #allocation2 [shape = 'f32[2,16,32]{2,1,0:T(8,128)}', space=vmem, size = 0x4000, scoped, tag = 'scratch operand']
  %s0 = inlined_call_operand.vmem [shape: f32[2,32,16], index: 0, kind: input, shape index: {}]
  %s1 = inlined_call_operand.vmem [shape: f32[16,32], index: 1, kind: input, shape index: {}]
  %s2 = inlined_call_operand.vmem [shape: f32[2,32,96], index: 2, kind: input, shape index: {}]
  %s3 = inlined_call_operand.vmem [shape: f32[2,1,96], index: 3, kind: input, shape index: {}]
  %s4 = inlined_call_operand.vmem [shape: f32[2,32,32], index: 4, kind: input, shape index: {}]
  %s5 = inlined_call_operand.vmem [shape: f32[2,1,32], index: 5, kind: input, shape index: {}]
  %s6 = inlined_call_operand.vmem [shape: f32[2,32,64], index: 6, kind: input, shape index: {}]
  %s7 = inlined_call_operand.vmem [shape: f32[2,1,64], index: 7, kind: input, shape index: {}]
  %s8 = inlined_call_operand.vmem [shape: f32[2,64,32], index: 8, kind: input, shape index: {}]
  %s9 = inlined_call_operand.vmem [shape: f32[2,1,32], index: 9, kind: input, shape index: {}]
  %s10 = inlined_call_operand.vmem [shape: f32[2,1,32], index: 10, kind: input, shape index: {}]
  %s11 = inlined_call_operand.vmem [shape: f32[2,1,32], index: 11, kind: input, shape index: {}]
  %s12 = inlined_call_operand.vmem [shape: f32[1,32], index: 12, kind: input, shape index: {}]
  %s13 = inlined_call_operand.vmem [shape: f32[1,32], index: 13, kind: input, shape index: {}]
  %s14 = inlined_call_operand.vmem [shape: f32[2,32,16], index: 14, kind: output, shape index: {}]
  %s15 = sld [smem:[#allocation0]]
  $region66: #{tpu_custom_call.1} parent=0
    _
  %s17 = ssub.s32 1, %s15
  %s18 = scalar_select 0, %s17, %s15
  // Predicated region
  $region2: #{tpu_custom_call.1} parent=0 // pred_check
    _
  $region3: #{tpu_custom_call.1} parent=0 // pred_check_branch
    %20 = sbr.rel (0) target = $region5
  $region4: #{tpu_custom_call.1} parent=0 // pred_region
    _
  $region5: #{tpu_custom_call.1} parent=0 // pred_fallthru
    _
  // Predicated region
  $region6: #{tpu_custom_call.1} parent=0 // pred_check
    _
  $region7: #{tpu_custom_call.1} parent=0 // pred_check_branch
    %22 = sbr.rel (0) target = $region9
  $region8: #{tpu_custom_call.1} parent=0 // pred_region
    _
  $region9: #{tpu_custom_call.1} parent=0 // pred_fallthru
    _
  // Predicated region
  $region10: #{tpu_custom_call.1} parent=0 // pred_check
    _
  $region11: #{tpu_custom_call.1} parent=0 // pred_check_branch
    %24 = sbr.rel (0) target = $region13
  $region12: #{tpu_custom_call.1} parent=0 // pred_region
    _
  $region13: #{tpu_custom_call.1} parent=0 // pred_fallthru
    _
  // Predicated region
  $region14: #{tpu_custom_call.1} parent=0 // pred_check
    _
  $region15: #{tpu_custom_call.1} parent=0 // pred_check_branch
    %26 = sbr.rel (0) target = $region17
  $region16: #{tpu_custom_call.1} parent=0 // pred_region
    _
  $region17: #{tpu_custom_call.1} parent=0 // pred_fallthru
    _
  // Predicated region
  $region18: #{tpu_custom_call.1} parent=0 // pred_check
    _
  $region19: #{tpu_custom_call.1} parent=0 // pred_check_branch
    %28 = sbr.rel (0) target = $region21
  $region20: #{tpu_custom_call.1} parent=0 // pred_region
    _
  $region21: #{tpu_custom_call.1} parent=0 // pred_fallthru
    _
  // Predicated region
  $region22: #{tpu_custom_call.1} parent=0 // pred_check
    _
  $region23: #{tpu_custom_call.1} parent=0 // pred_check_branch
    %30 = sbr.rel (0) target = $region25
  $region24: #{tpu_custom_call.1} parent=0 // pred_region
    _
  $region25: #{tpu_custom_call.1} parent=0 // pred_fallthru
    _
  // Predicated region
  $region26: #{tpu_custom_call.1} parent=0 // pred_check
    _
  $region27: #{tpu_custom_call.1} parent=0 // pred_check_branch
    %32 = sbr.rel (0) target = $region29
  $region28: #{tpu_custom_call.1} parent=0 // pred_region
    _
  $region29: #{tpu_custom_call.1} parent=0 // pred_fallthru
    _
  // Predicated region
  $region30: #{tpu_custom_call.1} parent=0 // pred_check
    _
  $region31: #{tpu_custom_call.1} parent=0 // pred_check_branch
    %34 = sbr.rel (0) target = $region33
  $region32: #{tpu_custom_call.1} parent=0 // pred_region
    _
  $region33: #{tpu_custom_call.1} parent=0 // pred_fallthru
    _
  // Predicated region
  $region34: #{tpu_custom_call.1} parent=0 // pred_check
    _
  $region35: #{tpu_custom_call.1} parent=0 // pred_check_branch
    %36 = sbr.rel (0) target = $region37
  $region36: #{tpu_custom_call.1} parent=0 // pred_region
    _
  $region37: #{tpu_custom_call.1} parent=0 // pred_fallthru
    _
  // Predicated region
  $region38: #{tpu_custom_call.1} parent=0 // pred_check
    _
  $region39: #{tpu_custom_call.1} parent=0 // pred_check_branch
    %38 = sbr.rel (0) target = $region41
  $region40: #{tpu_custom_call.1} parent=0 // pred_region
    _
  $region41: #{tpu_custom_call.1} parent=0 // pred_fallthru
    _
  // Predicated region
  $region42: #{tpu_custom_call.1} parent=0 // pred_check
    _
  $region43: #{tpu_custom_call.1} parent=0 // pred_check_branch
    %40 = sbr.rel (0) target = $region45
  $region44: #{tpu_custom_call.1} parent=0 // pred_region
    _
  $region45: #{tpu_custom_call.1} parent=0 // pred_fallthru
    _
  // Predicated region
  $region46: #{tpu_custom_call.1} parent=0 // pred_check
    _
  $region47: #{tpu_custom_call.1} parent=0 // pred_check_branch
    %42 = sbr.rel (0) target = $region49
  $region48: #{tpu_custom_call.1} parent=0 // pred_region
    _
  $region49: #{tpu_custom_call.1} parent=0 // pred_fallthru
    _
  // Predicated region
  $region50: #{tpu_custom_call.1} parent=0 // pred_check
    _
  $region51: #{tpu_custom_call.1} parent=0 // pred_check_branch
    %44 = sbr.rel (0) target = $region53
  $region52: #{tpu_custom_call.1} parent=0 // pred_region
    _
  $region53: #{tpu_custom_call.1} parent=0 // pred_fallthru
    _
  // Predicated region
  $region54: #{tpu_custom_call.1} parent=0 // pred_check
    _
  $region55: #{tpu_custom_call.1} parent=0 // pred_check_branch
    %46 = sbr.rel (0) target = $region57
  $region56: #{tpu_custom_call.1} parent=0 // pred_region
    _
  $region57: #{tpu_custom_call.1} parent=0 // pred_fallthru
    _
  %v47 = vld [vmem:[%s0] sm:$0xff]
  %v48 = vld [vmem:[%s0 + $0x8] sm:$0xff]
  %v49 = vld [vmem:[%s0 + $0x10] sm:$0xff]
  %v50 = vld [vmem:[%s0 + $0x18] sm:$0xff]
  %51 = vxpose.xlu0.b32.start [1/16] %v47, 128
  %52 = vxpose.xlu0.b32.cont [2/16] %v48, 128
  %53 = vxpose.xlu0.b32.cont [3/16] %v49, 128
  %54 = vxpose.xlu0.b32.cont [4/16] %v50, 128
  %55 = vxpose.xlu0.b32.cont [5/16] 0.0, 128
  %56 = vxpose.xlu0.b32.cont [6/16] 0.0, 128
  %57 = vxpose.xlu0.b32.cont [7/16] 0.0, 128
  %58 = vxpose.xlu0.b32.cont [8/16] 0.0, 128
  %59 = vxpose.xlu0.b32.cont [9/16] 0.0, 128
  %60 = vxpose.xlu0.b32.cont [10/16] 0.0, 128
  %61 = vxpose.xlu0.b32.cont [11/16] 0.0, 128
  %62 = vxpose.xlu0.b32.cont [12/16] 0.0, 128
  %63 = vxpose.xlu0.b32.cont [13/16] 0.0, 128
  %64 = vxpose.xlu0.b32.cont [14/16] 0.0, 128
  %65 = vxpose.xlu0.b32.cont [15/16] 0.0, 128
  %66 = vxpose.xlu0.b32.end [16/16] 0.0, 128
  %v67 = vpop.trf.xlu0
  %v68 = vpop.trf.xlu0
  %v69 = vpop.trf.xlu0
  %v70 = vpop.trf.xlu0
  %v71 = vpop.trf.xlu0
  %v72 = vpop.trf.xlu0
  %v73 = vpop.trf.xlu0
  %v74 = vpop.trf.xlu0
  %v75 = vpop.trf.xlu0
  %v76 = vpop.trf.xlu0
  %v77 = vpop.trf.xlu0
  %v78 = vpop.trf.xlu0
  %v79 = vpop.trf.xlu0
  %v80 = vpop.trf.xlu0
  %v81 = vpop.trf.xlu0
  %v82 = vpop.trf.xlu0
  %vm83 = vcmask 261120
  %84 = vst.msk [vmem:[#allocation2] sm:$0xff] %vm83, %v67
  %85 = vst.msk [vmem:[#allocation2 + $0x8] sm:$0xff] %vm83, %v68
  %s86 = scalar_lea.vmem %s0, 32
  %v87 = vld [vmem:[%s86] sm:$0xff]
  %v88 = vld [vmem:[%s86 + $0x8] sm:$0xff]
  %v89 = vld [vmem:[%s86 + $0x10] sm:$0xff]
  %v90 = vld [vmem:[%s86 + $0x18] sm:$0xff]
  %91 = vxpose.xlu0.b32.start [1/16] %v87, 128
  %92 = vxpose.xlu0.b32.cont [2/16] %v88, 128
  %93 = vxpose.xlu0.b32.cont [3/16] %v89, 128
  %94 = vxpose.xlu0.b32.cont [4/16] %v90, 128
  %95 = vxpose.xlu0.b32.cont [5/16] 0.0, 128
  %96 = vxpose.xlu0.b32.cont [6/16] 0.0, 128
  %97 = vxpose.xlu0.b32.cont [7/16] 0.0, 128
  %98 = vxpose.xlu0.b32.cont [8/16] 0.0, 128
  %99 = vxpose.xlu0.b32.cont [9/16] 0.0, 128
  %100 = vxpose.xlu0.b32.cont [10/16] 0.0, 128
  %101 = vxpose.xlu0.b32.cont [11/16] 0.0, 128
  %102 = vxpose.xlu0.b32.cont [12/16] 0.0, 128
  %103 = vxpose.xlu0.b32.cont [13/16] 0.0, 128
  %104 = vxpose.xlu0.b32.cont [14/16] 0.0, 128
  %105 = vxpose.xlu0.b32.cont [15/16] 0.0, 128
  %106 = vxpose.xlu0.b32.end [16/16] 0.0, 128
  %v107 = vpop.trf.xlu0
  %v108 = vpop.trf.xlu0
  %v109 = vpop.trf.xlu0
  %v110 = vpop.trf.xlu0
  %v111 = vpop.trf.xlu0
  %v112 = vpop.trf.xlu0
  %v113 = vpop.trf.xlu0
  %v114 = vpop.trf.xlu0
  %v115 = vpop.trf.xlu0
  %v116 = vpop.trf.xlu0
  %v117 = vpop.trf.xlu0
  %v118 = vpop.trf.xlu0
  %v119 = vpop.trf.xlu0
  %v120 = vpop.trf.xlu0
  %v121 = vpop.trf.xlu0
  %v122 = vpop.trf.xlu0
  %s123 = scalar_lea.vmem [#allocation2], 16
  %124 = vst.msk [vmem:[%s123] sm:$0xff] %vm83, %v107
  %125 = vst.msk [vmem:[%s123 + $0x8] sm:$0xff] %vm83, %v108
  %v126 = vld [vmem:[#allocation2] sm:$0xff]
  %v127 = vld [vmem:[#allocation2 + $0x8] sm:$0xff]
  %v128 = vld [vmem:[#allocation2 + $0x10] sm:$0xff]
  %v129 = vld [vmem:[#allocation2 + $0x18] sm:$0xff]
  %v130 = vld [vmem:[%s1] sm:$0xff]
  %v131 = vld [vmem:[%s1 + $0x8] sm:$0xff]
  %v132 = vadd.f32 %v126, %v130
  %v133 = vadd.f32 %v127, %v131
  %v134 = vadd.f32 %v128, %v130
  %v135 = vadd.f32 %v129, %v131
  %v136 = vadd.f32 %v126, %v132
  %v137 = vadd.f32 %v127, %v133
  %v138 = vadd.f32 %v128, %v134
  %v139 = vadd.f32 %v129, %v135
  %v140 = vld [vmem:[%s10] sm:$0x1]
  %v141 = vld [vmem:[%s11] sm:$0x1]
  %v142 = vld [vmem:[%s2] sm:$0xff]
  %v143 = vld [vmem:[%s2 + $0x8] sm:$0xff]
  %v144 = vld [vmem:[%s2 + $0x10] sm:$0xff]
  %v145 = vld [vmem:[%s2 + $0x18] sm:$0xff]
  %v146 = vld [vmem:[%s4] sm:$0xff]
  %v147 = vld [vmem:[%s4 + $0x8] sm:$0xff]
  %v148 = vld [vmem:[%s4 + $0x10] sm:$0xff]
  %v149 = vld [vmem:[%s4 + $0x18] sm:$0xff]
  %v150 = vsel %vm83, %v136, 0.0
  %151 = vadd.xlane.f32.xlu0 %v150
  %v152 = vpop.xlane.xlu0 %151
  %v153 = vsel %vm83, %v137, 0.0
  %154 = vadd.xlane.f32.xlu0 %v153
  %v155 = vpop.xlane.xlu0 %154
  %v156 = vsel %vm83, %v138, 0.0
  %157 = vadd.xlane.f32.xlu0 %v156
  %v158 = vpop.xlane.xlu0 %157
  %v159 = vsel %vm83, %v139, 0.0
  %160 = vadd.xlane.f32.xlu0 %v159
  %v161 = vpop.xlane.xlu0 %160
  %v162 = vrcp.pop 32.0
  %v163 = vmul.f32 %v152, %v162
  %v164 = vmul.f32 %v155, %v162
  %v165 = vmul.f32 %v158, %v162
  %v166 = vmul.f32 %v161, %v162
  %v167 = vsub.f32 %v136, %v163
  %v168 = vsub.f32 %v137, %v164
  %v169 = vsub.f32 %v138, %v165
  %v170 = vsub.f32 %v139, %v166
  %v171 = vmul.f32 %v167, %v167
  %v172 = vmul.f32 %v168, %v168
  %v173 = vmul.f32 %v169, %v169
  %v174 = vmul.f32 %v170, %v170
  %v175 = vsel %vm83, %v171, 0.0
  %176 = vadd.xlane.f32.xlu0 %v175
  %v177 = vpop.xlane.xlu0 %176
  %v178 = vsel %vm83, %v172, 0.0
  %179 = vadd.xlane.f32.xlu0 %v178
  %v180 = vpop.xlane.xlu0 %179
  %v181 = vsel %vm83, %v173, 0.0
  %182 = vadd.xlane.f32.xlu0 %v181
  %v183 = vpop.xlane.xlu0 %182
  %v184 = vsel %vm83, %v174, 0.0
  %185 = vadd.xlane.f32.xlu0 %v184
  %v186 = vpop.xlane.xlu0 %185
  %v187 = vmul.f32 %v177, %v162
  %v188 = vmul.f32 %v180, %v162
  %v189 = vmul.f32 %v183, %v162
  %v190 = vmul.f32 %v186, %v162
  %v191 = vadd.f32 %v187, 1e-05
  %v192 = vadd.f32 %v188, 1e-05
  %v193 = vadd.f32 %v189, 1e-05
  %v194 = vadd.f32 %v190, 1e-05
  %v195 = vrsqrt.pop %v191
  %v196 = vrsqrt.pop %v192
  %v197 = vrsqrt.pop %v193
  %v198 = vrsqrt.pop %v194
  %v199 = vmul.f32 %v167, %v195
  %v200 = vmul.f32 %v168, %v196
  %v201 = vmul.f32 %v169, %v197
  %v202 = vmul.f32 %v170, %v198
  %v204 = vlaneseq
  %v205 = vshrl.u32 %v204, 7
  %v206 = vsub.s32 0, %v205
  %v207 = vrot.slane %v140, %v206
  %v209 = vmul.f32 %v199, %v207
  %v210 = vmul.f32 %v200, %v207
  %v211 = vmul.f32 %v201, %v207
  %v212 = vmul.f32 %v202, %v207
  %v214 = vlaneseq
  %v215 = vshrl.u32 %v214, 7
  %v216 = vsub.s32 0, %v215
  %v217 = vrot.slane %v141, %v216
  %v219 = vadd.f32 %v209, %v217
  %v220 = vadd.f32 %v210, %v217
  %v221 = vadd.f32 %v211, %v217
  %v222 = vadd.f32 %v212, %v217
  %v223 = vld [vmem:[%s3] sm:$0x1]
  %v225 = vlaneseq
  %v226 = vshrl.u32 %v225, 7
  %v227 = vsub.s32 0, %v226
  %v228 = vrot.slane %v223, %v227
  %v231 = vsel %vm83, %v219, 0
  %v234 = vsel %vm83, %v220, 0
  %v237 = vsel %vm83, %v221, 0
  %v240 = vsel %vm83, %v222, 0
  %242 = vmatprep.subr.mxu0 0.0
  %243 = vmatpush1.msra.mxu0 0.0
  %244 = vmatprep.subr.mxu0 0.0
  %245 = vmatpush1.msra.mxu0 0.0
  %246 = vmatprep.subr.mxu0 0.0
  %247 = vmatpush1.msra.mxu0 0.0
  %248 = vmatprep.subr.mxu0 0.0
  %249 = vmatpush1.msra.mxu0 0.0
  %250 = vmatprep.subr.mxu0 0.0
  %251 = vmatpush1.msra.mxu0 0.0
  %252 = vmatprep.subr.mxu0 0.0
  %253 = vmatpush1.msra.mxu0 0.0
  %254 = vmatprep.subr.mxu0 0.0
  %255 = vmatpush1.msra.mxu0 0.0
  %256 = vmatprep.subr.mxu0 0.0
  %257 = vmatpush1.msra.mxu0 0.0
  %258 = vmatprep.subr.mxu0 0.0
  %259 = vmatpush1.msra.mxu0 0.0
  %260 = vmatprep.subr.mxu0 0.0
  %261 = vmatpush1.msra.mxu0 0.0
  %262 = vmatprep.subr.mxu0 0.0
  %263 = vmatpush1.msra.mxu0 0.0
  %264 = vmatprep.subr.mxu0 0.0
  %265 = vmatpush1.msra.mxu0 0.0
  %266 = vmatprep.subr.mxu0 0.0
  %267 = vmatpush1.msra.mxu0 %v145
  %268 = vmatprep.subr.mxu0 0.0
  %269 = vmatpush1.msra.mxu0 %v144
  %270 = vmatprep.subr.mxu0 0.0
  %271 = vmatpush1.msra.mxu0 %v143
  %272 = vmatprep.subr.mxu0 0.0
  %273 = vmatpush1.msra.mxu0 %v142
  %274 = vmatprep.subr.mxu0 0.0
  %275 = vmatpush2.msra.mxu0 0.0
  %276 = vmatprep.subr.mxu0 0.0
  %277 = vmatpush2.msra.mxu0 0.0
  %278 = vmatprep.subr.mxu0 0.0
  %279 = vmatpush2.msra.mxu0 0.0
  %280 = vmatprep.subr.mxu0 0.0
  %281 = vmatpush2.msra.mxu0 0.0
  %282 = vmatprep.subr.mxu0 0.0
  %283 = vmatpush2.msra.mxu0 0.0
  %284 = vmatprep.subr.mxu0 0.0
  %285 = vmatpush2.msra.mxu0 0.0
  %286 = vmatprep.subr.mxu0 0.0
  %287 = vmatpush2.msra.mxu0 0.0
  %288 = vmatprep.subr.mxu0 0.0
  %289 = vmatpush2.msra.mxu0 0.0
  %290 = vmatprep.subr.mxu0 0.0
  %291 = vmatpush2.msra.mxu0 0.0
  %292 = vmatprep.subr.mxu0 0.0
  %293 = vmatpush2.msra.mxu0 0.0
  %294 = vmatprep.subr.mxu0 0.0
  %295 = vmatpush2.msra.mxu0 0.0
  %296 = vmatprep.subr.mxu0 0.0
  %297 = vmatpush2.msra.mxu0 0.0
  %298 = vmatprep.subr.mxu0 0.0
  %299 = vmatpush2.msra.mxu0 0.0
  %300 = vmatprep.subr.mxu0 0.0
  %301 = vmatpush2.msra.mxu0 0.0
  %302 = vmatprep.subr.mxu0 0.0
  %303 = vmatpush2.msra.mxu0 0.0
  %304 = vmatprep.subr.mxu0 0.0
  %305 = vmatpush2.msra.mxu0 0.0
  %306 = vmatprep.mubr.f32.mxu0 0.0
  %307 = vmatmul.mubr.f32.gmra.mxu0 %v231
  %v308 = vpop.f32.mrf.mxu0
  %v309 = vadd.f32 %v228, %v308
  %v310 = vpop.f32.mrf.mxu0
  %311 = vmatprep.mubr.f32.mxu0 0.0
  %312 = vmatmul.mubr.f32.gmra.mxu0 %v234
  %v313 = vpop.f32.mrf.mxu0
  %v314 = vadd.f32 %v228, %v313
  %v315 = vpop.f32.mrf.mxu0
  %316 = vmatprep.mubr.f32.mxu0 0.0
  %317 = vmatmul.mubr.f32.gmra.mxu0 %v237
  %v318 = vpop.f32.mrf.mxu0
  %v319 = vadd.f32 %v228, %v318
  %v320 = vpop.f32.mrf.mxu0
  %321 = vmatprep.mubr.f32.mxu0 0.0
  %322 = vmatmul.mubr.f32.gmra.mxu0 %v240
  %v323 = vpop.f32.mrf.mxu0
  %v324 = vadd.f32 %v228, %v323
  %v325 = vpop.f32.mrf.mxu0
  %326 = vdwg.mxu0
  %v327 = vmul.f32 %v309, 0.35355338
  %v328 = vmul.f32 %v314, 0.35355338
  %v329 = vmul.f32 %v319, 0.35355338
  %v330 = vmul.f32 %v324, 0.35355338
  %333 = vrot.lane.b32.xlu0 %v309, 96
  %v334 = vpop.permute.xlu0 %333
  %335 = vrot.lane.b32.xlu0 %v314, 96
  %v336 = vpop.permute.xlu0 %335
  %vm337 = vcmask 64512
  %v339 = vsel %vm337, %v327, 0
  %v342 = vsel %vm337, %v328, 0
  %v344 = vsel %vm337, %v334, 0
  %v346 = vsel %vm337, %v336, 0
  %348 = vmatprep.subr.mxu0 0.0
  %349 = vmatpush1.xpose.msra.mxu0 0.0
  %350 = vmatprep.subr.mxu0 0.0
  %351 = vmatpush1.xpose.msra.mxu0 0.0
  %352 = vmatprep.subr.mxu0 0.0
  %353 = vmatpush1.xpose.msra.mxu0 0.0
  %354 = vmatprep.subr.mxu0 0.0
  %355 = vmatpush1.xpose.msra.mxu0 0.0
  %356 = vmatprep.subr.mxu0 0.0
  %357 = vmatpush1.xpose.msra.mxu0 0.0
  %358 = vmatprep.subr.mxu0 0.0
  %359 = vmatpush1.xpose.msra.mxu0 0.0
  %360 = vmatprep.subr.mxu0 0.0
  %361 = vmatpush1.xpose.msra.mxu0 0.0
  %362 = vmatprep.subr.mxu0 0.0
  %363 = vmatpush1.xpose.msra.mxu0 0.0
  %364 = vmatprep.subr.mxu0 0.0
  %365 = vmatpush1.xpose.msra.mxu0 0.0
  %366 = vmatprep.subr.mxu0 0.0
  %367 = vmatpush1.xpose.msra.mxu0 0.0
  %368 = vmatprep.subr.mxu0 0.0
  %369 = vmatpush1.xpose.msra.mxu0 0.0
  %370 = vmatprep.subr.mxu0 0.0
  %371 = vmatpush1.xpose.msra.mxu0 0.0
  %372 = vmatprep.subr.mxu0 0.0
  %373 = vmatpush1.xpose.msra.mxu0 0.0
  %374 = vmatprep.subr.mxu0 0.0
  %375 = vmatpush1.xpose.msra.mxu0 0.0
  %376 = vmatprep.subr.mxu0 0.0
  %377 = vmatpush1.xpose.msra.mxu0 %v346
  %378 = vmatprep.subr.mxu0 0.0
  %379 = vmatpush1.xpose.msra.mxu0 %v344
  %380 = vmatprep.subr.mxu0 0.0
  %381 = vmatpush2.xpose.msra.mxu0 0.0
  %382 = vmatprep.subr.mxu0 0.0
  %383 = vmatpush2.xpose.msra.mxu0 0.0
  %384 = vmatprep.subr.mxu0 0.0
  %385 = vmatpush2.xpose.msra.mxu0 0.0
  %386 = vmatprep.subr.mxu0 0.0
  %387 = vmatpush2.xpose.msra.mxu0 0.0
  %388 = vmatprep.subr.mxu0 0.0
  %389 = vmatpush2.xpose.msra.mxu0 0.0
  %390 = vmatprep.subr.mxu0 0.0
  %391 = vmatpush2.xpose.msra.mxu0 0.0
  %392 = vmatprep.subr.mxu0 0.0
  %393 = vmatpush2.xpose.msra.mxu0 0.0
  %394 = vmatprep.subr.mxu0 0.0
  %395 = vmatpush2.xpose.msra.mxu0 0.0
  %396 = vmatprep.subr.mxu0 0.0
  %397 = vmatpush2.xpose.msra.mxu0 0.0
  %398 = vmatprep.subr.mxu0 0.0
  %399 = vmatpush2.xpose.msra.mxu0 0.0
  %400 = vmatprep.subr.mxu0 0.0
  %401 = vmatpush2.xpose.msra.mxu0 0.0
  %402 = vmatprep.subr.mxu0 0.0
  %403 = vmatpush2.xpose.msra.mxu0 0.0
  %404 = vmatprep.subr.mxu0 0.0
  %405 = vmatpush2.xpose.msra.mxu0 0.0
  %406 = vmatprep.subr.mxu0 0.0
  %407 = vmatpush2.xpose.msra.mxu0 0.0
  %408 = vmatprep.subr.mxu0 0.0
  %409 = vmatpush2.xpose.msra.mxu0 0.0
  %410 = vmatprep.subr.mxu0 0.0
  %411 = vmatpush2.xpose.msra.mxu0 0.0
  %412 = vmatprep.mubr.f32.mxu0 0.0
  %413 = vmatmul.mubr.f32.gmra.mxu0 %v339
  %v414 = vpop.f32.mrf.mxu0
  %v415 = vadd.f32 0.0, %v414
  %v416 = vpop.f32.mrf.mxu0
  %417 = vmatprep.mubr.f32.mxu0 0.0
  %418 = vmatmul.mubr.f32.gmra.mxu0 %v342
  %v419 = vpop.f32.mrf.mxu0
  %v420 = vadd.f32 0.0, %v419
  %v421 = vpop.f32.mrf.mxu0
  %422 = vdwg.mxu0
  %425 = vrot.lane.b32.xlu0 %v319, 96
  %v426 = vpop.permute.xlu0 %425
  %427 = vrot.lane.b32.xlu0 %v324, 96
  %v428 = vpop.permute.xlu0 %427
  %v430 = vsel %vm337, %v329, 0
  %v433 = vsel %vm337, %v330, 0
  %v435 = vsel %vm337, %v426, 0
  %v437 = vsel %vm337, %v428, 0
  %439 = vmatprep.subr.mxu0 0.0
  %440 = vmatpush1.xpose.msra.mxu0 0.0
  %441 = vmatprep.subr.mxu0 0.0
  %442 = vmatpush1.xpose.msra.mxu0 0.0
  %443 = vmatprep.subr.mxu0 0.0
  %444 = vmatpush1.xpose.msra.mxu0 0.0
  %445 = vmatprep.subr.mxu0 0.0
  %446 = vmatpush1.xpose.msra.mxu0 0.0
  %447 = vmatprep.subr.mxu0 0.0
  %448 = vmatpush1.xpose.msra.mxu0 0.0
  %449 = vmatprep.subr.mxu0 0.0
  %450 = vmatpush1.xpose.msra.mxu0 0.0
  %451 = vmatprep.subr.mxu0 0.0
  %452 = vmatpush1.xpose.msra.mxu0 0.0
  %453 = vmatprep.subr.mxu0 0.0
  %454 = vmatpush1.xpose.msra.mxu0 0.0
  %455 = vmatprep.subr.mxu0 0.0
  %456 = vmatpush1.xpose.msra.mxu0 0.0
  %457 = vmatprep.subr.mxu0 0.0
  %458 = vmatpush1.xpose.msra.mxu0 0.0
  %459 = vmatprep.subr.mxu0 0.0
  %460 = vmatpush1.xpose.msra.mxu0 0.0
  %461 = vmatprep.subr.mxu0 0.0
  %462 = vmatpush1.xpose.msra.mxu0 0.0
  %463 = vmatprep.subr.mxu0 0.0
  %464 = vmatpush1.xpose.msra.mxu0 0.0
  %465 = vmatprep.subr.mxu0 0.0
  %466 = vmatpush1.xpose.msra.mxu0 0.0
  %467 = vmatprep.subr.mxu0 0.0
  %468 = vmatpush1.xpose.msra.mxu0 %v437
  %469 = vmatprep.subr.mxu0 0.0
  %470 = vmatpush1.xpose.msra.mxu0 %v435
  %471 = vmatprep.subr.mxu0 0.0
  %472 = vmatpush2.xpose.msra.mxu0 0.0
  %473 = vmatprep.subr.mxu0 0.0
  %474 = vmatpush2.xpose.msra.mxu0 0.0
  %475 = vmatprep.subr.mxu0 0.0
  %476 = vmatpush2.xpose.msra.mxu0 0.0
  %477 = vmatprep.subr.mxu0 0.0
  %478 = vmatpush2.xpose.msra.mxu0 0.0
  %479 = vmatprep.subr.mxu0 0.0
  %480 = vmatpush2.xpose.msra.mxu0 0.0
  %481 = vmatprep.subr.mxu0 0.0
  %482 = vmatpush2.xpose.msra.mxu0 0.0
  %483 = vmatprep.subr.mxu0 0.0
  %484 = vmatpush2.xpose.msra.mxu0 0.0
  %485 = vmatprep.subr.mxu0 0.0
  %486 = vmatpush2.xpose.msra.mxu0 0.0
  %487 = vmatprep.subr.mxu0 0.0
  %488 = vmatpush2.xpose.msra.mxu0 0.0
  %489 = vmatprep.subr.mxu0 0.0
  %490 = vmatpush2.xpose.msra.mxu0 0.0
  %491 = vmatprep.subr.mxu0 0.0
  %492 = vmatpush2.xpose.msra.mxu0 0.0
  %493 = vmatprep.subr.mxu0 0.0
  %494 = vmatpush2.xpose.msra.mxu0 0.0
  %495 = vmatprep.subr.mxu0 0.0
  %496 = vmatpush2.xpose.msra.mxu0 0.0
  %497 = vmatprep.subr.mxu0 0.0
  %498 = vmatpush2.xpose.msra.mxu0 0.0
  %499 = vmatprep.subr.mxu0 0.0
  %500 = vmatpush2.xpose.msra.mxu0 0.0
  %501 = vmatprep.subr.mxu0 0.0
  %502 = vmatpush2.xpose.msra.mxu0 0.0
  %503 = vmatprep.mubr.f32.mxu0 0.0
  %504 = vmatmul.mubr.f32.gmra.mxu0 %v430
  %v505 = vpop.f32.mrf.mxu0
  %v506 = vadd.f32 0.0, %v505
  %v507 = vpop.f32.mrf.mxu0
  %508 = vmatprep.mubr.f32.mxu0 0.0
  %509 = vmatmul.mubr.f32.gmra.mxu0 %v433
  %v510 = vpop.f32.mrf.mxu0
  %v511 = vadd.f32 0.0, %v510
  %v512 = vpop.f32.mrf.mxu0
  %513 = vdwg.mxu0
  %vm514 = vcmask 130048
  %v515 = vsel %vm514, %v415, -inf
  %516 = vmax.xlane.f32.xlu0 %v515
  %v517 = vpop.xlane.xlu0 %516
  %v518 = vsel %vm514, %v420, -inf
  %519 = vmax.xlane.f32.xlu0 %v518
  %v520 = vpop.xlane.xlu0 %519
  %v521 = vsel %vm514, %v506, -inf
  %522 = vmax.xlane.f32.xlu0 %v521
  %v523 = vpop.xlane.xlu0 %522
  %v524 = vsel %vm514, %v511, -inf
  %525 = vmax.xlane.f32.xlu0 %v524
  %v526 = vpop.xlane.xlu0 %525
  %v527 = vsub.f32 %v415, %v517
  %v528 = vsub.f32 %v420, %v520
  %v529 = vsub.f32 %v506, %v523
  %v530 = vsub.f32 %v511, %v526
  %v531 = vmul.f32 %v527, 1.442695
  %v532 = vpow.pop %v531
  %v533 = vmul.f32 %v528, 1.442695
  %v534 = vpow.pop %v533
  %v535 = vmul.f32 %v529, 1.442695
  %v536 = vpow.pop %v535
  %v537 = vmul.f32 %v530, 1.442695
  %v538 = vpow.pop %v537
  %v539 = vsel %vm514, %v532, 0.0
  %540 = vadd.xlane.f32.xlu0 %v539
  %v541 = vpop.xlane.xlu0 %540
  %v542 = vsel %vm514, %v534, 0.0
  %543 = vadd.xlane.f32.xlu0 %v542
  %v544 = vpop.xlane.xlu0 %543
  %v545 = vsel %vm514, %v536, 0.0
  %546 = vadd.xlane.f32.xlu0 %v545
  %v547 = vpop.xlane.xlu0 %546
  %v548 = vsel %vm514, %v538, 0.0
  %549 = vadd.xlane.f32.xlu0 %v548
  %v550 = vpop.xlane.xlu0 %549
  %v551 = vrcp.pop %v541
  %v552 = vrcp.pop %v544
  %v553 = vrcp.pop %v547
  %v554 = vrcp.pop %v550
  %v555 = vmul.f32 %v532, %v551
  %v556 = vmul.f32 %v534, %v552
  %v557 = vmul.f32 %v536, %v553
  %v558 = vmul.f32 %v538, %v554
  %559 = vrot.lane.b32.xlu0 %v309, 64
  %v560 = vpop.permute.xlu0 %559
  %561 = vrot.lane.b32.xlu0 %v314, 64
  %v562 = vpop.permute.xlu0 %561
  %v566 = vsel %vm514, %v555, 0
  %v569 = vsel %vm514, %v556, 0
  %571 = vmatprep.subr.mxu0 0.0
  %572 = vmatpush1.msra.mxu0 0.0
  %573 = vmatprep.subr.mxu0 0.0
  %574 = vmatpush1.msra.mxu0 0.0
  %575 = vmatprep.subr.mxu0 0.0
  %576 = vmatpush1.msra.mxu0 0.0
  %577 = vmatprep.subr.mxu0 0.0
  %578 = vmatpush1.msra.mxu0 0.0
  %579 = vmatprep.subr.mxu0 0.0
  %580 = vmatpush1.msra.mxu0 0.0
  %581 = vmatprep.subr.mxu0 0.0
  %582 = vmatpush1.msra.mxu0 0.0
  %583 = vmatprep.subr.mxu0 0.0
  %584 = vmatpush1.msra.mxu0 0.0
  %585 = vmatprep.subr.mxu0 0.0
  %586 = vmatpush1.msra.mxu0 0.0
  %587 = vmatprep.subr.mxu0 0.0
  %588 = vmatpush1.msra.mxu0 0.0
  %589 = vmatprep.subr.mxu0 0.0
  %590 = vmatpush1.msra.mxu0 0.0
  %591 = vmatprep.subr.mxu0 0.0
  %592 = vmatpush1.msra.mxu0 0.0
  %593 = vmatprep.subr.mxu0 0.0
  %594 = vmatpush1.msra.mxu0 0.0
  %595 = vmatprep.subr.mxu0 0.0
  %596 = vmatpush1.msra.mxu0 0.0
  %597 = vmatprep.subr.mxu0 0.0
  %598 = vmatpush1.msra.mxu0 0.0
  %599 = vmatprep.subr.mxu0 0.0
  %600 = vmatpush1.msra.mxu0 %v562
  %601 = vmatprep.subr.mxu0 0.0
  %602 = vmatpush1.msra.mxu0 %v560
  %603 = vmatprep.subr.mxu0 0.0
  %604 = vmatpush2.msra.mxu0 0.0
  %605 = vmatprep.subr.mxu0 0.0
  %606 = vmatpush2.msra.mxu0 0.0
  %607 = vmatprep.subr.mxu0 0.0
  %608 = vmatpush2.msra.mxu0 0.0
  %609 = vmatprep.subr.mxu0 0.0
  %610 = vmatpush2.msra.mxu0 0.0
  %611 = vmatprep.subr.mxu0 0.0
  %612 = vmatpush2.msra.mxu0 0.0
  %613 = vmatprep.subr.mxu0 0.0
  %614 = vmatpush2.msra.mxu0 0.0
  %615 = vmatprep.subr.mxu0 0.0
  %616 = vmatpush2.msra.mxu0 0.0
  %617 = vmatprep.subr.mxu0 0.0
  %618 = vmatpush2.msra.mxu0 0.0
  %619 = vmatprep.subr.mxu0 0.0
  %620 = vmatpush2.msra.mxu0 0.0
  %621 = vmatprep.subr.mxu0 0.0
  %622 = vmatpush2.msra.mxu0 0.0
  %623 = vmatprep.subr.mxu0 0.0
  %624 = vmatpush2.msra.mxu0 0.0
  %625 = vmatprep.subr.mxu0 0.0
  %626 = vmatpush2.msra.mxu0 0.0
  %627 = vmatprep.subr.mxu0 0.0
  %628 = vmatpush2.msra.mxu0 0.0
  %629 = vmatprep.subr.mxu0 0.0
  %630 = vmatpush2.msra.mxu0 0.0
  %631 = vmatprep.subr.mxu0 0.0
  %632 = vmatpush2.msra.mxu0 0.0
  %633 = vmatprep.subr.mxu0 0.0
  %634 = vmatpush2.msra.mxu0 0.0
  %635 = vmatprep.mubr.f32.mxu0 0.0
  %636 = vmatmul.mubr.f32.gmra.mxu0 %v566
  %v637 = vpop.f32.mrf.mxu0
  %v638 = vadd.f32 0.0, %v637
  %v639 = vpop.f32.mrf.mxu0
  %640 = vmatprep.mubr.f32.mxu0 0.0
  %641 = vmatmul.mubr.f32.gmra.mxu0 %v569
  %v642 = vpop.f32.mrf.mxu0
  %v643 = vadd.f32 0.0, %v642
  %v644 = vpop.f32.mrf.mxu0
  %645 = vdwg.mxu0
  %646 = vrot.lane.b32.xlu0 %v319, 64
  %v647 = vpop.permute.xlu0 %646
  %648 = vrot.lane.b32.xlu0 %v324, 64
  %v649 = vpop.permute.xlu0 %648
  %v653 = vsel %vm514, %v557, 0
  %v656 = vsel %vm514, %v558, 0
  %658 = vmatprep.subr.mxu0 0.0
  %659 = vmatpush1.msra.mxu0 0.0
  %660 = vmatprep.subr.mxu0 0.0
  %661 = vmatpush1.msra.mxu0 0.0
  %662 = vmatprep.subr.mxu0 0.0
  %663 = vmatpush1.msra.mxu0 0.0
  %664 = vmatprep.subr.mxu0 0.0
  %665 = vmatpush1.msra.mxu0 0.0
  %666 = vmatprep.subr.mxu0 0.0
  %667 = vmatpush1.msra.mxu0 0.0
  %668 = vmatprep.subr.mxu0 0.0
  %669 = vmatpush1.msra.mxu0 0.0
  %670 = vmatprep.subr.mxu0 0.0
  %671 = vmatpush1.msra.mxu0 0.0
  %672 = vmatprep.subr.mxu0 0.0
  %673 = vmatpush1.msra.mxu0 0.0
  %674 = vmatprep.subr.mxu0 0.0
  %675 = vmatpush1.msra.mxu0 0.0
  %676 = vmatprep.subr.mxu0 0.0
  %677 = vmatpush1.msra.mxu0 0.0
  %678 = vmatprep.subr.mxu0 0.0
  %679 = vmatpush1.msra.mxu0 0.0
  %680 = vmatprep.subr.mxu0 0.0
  %681 = vmatpush1.msra.mxu0 0.0
  %682 = vmatprep.subr.mxu0 0.0
  %683 = vmatpush1.msra.mxu0 0.0
  %684 = vmatprep.subr.mxu0 0.0
  %685 = vmatpush1.msra.mxu0 0.0
  %686 = vmatprep.subr.mxu0 0.0
  %687 = vmatpush1.msra.mxu0 %v649
  %688 = vmatprep.subr.mxu0 0.0
  %689 = vmatpush1.msra.mxu0 %v647
  %690 = vmatprep.subr.mxu0 0.0
  %691 = vmatpush2.msra.mxu0 0.0
  %692 = vmatprep.subr.mxu0 0.0
  %693 = vmatpush2.msra.mxu0 0.0
  %694 = vmatprep.subr.mxu0 0.0
  %695 = vmatpush2.msra.mxu0 0.0
  %696 = vmatprep.subr.mxu0 0.0
  %697 = vmatpush2.msra.mxu0 0.0
  %698 = vmatprep.subr.mxu0 0.0
  %699 = vmatpush2.msra.mxu0 0.0
  %700 = vmatprep.subr.mxu0 0.0
  %701 = vmatpush2.msra.mxu0 0.0
  %702 = vmatprep.subr.mxu0 0.0
  %703 = vmatpush2.msra.mxu0 0.0
  %704 = vmatprep.subr.mxu0 0.0
  %705 = vmatpush2.msra.mxu0 0.0
  %706 = vmatprep.subr.mxu0 0.0
  %707 = vmatpush2.msra.mxu0 0.0
  %708 = vmatprep.subr.mxu0 0.0
  %709 = vmatpush2.msra.mxu0 0.0
  %710 = vmatprep.subr.mxu0 0.0
  %711 = vmatpush2.msra.mxu0 0.0
  %712 = vmatprep.subr.mxu0 0.0
  %713 = vmatpush2.msra.mxu0 0.0
  %714 = vmatprep.subr.mxu0 0.0
  %715 = vmatpush2.msra.mxu0 0.0
  %716 = vmatprep.subr.mxu0 0.0
  %717 = vmatpush2.msra.mxu0 0.0
  %718 = vmatprep.subr.mxu0 0.0
  %719 = vmatpush2.msra.mxu0 0.0
  %720 = vmatprep.subr.mxu0 0.0
  %721 = vmatpush2.msra.mxu0 0.0
  %722 = vmatprep.mubr.f32.mxu0 0.0
  %723 = vmatmul.mubr.f32.gmra.mxu0 %v653
  %v724 = vpop.f32.mrf.mxu0
  %v725 = vadd.f32 0.0, %v724
  %v726 = vpop.f32.mrf.mxu0
  %727 = vmatprep.mubr.f32.mxu0 0.0
  %728 = vmatmul.mubr.f32.gmra.mxu0 %v656
  %v729 = vpop.f32.mrf.mxu0
  %v730 = vadd.f32 0.0, %v729
  %v731 = vpop.f32.mrf.mxu0
  %732 = vdwg.mxu0
  %733 = vrot.lane.b32.xlu0 %v327, 120
  %v734 = vpop.permute.xlu0 %733
  %735 = vrot.lane.b32.xlu0 %v328, 120
  %v736 = vpop.permute.xlu0 %735
  %737 = vrot.lane.b32.xlu0 %v309, 88
  %v738 = vpop.permute.xlu0 %737
  %739 = vrot.lane.b32.xlu0 %v314, 88
  %v740 = vpop.permute.xlu0 %739
  %v741 = vsel %vm337, %v734, 0
  %v743 = vsel %vm337, %v736, 0
  %v745 = vsel %vm337, %v738, 0
  %v747 = vsel %vm337, %v740, 0
  %749 = vmatprep.subr.mxu0 0.0
  %750 = vmatpush1.xpose.msra.mxu0 0.0
  %751 = vmatprep.subr.mxu0 0.0
  %752 = vmatpush1.xpose.msra.mxu0 0.0
  %753 = vmatprep.subr.mxu0 0.0
  %754 = vmatpush1.xpose.msra.mxu0 0.0
  %755 = vmatprep.subr.mxu0 0.0
  %756 = vmatpush1.xpose.msra.mxu0 0.0
  %757 = vmatprep.subr.mxu0 0.0
  %758 = vmatpush1.xpose.msra.mxu0 0.0
  %759 = vmatprep.subr.mxu0 0.0
  %760 = vmatpush1.xpose.msra.mxu0 0.0
  %761 = vmatprep.subr.mxu0 0.0
  %762 = vmatpush1.xpose.msra.mxu0 0.0
  %763 = vmatprep.subr.mxu0 0.0
  %764 = vmatpush1.xpose.msra.mxu0 0.0
  %765 = vmatprep.subr.mxu0 0.0
  %766 = vmatpush1.xpose.msra.mxu0 0.0
  %767 = vmatprep.subr.mxu0 0.0
  %768 = vmatpush1.xpose.msra.mxu0 0.0
  %769 = vmatprep.subr.mxu0 0.0
  %770 = vmatpush1.xpose.msra.mxu0 0.0
  %771 = vmatprep.subr.mxu0 0.0
  %772 = vmatpush1.xpose.msra.mxu0 0.0
  %773 = vmatprep.subr.mxu0 0.0
  %774 = vmatpush1.xpose.msra.mxu0 0.0
  %775 = vmatprep.subr.mxu0 0.0
  %776 = vmatpush1.xpose.msra.mxu0 0.0
  %777 = vmatprep.subr.mxu0 0.0
  %778 = vmatpush1.xpose.msra.mxu0 %v747
  %779 = vmatprep.subr.mxu0 0.0
  %780 = vmatpush1.xpose.msra.mxu0 %v745
  %781 = vmatprep.subr.mxu0 0.0
  %782 = vmatpush2.xpose.msra.mxu0 0.0
  %783 = vmatprep.subr.mxu0 0.0
  %784 = vmatpush2.xpose.msra.mxu0 0.0
  %785 = vmatprep.subr.mxu0 0.0
  %786 = vmatpush2.xpose.msra.mxu0 0.0
  %787 = vmatprep.subr.mxu0 0.0
  %788 = vmatpush2.xpose.msra.mxu0 0.0
  %789 = vmatprep.subr.mxu0 0.0
  %790 = vmatpush2.xpose.msra.mxu0 0.0
  %791 = vmatprep.subr.mxu0 0.0
  %792 = vmatpush2.xpose.msra.mxu0 0.0
  %793 = vmatprep.subr.mxu0 0.0
  %794 = vmatpush2.xpose.msra.mxu0 0.0
  %795 = vmatprep.subr.mxu0 0.0
  %796 = vmatpush2.xpose.msra.mxu0 0.0
  %797 = vmatprep.subr.mxu0 0.0
  %798 = vmatpush2.xpose.msra.mxu0 0.0
  %799 = vmatprep.subr.mxu0 0.0
  %800 = vmatpush2.xpose.msra.mxu0 0.0
  %801 = vmatprep.subr.mxu0 0.0
  %802 = vmatpush2.xpose.msra.mxu0 0.0
  %803 = vmatprep.subr.mxu0 0.0
  %804 = vmatpush2.xpose.msra.mxu0 0.0
  %805 = vmatprep.subr.mxu0 0.0
  %806 = vmatpush2.xpose.msra.mxu0 0.0
  %807 = vmatprep.subr.mxu0 0.0
  %808 = vmatpush2.xpose.msra.mxu0 0.0
  %809 = vmatprep.subr.mxu0 0.0
  %810 = vmatpush2.xpose.msra.mxu0 0.0
  %811 = vmatprep.subr.mxu0 0.0
  %812 = vmatpush2.xpose.msra.mxu0 0.0
  %813 = vmatprep.mubr.f32.mxu0 0.0
  %814 = vmatmul.mubr.f32.gmra.mxu0 %v741
  %v815 = vpop.f32.mrf.mxu0
  %v816 = vadd.f32 0.0, %v815
  %v817 = vpop.f32.mrf.mxu0
  %818 = vmatprep.mubr.f32.mxu0 0.0
  %819 = vmatmul.mubr.f32.gmra.mxu0 %v743
  %v820 = vpop.f32.mrf.mxu0
  %v821 = vadd.f32 0.0, %v820
  %v822 = vpop.f32.mrf.mxu0
  %823 = vdwg.mxu0
  %824 = vrot.lane.b32.xlu0 %v329, 120
  %v825 = vpop.permute.xlu0 %824
  %826 = vrot.lane.b32.xlu0 %v330, 120
  %v827 = vpop.permute.xlu0 %826
  %828 = vrot.lane.b32.xlu0 %v319, 88
  %v829 = vpop.permute.xlu0 %828
  %830 = vrot.lane.b32.xlu0 %v324, 88
  %v831 = vpop.permute.xlu0 %830
  %v832 = vsel %vm337, %v825, 0
  %v834 = vsel %vm337, %v827, 0
  %v836 = vsel %vm337, %v829, 0
  %v838 = vsel %vm337, %v831, 0
  %840 = vmatprep.subr.mxu0 0.0
  %841 = vmatpush1.xpose.msra.mxu0 0.0
  %842 = vmatprep.subr.mxu0 0.0
  %843 = vmatpush1.xpose.msra.mxu0 0.0
  %844 = vmatprep.subr.mxu0 0.0
  %845 = vmatpush1.xpose.msra.mxu0 0.0
  %846 = vmatprep.subr.mxu0 0.0
  %847 = vmatpush1.xpose.msra.mxu0 0.0
  %848 = vmatprep.subr.mxu0 0.0
  %849 = vmatpush1.xpose.msra.mxu0 0.0
  %850 = vmatprep.subr.mxu0 0.0
  %851 = vmatpush1.xpose.msra.mxu0 0.0
  %852 = vmatprep.subr.mxu0 0.0
  %853 = vmatpush1.xpose.msra.mxu0 0.0
  %854 = vmatprep.subr.mxu0 0.0
  %855 = vmatpush1.xpose.msra.mxu0 0.0
  %856 = vmatprep.subr.mxu0 0.0
  %857 = vmatpush1.xpose.msra.mxu0 0.0
  %858 = vmatprep.subr.mxu0 0.0
  %859 = vmatpush1.xpose.msra.mxu0 0.0
  %860 = vmatprep.subr.mxu0 0.0
  %861 = vmatpush1.xpose.msra.mxu0 0.0
  %862 = vmatprep.subr.mxu0 0.0
  %863 = vmatpush1.xpose.msra.mxu0 0.0
  %864 = vmatprep.subr.mxu0 0.0
  %865 = vmatpush1.xpose.msra.mxu0 0.0
  %866 = vmatprep.subr.mxu0 0.0
  %867 = vmatpush1.xpose.msra.mxu0 0.0
  %868 = vmatprep.subr.mxu0 0.0
  %869 = vmatpush1.xpose.msra.mxu0 %v838
  %870 = vmatprep.subr.mxu0 0.0
  %871 = vmatpush1.xpose.msra.mxu0 %v836
  %872 = vmatprep.subr.mxu0 0.0
  %873 = vmatpush2.xpose.msra.mxu0 0.0
  %874 = vmatprep.subr.mxu0 0.0
  %875 = vmatpush2.xpose.msra.mxu0 0.0
  %876 = vmatprep.subr.mxu0 0.0
  %877 = vmatpush2.xpose.msra.mxu0 0.0
  %878 = vmatprep.subr.mxu0 0.0
  %879 = vmatpush2.xpose.msra.mxu0 0.0
  %880 = vmatprep.subr.mxu0 0.0
  %881 = vmatpush2.xpose.msra.mxu0 0.0
  %882 = vmatprep.subr.mxu0 0.0
  %883 = vmatpush2.xpose.msra.mxu0 0.0
  %884 = vmatprep.subr.mxu0 0.0
  %885 = vmatpush2.xpose.msra.mxu0 0.0
  %886 = vmatprep.subr.mxu0 0.0
  %887 = vmatpush2.xpose.msra.mxu0 0.0
  %888 = vmatprep.subr.mxu0 0.0
  %889 = vmatpush2.xpose.msra.mxu0 0.0
  %890 = vmatprep.subr.mxu0 0.0
  %891 = vmatpush2.xpose.msra.mxu0 0.0
  %892 = vmatprep.subr.mxu0 0.0
  %893 = vmatpush2.xpose.msra.mxu0 0.0
  %894 = vmatprep.subr.mxu0 0.0
  %895 = vmatpush2.xpose.msra.mxu0 0.0
  %896 = vmatprep.subr.mxu0 0.0
  %897 = vmatpush2.xpose.msra.mxu0 0.0
  %898 = vmatprep.subr.mxu0 0.0
  %899 = vmatpush2.xpose.msra.mxu0 0.0
  %900 = vmatprep.subr.mxu0 0.0
  %901 = vmatpush2.xpose.msra.mxu0 0.0
  %902 = vmatprep.subr.mxu0 0.0
  %903 = vmatpush2.xpose.msra.mxu0 0.0
  %904 = vmatprep.mubr.f32.mxu0 0.0
  %905 = vmatmul.mubr.f32.gmra.mxu0 %v832
  %v906 = vpop.f32.mrf.mxu0
  %v907 = vadd.f32 0.0, %v906
  %v908 = vpop.f32.mrf.mxu0
  %909 = vmatprep.mubr.f32.mxu0 0.0
  %910 = vmatmul.mubr.f32.gmra.mxu0 %v834
  %v911 = vpop.f32.mrf.mxu0
  %v912 = vadd.f32 0.0, %v911
  %v913 = vpop.f32.mrf.mxu0
  %914 = vdwg.mxu0
  %v915 = vsel %vm514, %v816, -inf
  %916 = vmax.xlane.f32.xlu0 %v915
  %v917 = vpop.xlane.xlu0 %916
  %v918 = vsel %vm514, %v821, -inf
  %919 = vmax.xlane.f32.xlu0 %v918
  %v920 = vpop.xlane.xlu0 %919
  %v921 = vsel %vm514, %v907, -inf
  %922 = vmax.xlane.f32.xlu0 %v921
  %v923 = vpop.xlane.xlu0 %922
  %v924 = vsel %vm514, %v912, -inf
  %925 = vmax.xlane.f32.xlu0 %v924
  %v926 = vpop.xlane.xlu0 %925
  %v927 = vsub.f32 %v816, %v917
  %v928 = vsub.f32 %v821, %v920
  %v929 = vsub.f32 %v907, %v923
  %v930 = vsub.f32 %v912, %v926
  %v931 = vmul.f32 %v927, 1.442695
  %v932 = vpow.pop %v931
  %v933 = vmul.f32 %v928, 1.442695
  %v934 = vpow.pop %v933
  %v935 = vmul.f32 %v929, 1.442695
  %v936 = vpow.pop %v935
  %v937 = vmul.f32 %v930, 1.442695
  %v938 = vpow.pop %v937
  %v939 = vsel %vm514, %v932, 0.0
  %940 = vadd.xlane.f32.xlu0 %v939
  %v941 = vpop.xlane.xlu0 %940
  %v942 = vsel %vm514, %v934, 0.0
  %943 = vadd.xlane.f32.xlu0 %v942
  %v944 = vpop.xlane.xlu0 %943
  %v945 = vsel %vm514, %v936, 0.0
  %946 = vadd.xlane.f32.xlu0 %v945
  %v947 = vpop.xlane.xlu0 %946
  %v948 = vsel %vm514, %v938, 0.0
  %949 = vadd.xlane.f32.xlu0 %v948
  %v950 = vpop.xlane.xlu0 %949
  %v951 = vrcp.pop %v941
  %v952 = vrcp.pop %v944
  %v953 = vrcp.pop %v947
  %v954 = vrcp.pop %v950
  %v955 = vmul.f32 %v932, %v951
  %v956 = vmul.f32 %v934, %v952
  %v957 = vmul.f32 %v936, %v953
  %v958 = vmul.f32 %v938, %v954
  %959 = vrot.lane.b32.xlu0 %v309, 56
  %v960 = vpop.permute.xlu0 %959
  %961 = vrot.lane.b32.xlu0 %v314, 56
  %v962 = vpop.permute.xlu0 %961
  %v966 = vsel %vm514, %v955, 0
  %v969 = vsel %vm514, %v956, 0
  %971 = vmatprep.subr.mxu0 0.0
  %972 = vmatpush1.msra.mxu0 0.0
  %973 = vmatprep.subr.mxu0 0.0
  %974 = vmatpush1.msra.mxu0 0.0
  %975 = vmatprep.subr.mxu0 0.0
  %976 = vmatpush1.msra.mxu0 0.0
  %977 = vmatprep.subr.mxu0 0.0
  %978 = vmatpush1.msra.mxu0 0.0
  %979 = vmatprep.subr.mxu0 0.0
  %980 = vmatpush1.msra.mxu0 0.0
  %981 = vmatprep.subr.mxu0 0.0
  %982 = vmatpush1.msra.mxu0 0.0
  %983 = vmatprep.subr.mxu0 0.0
  %984 = vmatpush1.msra.mxu0 0.0
  %985 = vmatprep.subr.mxu0 0.0
  %986 = vmatpush1.msra.mxu0 0.0
  %987 = vmatprep.subr.mxu0 0.0
  %988 = vmatpush1.msra.mxu0 0.0
  %989 = vmatprep.subr.mxu0 0.0
  %990 = vmatpush1.msra.mxu0 0.0
  %991 = vmatprep.subr.mxu0 0.0
  %992 = vmatpush1.msra.mxu0 0.0
  %993 = vmatprep.subr.mxu0 0.0
  %994 = vmatpush1.msra.mxu0 0.0
  %995 = vmatprep.subr.mxu0 0.0
  %996 = vmatpush1.msra.mxu0 0.0
  %997 = vmatprep.subr.mxu0 0.0
  %998 = vmatpush1.msra.mxu0 0.0
  %999 = vmatprep.subr.mxu0 0.0
  %1000 = vmatpush1.msra.mxu0 %v962
  %1001 = vmatprep.subr.mxu0 0.0
  %1002 = vmatpush1.msra.mxu0 %v960
  %1003 = vmatprep.subr.mxu0 0.0
  %1004 = vmatpush2.msra.mxu0 0.0
  %1005 = vmatprep.subr.mxu0 0.0
  %1006 = vmatpush2.msra.mxu0 0.0
  %1007 = vmatprep.subr.mxu0 0.0
  %1008 = vmatpush2.msra.mxu0 0.0
  %1009 = vmatprep.subr.mxu0 0.0
  %1010 = vmatpush2.msra.mxu0 0.0
  %1011 = vmatprep.subr.mxu0 0.0
  %1012 = vmatpush2.msra.mxu0 0.0
  %1013 = vmatprep.subr.mxu0 0.0
  %1014 = vmatpush2.msra.mxu0 0.0
  %1015 = vmatprep.subr.mxu0 0.0
  %1016 = vmatpush2.msra.mxu0 0.0
  %1017 = vmatprep.subr.mxu0 0.0
  %1018 = vmatpush2.msra.mxu0 0.0
  %1019 = vmatprep.subr.mxu0 0.0
  %1020 = vmatpush2.msra.mxu0 0.0
  %1021 = vmatprep.subr.mxu0 0.0
  %1022 = vmatpush2.msra.mxu0 0.0
  %1023 = vmatprep.subr.mxu0 0.0
  %1024 = vmatpush2.msra.mxu0 0.0
  %1025 = vmatprep.subr.mxu0 0.0
  %1026 = vmatpush2.msra.mxu0 0.0
  %1027 = vmatprep.subr.mxu0 0.0
  %1028 = vmatpush2.msra.mxu0 0.0
  %1029 = vmatprep.subr.mxu0 0.0
  %1030 = vmatpush2.msra.mxu0 0.0
  %1031 = vmatprep.subr.mxu0 0.0
  %1032 = vmatpush2.msra.mxu0 0.0
  %1033 = vmatprep.subr.mxu0 0.0
  %1034 = vmatpush2.msra.mxu0 0.0
  %1035 = vmatprep.mubr.f32.mxu0 0.0
  %1036 = vmatmul.mubr.f32.gmra.mxu0 %v966
  %v1037 = vpop.f32.mrf.mxu0
  %v1038 = vadd.f32 0.0, %v1037
  %v1039 = vpop.f32.mrf.mxu0
  %1040 = vmatprep.mubr.f32.mxu0 0.0
  %1041 = vmatmul.mubr.f32.gmra.mxu0 %v969
  %v1042 = vpop.f32.mrf.mxu0
  %v1043 = vadd.f32 0.0, %v1042
  %v1044 = vpop.f32.mrf.mxu0
  %1045 = vdwg.mxu0
  %1046 = vrot.lane.b32.xlu0 %v319, 56
  %v1047 = vpop.permute.xlu0 %1046
  %1048 = vrot.lane.b32.xlu0 %v324, 56
  %v1049 = vpop.permute.xlu0 %1048
  %v1053 = vsel %vm514, %v957, 0
  %v1056 = vsel %vm514, %v958, 0
  %1058 = vmatprep.subr.mxu0 0.0
  %1059 = vmatpush1.msra.mxu0 0.0
  %1060 = vmatprep.subr.mxu0 0.0
  %1061 = vmatpush1.msra.mxu0 0.0
  %1062 = vmatprep.subr.mxu0 0.0
  %1063 = vmatpush1.msra.mxu0 0.0
  %1064 = vmatprep.subr.mxu0 0.0
  %1065 = vmatpush1.msra.mxu0 0.0
  %1066 = vmatprep.subr.mxu0 0.0
  %1067 = vmatpush1.msra.mxu0 0.0
  %1068 = vmatprep.subr.mxu0 0.0
  %1069 = vmatpush1.msra.mxu0 0.0
  %1070 = vmatprep.subr.mxu0 0.0
  %1071 = vmatpush1.msra.mxu0 0.0
  %1072 = vmatprep.subr.mxu0 0.0
  %1073 = vmatpush1.msra.mxu0 0.0
  %1074 = vmatprep.subr.mxu0 0.0
  %1075 = vmatpush1.msra.mxu0 0.0
  %1076 = vmatprep.subr.mxu0 0.0
  %1077 = vmatpush1.msra.mxu0 0.0
  %1078 = vmatprep.subr.mxu0 0.0
  %1079 = vmatpush1.msra.mxu0 0.0
  %1080 = vmatprep.subr.mxu0 0.0
  %1081 = vmatpush1.msra.mxu0 0.0
  %1082 = vmatprep.subr.mxu0 0.0
  %1083 = vmatpush1.msra.mxu0 0.0
  %1084 = vmatprep.subr.mxu0 0.0
  %1085 = vmatpush1.msra.mxu0 0.0
  %1086 = vmatprep.subr.mxu0 0.0
  %1087 = vmatpush1.msra.mxu0 %v1049
  %1088 = vmatprep.subr.mxu0 0.0
  %1089 = vmatpush1.msra.mxu0 %v1047
  %1090 = vmatprep.subr.mxu0 0.0
  %1091 = vmatpush2.msra.mxu0 0.0
  %1092 = vmatprep.subr.mxu0 0.0
  %1093 = vmatpush2.msra.mxu0 0.0
  %1094 = vmatprep.subr.mxu0 0.0
  %1095 = vmatpush2.msra.mxu0 0.0
  %1096 = vmatprep.subr.mxu0 0.0
  %1097 = vmatpush2.msra.mxu0 0.0
  %1098 = vmatprep.subr.mxu0 0.0
  %1099 = vmatpush2.msra.mxu0 0.0
  %1100 = vmatprep.subr.mxu0 0.0
  %1101 = vmatpush2.msra.mxu0 0.0
  %1102 = vmatprep.subr.mxu0 0.0
  %1103 = vmatpush2.msra.mxu0 0.0
  %1104 = vmatprep.subr.mxu0 0.0
  %1105 = vmatpush2.msra.mxu0 0.0
  %1106 = vmatprep.subr.mxu0 0.0
  %1107 = vmatpush2.msra.mxu0 0.0
  %1108 = vmatprep.subr.mxu0 0.0
  %1109 = vmatpush2.msra.mxu0 0.0
  %1110 = vmatprep.subr.mxu0 0.0
  %1111 = vmatpush2.msra.mxu0 0.0
  %1112 = vmatprep.subr.mxu0 0.0
  %1113 = vmatpush2.msra.mxu0 0.0
  %1114 = vmatprep.subr.mxu0 0.0
  %1115 = vmatpush2.msra.mxu0 0.0
  %1116 = vmatprep.subr.mxu0 0.0
  %1117 = vmatpush2.msra.mxu0 0.0
  %1118 = vmatprep.subr.mxu0 0.0
  %1119 = vmatpush2.msra.mxu0 0.0
  %1120 = vmatprep.subr.mxu0 0.0
  %1121 = vmatpush2.msra.mxu0 0.0
  %1122 = vmatprep.mubr.f32.mxu0 0.0
  %1123 = vmatmul.mubr.f32.gmra.mxu0 %v1053
  %v1124 = vpop.f32.mrf.mxu0
  %v1125 = vadd.f32 0.0, %v1124
  %v1126 = vpop.f32.mrf.mxu0
  %1127 = vmatprep.mubr.f32.mxu0 0.0
  %1128 = vmatmul.mubr.f32.gmra.mxu0 %v1056
  %v1129 = vpop.f32.mrf.mxu0
  %v1130 = vadd.f32 0.0, %v1129
  %v1131 = vpop.f32.mrf.mxu0
  %1132 = vdwg.mxu0
  %v1134 = vsel %vm337, %v1038, 0
  %v1137 = vsel %vm337, %v1043, 0
  %v1140 = vsel %vm337, %v1125, 0
  %v1143 = vsel %vm337, %v1130, 0
  %1145 = vmatprep.subr.mxu0 0.0
  %1146 = vmatpush1.msra.mxu0 0.0
  %1147 = vmatprep.subr.mxu0 0.0
  %1148 = vmatpush1.msra.mxu0 0.0
  %1149 = vmatprep.subr.mxu0 0.0
  %1150 = vmatpush1.msra.mxu0 0.0
  %1151 = vmatprep.subr.mxu0 0.0
  %1152 = vmatpush1.msra.mxu0 0.0
  %1153 = vmatprep.subr.mxu0 0.0
  %1154 = vmatpush1.msra.mxu0 0.0
  %1155 = vmatprep.subr.mxu0 0.0
  %1156 = vmatpush1.msra.mxu0 0.0
  %1157 = vmatprep.subr.mxu0 0.0
  %1158 = vmatpush1.msra.mxu0 0.0
  %1159 = vmatprep.subr.mxu0 0.0
  %1160 = vmatpush1.msra.mxu0 0.0
  %1161 = vmatprep.subr.mxu0 0.0
  %1162 = vmatpush1.msra.mxu0 0.0
  %1163 = vmatprep.subr.mxu0 0.0
  %1164 = vmatpush1.msra.mxu0 0.0
  %1165 = vmatprep.subr.mxu0 0.0
  %1166 = vmatpush1.msra.mxu0 0.0
  %1167 = vmatprep.subr.mxu0 0.0
  %1168 = vmatpush1.msra.mxu0 0.0
  %1169 = vmatprep.subr.mxu0 0.0
  %1170 = vmatpush1.msra.mxu0 0.0
  %1171 = vmatprep.subr.mxu0 0.0
  %1172 = vmatpush1.msra.mxu0 0.0
  %1173 = vmatprep.subr.mxu0 0.0
  %1174 = vmatpush1.msra.mxu0 0.0
  %1175 = vmatprep.subr.mxu0 0.0
  %1176 = vmatpush1.msra.mxu0 %v147
  %1177 = vmatprep.subr.mxu0 0.0
  %1178 = vmatpush2.msra.mxu0 0.0
  %1179 = vmatprep.subr.mxu0 0.0
  %1180 = vmatpush2.msra.mxu0 0.0
  %1181 = vmatprep.subr.mxu0 0.0
  %1182 = vmatpush2.msra.mxu0 0.0
  %1183 = vmatprep.subr.mxu0 0.0
  %1184 = vmatpush2.msra.mxu0 0.0
  %1185 = vmatprep.subr.mxu0 0.0
  %1186 = vmatpush2.msra.mxu0 0.0
  %1187 = vmatprep.subr.mxu0 0.0
  %1188 = vmatpush2.msra.mxu0 0.0
  %1189 = vmatprep.subr.mxu0 0.0
  %1190 = vmatpush2.msra.mxu0 0.0
  %1191 = vmatprep.subr.mxu0 0.0
  %1192 = vmatpush2.msra.mxu0 0.0
  %1193 = vmatprep.subr.mxu0 0.0
  %1194 = vmatpush2.msra.mxu0 0.0
  %1195 = vmatprep.subr.mxu0 0.0
  %1196 = vmatpush2.msra.mxu0 0.0
  %1197 = vmatprep.subr.mxu0 0.0
  %1198 = vmatpush2.msra.mxu0 0.0
  %1199 = vmatprep.subr.mxu0 0.0
  %1200 = vmatpush2.msra.mxu0 0.0
  %1201 = vmatprep.subr.mxu0 0.0
  %1202 = vmatpush2.msra.mxu0 0.0
  %1203 = vmatprep.subr.mxu0 0.0
  %1204 = vmatpush2.msra.mxu0 0.0
  %1205 = vmatprep.subr.mxu0 0.0
  %1206 = vmatpush2.msra.mxu0 0.0
  %1207 = vmatprep.subr.mxu0 0.0
  %1208 = vmatpush2.msra.mxu0 0.0
  %1209 = vmatprep.mubr.f32.mxu0 0.0
  %1210 = vmatmul.mubr.f32.gmra.mxu0 %v1134
  %v1211 = vpop.f32.mrf.mxu0
  %v1212 = vadd.f32 0.0, %v1211
  %v1213 = vpop.f32.mrf.mxu0
  %1214 = vmatprep.mubr.f32.mxu0 0.0
  %1215 = vmatmul.mubr.f32.gmra.mxu0 %v1137
  %v1216 = vpop.f32.mrf.mxu0
  %v1217 = vadd.f32 0.0, %v1216
  %v1218 = vpop.f32.mrf.mxu0
  %1219 = vmatprep.mubr.f32.mxu0 0.0
  %1220 = vmatmul.mubr.f32.gmra.mxu0 %v1140
  %v1221 = vpop.f32.mrf.mxu0
  %v1222 = vadd.f32 0.0, %v1221
  %v1223 = vpop.f32.mrf.mxu0
  %1224 = vmatprep.mubr.f32.mxu0 0.0
  %1225 = vmatmul.mubr.f32.gmra.mxu0 %v1143
  %v1226 = vpop.f32.mrf.mxu0
  %v1227 = vadd.f32 0.0, %v1226
  %v1228 = vpop.f32.mrf.mxu0
  %1229 = vdwg.mxu0
  %v1231 = vsel %vm337, %v638, 0
  %v1234 = vsel %vm337, %v643, 0
  %v1237 = vsel %vm337, %v725, 0
  %v1240 = vsel %vm337, %v730, 0
  %1242 = vmatprep.subr.mxu0 0.0
  %1243 = vmatpush1.msra.mxu0 0.0
  %1244 = vmatprep.subr.mxu0 0.0
  %1245 = vmatpush1.msra.mxu0 0.0
  %1246 = vmatprep.subr.mxu0 0.0
  %1247 = vmatpush1.msra.mxu0 0.0
  %1248 = vmatprep.subr.mxu0 0.0
  %1249 = vmatpush1.msra.mxu0 0.0
  %1250 = vmatprep.subr.mxu0 0.0
  %1251 = vmatpush1.msra.mxu0 0.0
  %1252 = vmatprep.subr.mxu0 0.0
  %1253 = vmatpush1.msra.mxu0 0.0
  %1254 = vmatprep.subr.mxu0 0.0
  %1255 = vmatpush1.msra.mxu0 0.0
  %1256 = vmatprep.subr.mxu0 0.0
  %1257 = vmatpush1.msra.mxu0 0.0
  %1258 = vmatprep.subr.mxu0 0.0
  %1259 = vmatpush1.msra.mxu0 0.0
  %1260 = vmatprep.subr.mxu0 0.0
  %1261 = vmatpush1.msra.mxu0 0.0
  %1262 = vmatprep.subr.mxu0 0.0
  %1263 = vmatpush1.msra.mxu0 0.0
  %1264 = vmatprep.subr.mxu0 0.0
  %1265 = vmatpush1.msra.mxu0 0.0
  %1266 = vmatprep.subr.mxu0 0.0
  %1267 = vmatpush1.msra.mxu0 0.0
  %1268 = vmatprep.subr.mxu0 0.0
  %1269 = vmatpush1.msra.mxu0 0.0
  %1270 = vmatprep.subr.mxu0 0.0
  %1271 = vmatpush1.msra.mxu0 0.0
  %1272 = vmatprep.subr.mxu0 0.0
  %1273 = vmatpush1.msra.mxu0 %v146
  %1274 = vmatprep.subr.mxu0 0.0
  %1275 = vmatpush2.msra.mxu0 0.0
  %1276 = vmatprep.subr.mxu0 0.0
  %1277 = vmatpush2.msra.mxu0 0.0
  %1278 = vmatprep.subr.mxu0 0.0
  %1279 = vmatpush2.msra.mxu0 0.0
  %1280 = vmatprep.subr.mxu0 0.0
  %1281 = vmatpush2.msra.mxu0 0.0
  %1282 = vmatprep.subr.mxu0 0.0
  %1283 = vmatpush2.msra.mxu0 0.0
  %1284 = vmatprep.subr.mxu0 0.0
  %1285 = vmatpush2.msra.mxu0 0.0
  %1286 = vmatprep.subr.mxu0 0.0
  %1287 = vmatpush2.msra.mxu0 0.0
  %1288 = vmatprep.subr.mxu0 0.0
  %1289 = vmatpush2.msra.mxu0 0.0
  %1290 = vmatprep.subr.mxu0 0.0
  %1291 = vmatpush2.msra.mxu0 0.0
  %1292 = vmatprep.subr.mxu0 0.0
  %1293 = vmatpush2.msra.mxu0 0.0
  %1294 = vmatprep.subr.mxu0 0.0
  %1295 = vmatpush2.msra.mxu0 0.0
  %1296 = vmatprep.subr.mxu0 0.0
  %1297 = vmatpush2.msra.mxu0 0.0
  %1298 = vmatprep.subr.mxu0 0.0
  %1299 = vmatpush2.msra.mxu0 0.0
  %1300 = vmatprep.subr.mxu0 0.0
  %1301 = vmatpush2.msra.mxu0 0.0
  %1302 = vmatprep.subr.mxu0 0.0
  %1303 = vmatpush2.msra.mxu0 0.0
  %1304 = vmatprep.subr.mxu0 0.0
  %1305 = vmatpush2.msra.mxu0 0.0
  %1306 = vmatprep.mubr.f32.mxu0 0.0
  %1307 = vmatmul.mubr.f32.gmra.mxu0 %v1231
  %v1308 = vpop.f32.mrf.mxu0
  %v1309 = vadd.f32 %v1212, %v1308
  %v1310 = vpop.f32.mrf.mxu0
  %1311 = vmatprep.mubr.f32.mxu0 0.0
  %1312 = vmatmul.mubr.f32.gmra.mxu0 %v1234
  %v1313 = vpop.f32.mrf.mxu0
  %v1314 = vadd.f32 %v1217, %v1313
  %v1315 = vpop.f32.mrf.mxu0
  %1316 = vmatprep.mubr.f32.mxu0 0.0
  %1317 = vmatmul.mubr.f32.gmra.mxu0 %v1237
  %v1318 = vpop.f32.mrf.mxu0
  %v1319 = vadd.f32 %v1222, %v1318
  %v1320 = vpop.f32.mrf.mxu0
  %1321 = vmatprep.mubr.f32.mxu0 0.0
  %1322 = vmatmul.mubr.f32.gmra.mxu0 %v1240
  %v1323 = vpop.f32.mrf.mxu0
  %v1324 = vadd.f32 %v1227, %v1323
  %v1325 = vpop.f32.mrf.mxu0
  %1326 = vdwg.mxu0
  %1327 = vrot.lane.b32.xlu0 %v327, 112
  %v1328 = vpop.permute.xlu0 %1327
  %1329 = vrot.lane.b32.xlu0 %v328, 112
  %v1330 = vpop.permute.xlu0 %1329
  %1331 = vrot.lane.b32.xlu0 %v309, 80
  %v1332 = vpop.permute.xlu0 %1331
  %1333 = vrot.lane.b32.xlu0 %v314, 80
  %v1334 = vpop.permute.xlu0 %1333
  %v1335 = vsel %vm337, %v1328, 0
  %v1337 = vsel %vm337, %v1330, 0
  %v1339 = vsel %vm337, %v1332, 0
  %v1341 = vsel %vm337, %v1334, 0
  %1343 = vmatprep.subr.mxu0 0.0
  %1344 = vmatpush1.xpose.msra.mxu0 0.0
  %1345 = vmatprep.subr.mxu0 0.0
  %1346 = vmatpush1.xpose.msra.mxu0 0.0
  %1347 = vmatprep.subr.mxu0 0.0
  %1348 = vmatpush1.xpose.msra.mxu0 0.0
  %1349 = vmatprep.subr.mxu0 0.0
  %1350 = vmatpush1.xpose.msra.mxu0 0.0
  %1351 = vmatprep.subr.mxu0 0.0
  %1352 = vmatpush1.xpose.msra.mxu0 0.0
  %1353 = vmatprep.subr.mxu0 0.0
  %1354 = vmatpush1.xpose.msra.mxu0 0.0
  %1355 = vmatprep.subr.mxu0 0.0
  %1356 = vmatpush1.xpose.msra.mxu0 0.0
  %1357 = vmatprep.subr.mxu0 0.0
  %1358 = vmatpush1.xpose.msra.mxu0 0.0
  %1359 = vmatprep.subr.mxu0 0.0
  %1360 = vmatpush1.xpose.msra.mxu0 0.0
  %1361 = vmatprep.subr.mxu0 0.0
  %1362 = vmatpush1.xpose.msra.mxu0 0.0
  %1363 = vmatprep.subr.mxu0 0.0
  %1364 = vmatpush1.xpose.msra.mxu0 0.0
  %1365 = vmatprep.subr.mxu0 0.0
  %1366 = vmatpush1.xpose.msra.mxu0 0.0
  %1367 = vmatprep.subr.mxu0 0.0
  %1368 = vmatpush1.xpose.msra.mxu0 0.0
  %1369 = vmatprep.subr.mxu0 0.0
  %1370 = vmatpush1.xpose.msra.mxu0 0.0
  %1371 = vmatprep.subr.mxu0 0.0
  %1372 = vmatpush1.xpose.msra.mxu0 %v1341
  %1373 = vmatprep.subr.mxu0 0.0
  %1374 = vmatpush1.xpose.msra.mxu0 %v1339
  %1375 = vmatprep.subr.mxu0 0.0
  %1376 = vmatpush2.xpose.msra.mxu0 0.0
  %1377 = vmatprep.subr.mxu0 0.0
  %1378 = vmatpush2.xpose.msra.mxu0 0.0
  %1379 = vmatprep.subr.mxu0 0.0
  %1380 = vmatpush2.xpose.msra.mxu0 0.0
  %1381 = vmatprep.subr.mxu0 0.0
  %1382 = vmatpush2.xpose.msra.mxu0 0.0
  %1383 = vmatprep.subr.mxu0 0.0
  %1384 = vmatpush2.xpose.msra.mxu0 0.0
  %1385 = vmatprep.subr.mxu0 0.0
  %1386 = vmatpush2.xpose.msra.mxu0 0.0
  %1387 = vmatprep.subr.mxu0 0.0
  %1388 = vmatpush2.xpose.msra.mxu0 0.0
  %1389 = vmatprep.subr.mxu0 0.0
  %1390 = vmatpush2.xpose.msra.mxu0 0.0
  %1391 = vmatprep.subr.mxu0 0.0
  %1392 = vmatpush2.xpose.msra.mxu0 0.0
  %1393 = vmatprep.subr.mxu0 0.0
  %1394 = vmatpush2.xpose.msra.mxu0 0.0
  %1395 = vmatprep.subr.mxu0 0.0
  %1396 = vmatpush2.xpose.msra.mxu0 0.0
  %1397 = vmatprep.subr.mxu0 0.0
  %1398 = vmatpush2.xpose.msra.mxu0 0.0
  %1399 = vmatprep.subr.mxu0 0.0
  %1400 = vmatpush2.xpose.msra.mxu0 0.0
  %1401 = vmatprep.subr.mxu0 0.0
  %1402 = vmatpush2.xpose.msra.mxu0 0.0
  %1403 = vmatprep.subr.mxu0 0.0
  %1404 = vmatpush2.xpose.msra.mxu0 0.0
  %1405 = vmatprep.subr.mxu0 0.0
  %1406 = vmatpush2.xpose.msra.mxu0 0.0
  %1407 = vmatprep.mubr.f32.mxu0 0.0
  %1408 = vmatmul.mubr.f32.gmra.mxu0 %v1335
  %v1409 = vpop.f32.mrf.mxu0
  %v1410 = vadd.f32 0.0, %v1409
  %v1411 = vpop.f32.mrf.mxu0
  %1412 = vmatprep.mubr.f32.mxu0 0.0
  %1413 = vmatmul.mubr.f32.gmra.mxu0 %v1337
  %v1414 = vpop.f32.mrf.mxu0
  %v1415 = vadd.f32 0.0, %v1414
  %v1416 = vpop.f32.mrf.mxu0
  %1417 = vdwg.mxu0
  %1418 = vrot.lane.b32.xlu0 %v329, 112
  %v1419 = vpop.permute.xlu0 %1418
  %1420 = vrot.lane.b32.xlu0 %v330, 112
  %v1421 = vpop.permute.xlu0 %1420
  %1422 = vrot.lane.b32.xlu0 %v319, 80
  %v1423 = vpop.permute.xlu0 %1422
  %1424 = vrot.lane.b32.xlu0 %v324, 80
  %v1425 = vpop.permute.xlu0 %1424
  %v1426 = vsel %vm337, %v1419, 0
  %v1428 = vsel %vm337, %v1421, 0
  %v1430 = vsel %vm337, %v1423, 0
  %v1432 = vsel %vm337, %v1425, 0
  %1434 = vmatprep.subr.mxu0 0.0
  %1435 = vmatpush1.xpose.msra.mxu0 0.0
  %1436 = vmatprep.subr.mxu0 0.0
  %1437 = vmatpush1.xpose.msra.mxu0 0.0
  %1438 = vmatprep.subr.mxu0 0.0
  %1439 = vmatpush1.xpose.msra.mxu0 0.0
  %1440 = vmatprep.subr.mxu0 0.0
  %1441 = vmatpush1.xpose.msra.mxu0 0.0
  %1442 = vmatprep.subr.mxu0 0.0
  %1443 = vmatpush1.xpose.msra.mxu0 0.0
  %1444 = vmatprep.subr.mxu0 0.0
  %1445 = vmatpush1.xpose.msra.mxu0 0.0
  %1446 = vmatprep.subr.mxu0 0.0
  %1447 = vmatpush1.xpose.msra.mxu0 0.0
  %1448 = vmatprep.subr.mxu0 0.0
  %1449 = vmatpush1.xpose.msra.mxu0 0.0
  %1450 = vmatprep.subr.mxu0 0.0
  %1451 = vmatpush1.xpose.msra.mxu0 0.0
  %1452 = vmatprep.subr.mxu0 0.0
  %1453 = vmatpush1.xpose.msra.mxu0 0.0
  %1454 = vmatprep.subr.mxu0 0.0
  %1455 = vmatpush1.xpose.msra.mxu0 0.0
  %1456 = vmatprep.subr.mxu0 0.0
  %1457 = vmatpush1.xpose.msra.mxu0 0.0
  %1458 = vmatprep.subr.mxu0 0.0
  %1459 = vmatpush1.xpose.msra.mxu0 0.0
  %1460 = vmatprep.subr.mxu0 0.0
  %1461 = vmatpush1.xpose.msra.mxu0 0.0
  %1462 = vmatprep.subr.mxu0 0.0
  %1463 = vmatpush1.xpose.msra.mxu0 %v1432
  %1464 = vmatprep.subr.mxu0 0.0
  %1465 = vmatpush1.xpose.msra.mxu0 %v1430
  %1466 = vmatprep.subr.mxu0 0.0
  %1467 = vmatpush2.xpose.msra.mxu0 0.0
  %1468 = vmatprep.subr.mxu0 0.0
  %1469 = vmatpush2.xpose.msra.mxu0 0.0
  %1470 = vmatprep.subr.mxu0 0.0
  %1471 = vmatpush2.xpose.msra.mxu0 0.0
  %1472 = vmatprep.subr.mxu0 0.0
  %1473 = vmatpush2.xpose.msra.mxu0 0.0
  %1474 = vmatprep.subr.mxu0 0.0
  %1475 = vmatpush2.xpose.msra.mxu0 0.0
  %1476 = vmatprep.subr.mxu0 0.0
  %1477 = vmatpush2.xpose.msra.mxu0 0.0
  %1478 = vmatprep.subr.mxu0 0.0
  %1479 = vmatpush2.xpose.msra.mxu0 0.0
  %1480 = vmatprep.subr.mxu0 0.0
  %1481 = vmatpush2.xpose.msra.mxu0 0.0
  %1482 = vmatprep.subr.mxu0 0.0
  %1483 = vmatpush2.xpose.msra.mxu0 0.0
  %1484 = vmatprep.subr.mxu0 0.0
  %1485 = vmatpush2.xpose.msra.mxu0 0.0
  %1486 = vmatprep.subr.mxu0 0.0
  %1487 = vmatpush2.xpose.msra.mxu0 0.0
  %1488 = vmatprep.subr.mxu0 0.0
  %1489 = vmatpush2.xpose.msra.mxu0 0.0
  %1490 = vmatprep.subr.mxu0 0.0
  %1491 = vmatpush2.xpose.msra.mxu0 0.0
  %1492 = vmatprep.subr.mxu0 0.0
  %1493 = vmatpush2.xpose.msra.mxu0 0.0
  %1494 = vmatprep.subr.mxu0 0.0
  %1495 = vmatpush2.xpose.msra.mxu0 0.0
  %1496 = vmatprep.subr.mxu0 0.0
  %1497 = vmatpush2.xpose.msra.mxu0 0.0
  %1498 = vmatprep.mubr.f32.mxu0 0.0
  %1499 = vmatmul.mubr.f32.gmra.mxu0 %v1426
  %v1500 = vpop.f32.mrf.mxu0
  %v1501 = vadd.f32 0.0, %v1500
  %v1502 = vpop.f32.mrf.mxu0
  %1503 = vmatprep.mubr.f32.mxu0 0.0
  %1504 = vmatmul.mubr.f32.gmra.mxu0 %v1428
  %v1505 = vpop.f32.mrf.mxu0
  %v1506 = vadd.f32 0.0, %v1505
  %v1507 = vpop.f32.mrf.mxu0
  %1508 = vdwg.mxu0
  %v1509 = vsel %vm514, %v1410, -inf
  %1510 = vmax.xlane.f32.xlu0 %v1509
  %v1511 = vpop.xlane.xlu0 %1510
  %v1512 = vsel %vm514, %v1415, -inf
  %1513 = vmax.xlane.f32.xlu0 %v1512
  %v1514 = vpop.xlane.xlu0 %1513
  %v1515 = vsel %vm514, %v1501, -inf
  %1516 = vmax.xlane.f32.xlu0 %v1515
  %v1517 = vpop.xlane.xlu0 %1516
  %v1518 = vsel %vm514, %v1506, -inf
  %1519 = vmax.xlane.f32.xlu0 %v1518
  %v1520 = vpop.xlane.xlu0 %1519
  %v1521 = vsub.f32 %v1410, %v1511
  %v1522 = vsub.f32 %v1415, %v1514
  %v1523 = vsub.f32 %v1501, %v1517
  %v1524 = vsub.f32 %v1506, %v1520
  %v1525 = vmul.f32 %v1521, 1.442695
  %v1526 = vpow.pop %v1525
  %v1527 = vmul.f32 %v1522, 1.442695
  %v1528 = vpow.pop %v1527
  %v1529 = vmul.f32 %v1523, 1.442695
  %v1530 = vpow.pop %v1529
  %v1531 = vmul.f32 %v1524, 1.442695
  %v1532 = vpow.pop %v1531
  %v1533 = vsel %vm514, %v1526, 0.0
  %1534 = vadd.xlane.f32.xlu0 %v1533
  %v1535 = vpop.xlane.xlu0 %1534
  %v1536 = vsel %vm514, %v1528, 0.0
  %1537 = vadd.xlane.f32.xlu0 %v1536
  %v1538 = vpop.xlane.xlu0 %1537
  %v1539 = vsel %vm514, %v1530, 0.0
  %1540 = vadd.xlane.f32.xlu0 %v1539
  %v1541 = vpop.xlane.xlu0 %1540
  %v1542 = vsel %vm514, %v1532, 0.0
  %1543 = vadd.xlane.f32.xlu0 %v1542
  %v1544 = vpop.xlane.xlu0 %1543
  %v1545 = vrcp.pop %v1535
  %v1546 = vrcp.pop %v1538
  %v1547 = vrcp.pop %v1541
  %v1548 = vrcp.pop %v1544
  %v1549 = vmul.f32 %v1526, %v1545
  %v1550 = vmul.f32 %v1528, %v1546
  %v1551 = vmul.f32 %v1530, %v1547
  %v1552 = vmul.f32 %v1532, %v1548
  %1553 = vrot.lane.b32.xlu0 %v309, 48
  %v1554 = vpop.permute.xlu0 %1553
  %1555 = vrot.lane.b32.xlu0 %v314, 48
  %v1556 = vpop.permute.xlu0 %1555
  %v1560 = vsel %vm514, %v1549, 0
  %v1563 = vsel %vm514, %v1550, 0
  %1565 = vmatprep.subr.mxu0 0.0
  %1566 = vmatpush1.msra.mxu0 0.0
  %1567 = vmatprep.subr.mxu0 0.0
  %1568 = vmatpush1.msra.mxu0 0.0
  %1569 = vmatprep.subr.mxu0 0.0
  %1570 = vmatpush1.msra.mxu0 0.0
  %1571 = vmatprep.subr.mxu0 0.0
  %1572 = vmatpush1.msra.mxu0 0.0
  %1573 = vmatprep.subr.mxu0 0.0
  %1574 = vmatpush1.msra.mxu0 0.0
  %1575 = vmatprep.subr.mxu0 0.0
  %1576 = vmatpush1.msra.mxu0 0.0
  %1577 = vmatprep.subr.mxu0 0.0
  %1578 = vmatpush1.msra.mxu0 0.0
  %1579 = vmatprep.subr.mxu0 0.0
  %1580 = vmatpush1.msra.mxu0 0.0
  %1581 = vmatprep.subr.mxu0 0.0
  %1582 = vmatpush1.msra.mxu0 0.0
  %1583 = vmatprep.subr.mxu0 0.0
  %1584 = vmatpush1.msra.mxu0 0.0
  %1585 = vmatprep.subr.mxu0 0.0
  %1586 = vmatpush1.msra.mxu0 0.0
  %1587 = vmatprep.subr.mxu0 0.0
  %1588 = vmatpush1.msra.mxu0 0.0
  %1589 = vmatprep.subr.mxu0 0.0
  %1590 = vmatpush1.msra.mxu0 0.0
  %1591 = vmatprep.subr.mxu0 0.0
  %1592 = vmatpush1.msra.mxu0 0.0
  %1593 = vmatprep.subr.mxu0 0.0
  %1594 = vmatpush1.msra.mxu0 %v1556
  %1595 = vmatprep.subr.mxu0 0.0
  %1596 = vmatpush1.msra.mxu0 %v1554
  %1597 = vmatprep.subr.mxu0 0.0
  %1598 = vmatpush2.msra.mxu0 0.0
  %1599 = vmatprep.subr.mxu0 0.0
  %1600 = vmatpush2.msra.mxu0 0.0
  %1601 = vmatprep.subr.mxu0 0.0
  %1602 = vmatpush2.msra.mxu0 0.0
  %1603 = vmatprep.subr.mxu0 0.0
  %1604 = vmatpush2.msra.mxu0 0.0
  %1605 = vmatprep.subr.mxu0 0.0
  %1606 = vmatpush2.msra.mxu0 0.0
  %1607 = vmatprep.subr.mxu0 0.0
  %1608 = vmatpush2.msra.mxu0 0.0
  %1609 = vmatprep.subr.mxu0 0.0
  %1610 = vmatpush2.msra.mxu0 0.0
  %1611 = vmatprep.subr.mxu0 0.0
  %1612 = vmatpush2.msra.mxu0 0.0
  %1613 = vmatprep.subr.mxu0 0.0
  %1614 = vmatpush2.msra.mxu0 0.0
  %1615 = vmatprep.subr.mxu0 0.0
  %1616 = vmatpush2.msra.mxu0 0.0
  %1617 = vmatprep.subr.mxu0 0.0
  %1618 = vmatpush2.msra.mxu0 0.0
  %1619 = vmatprep.subr.mxu0 0.0
  %1620 = vmatpush2.msra.mxu0 0.0
  %1621 = vmatprep.subr.mxu0 0.0
  %1622 = vmatpush2.msra.mxu0 0.0
  %1623 = vmatprep.subr.mxu0 0.0
  %1624 = vmatpush2.msra.mxu0 0.0
  %1625 = vmatprep.subr.mxu0 0.0
  %1626 = vmatpush2.msra.mxu0 0.0
  %1627 = vmatprep.subr.mxu0 0.0
  %1628 = vmatpush2.msra.mxu0 0.0
  %1629 = vmatprep.mubr.f32.mxu0 0.0
  %1630 = vmatmul.mubr.f32.gmra.mxu0 %v1560
  %v1631 = vpop.f32.mrf.mxu0
  %v1632 = vadd.f32 0.0, %v1631
  %v1633 = vpop.f32.mrf.mxu0
  %1634 = vmatprep.mubr.f32.mxu0 0.0
  %1635 = vmatmul.mubr.f32.gmra.mxu0 %v1563
  %v1636 = vpop.f32.mrf.mxu0
  %v1637 = vadd.f32 0.0, %v1636
  %v1638 = vpop.f32.mrf.mxu0
  %1639 = vdwg.mxu0
  %1640 = vrot.lane.b32.xlu0 %v319, 48
  %v1641 = vpop.permute.xlu0 %1640
  %1642 = vrot.lane.b32.xlu0 %v324, 48
  %v1643 = vpop.permute.xlu0 %1642
  %v1647 = vsel %vm514, %v1551, 0
  %v1650 = vsel %vm514, %v1552, 0
  %1652 = vmatprep.subr.mxu0 0.0
  %1653 = vmatpush1.msra.mxu0 0.0
  %1654 = vmatprep.subr.mxu0 0.0
  %1655 = vmatpush1.msra.mxu0 0.0
  %1656 = vmatprep.subr.mxu0 0.0
  %1657 = vmatpush1.msra.mxu0 0.0
  %1658 = vmatprep.subr.mxu0 0.0
  %1659 = vmatpush1.msra.mxu0 0.0
  %1660 = vmatprep.subr.mxu0 0.0
  %1661 = vmatpush1.msra.mxu0 0.0
  %1662 = vmatprep.subr.mxu0 0.0
  %1663 = vmatpush1.msra.mxu0 0.0
  %1664 = vmatprep.subr.mxu0 0.0
  %1665 = vmatpush1.msra.mxu0 0.0
  %1666 = vmatprep.subr.mxu0 0.0
  %1667 = vmatpush1.msra.mxu0 0.0
  %1668 = vmatprep.subr.mxu0 0.0
  %1669 = vmatpush1.msra.mxu0 0.0
  %1670 = vmatprep.subr.mxu0 0.0
  %1671 = vmatpush1.msra.mxu0 0.0
  %1672 = vmatprep.subr.mxu0 0.0
  %1673 = vmatpush1.msra.mxu0 0.0
  %1674 = vmatprep.subr.mxu0 0.0
  %1675 = vmatpush1.msra.mxu0 0.0
  %1676 = vmatprep.subr.mxu0 0.0
  %1677 = vmatpush1.msra.mxu0 0.0
  %1678 = vmatprep.subr.mxu0 0.0
  %1679 = vmatpush1.msra.mxu0 0.0
  %1680 = vmatprep.subr.mxu0 0.0
  %1681 = vmatpush1.msra.mxu0 %v1643
  %1682 = vmatprep.subr.mxu0 0.0
  %1683 = vmatpush1.msra.mxu0 %v1641
  %1684 = vmatprep.subr.mxu0 0.0
  %1685 = vmatpush2.msra.mxu0 0.0
  %1686 = vmatprep.subr.mxu0 0.0
  %1687 = vmatpush2.msra.mxu0 0.0
  %1688 = vmatprep.subr.mxu0 0.0
  %1689 = vmatpush2.msra.mxu0 0.0
  %1690 = vmatprep.subr.mxu0 0.0
  %1691 = vmatpush2.msra.mxu0 0.0
  %1692 = vmatprep.subr.mxu0 0.0
  %1693 = vmatpush2.msra.mxu0 0.0
  %1694 = vmatprep.subr.mxu0 0.0
  %1695 = vmatpush2.msra.mxu0 0.0
  %1696 = vmatprep.subr.mxu0 0.0
  %1697 = vmatpush2.msra.mxu0 0.0
  %1698 = vmatprep.subr.mxu0 0.0
  %1699 = vmatpush2.msra.mxu0 0.0
  %1700 = vmatprep.subr.mxu0 0.0
  %1701 = vmatpush2.msra.mxu0 0.0
  %1702 = vmatprep.subr.mxu0 0.0
  %1703 = vmatpush2.msra.mxu0 0.0
  %1704 = vmatprep.subr.mxu0 0.0
  %1705 = vmatpush2.msra.mxu0 0.0
  %1706 = vmatprep.subr.mxu0 0.0
  %1707 = vmatpush2.msra.mxu0 0.0
  %1708 = vmatprep.subr.mxu0 0.0
  %1709 = vmatpush2.msra.mxu0 0.0
  %1710 = vmatprep.subr.mxu0 0.0
  %1711 = vmatpush2.msra.mxu0 0.0
  %1712 = vmatprep.subr.mxu0 0.0
  %1713 = vmatpush2.msra.mxu0 0.0
  %1714 = vmatprep.subr.mxu0 0.0
  %1715 = vmatpush2.msra.mxu0 0.0
  %1716 = vmatprep.mubr.f32.mxu0 0.0
  %1717 = vmatmul.mubr.f32.gmra.mxu0 %v1647
  %v1718 = vpop.f32.mrf.mxu0
  %v1719 = vadd.f32 0.0, %v1718
  %v1720 = vpop.f32.mrf.mxu0
  %1721 = vmatprep.mubr.f32.mxu0 0.0
  %1722 = vmatmul.mubr.f32.gmra.mxu0 %v1650
  %v1723 = vpop.f32.mrf.mxu0
  %v1724 = vadd.f32 0.0, %v1723
  %v1725 = vpop.f32.mrf.mxu0
  %1726 = vdwg.mxu0
  %v1728 = vsel %vm337, %v1632, 0
  %v1731 = vsel %vm337, %v1637, 0
  %v1734 = vsel %vm337, %v1719, 0
  %v1737 = vsel %vm337, %v1724, 0
  %1739 = vmatprep.subr.mxu0 0.0
  %1740 = vmatpush1.msra.mxu0 0.0
  %1741 = vmatprep.subr.mxu0 0.0
  %1742 = vmatpush1.msra.mxu0 0.0
  %1743 = vmatprep.subr.mxu0 0.0
  %1744 = vmatpush1.msra.mxu0 0.0
  %1745 = vmatprep.subr.mxu0 0.0
  %1746 = vmatpush1.msra.mxu0 0.0
  %1747 = vmatprep.subr.mxu0 0.0
  %1748 = vmatpush1.msra.mxu0 0.0
  %1749 = vmatprep.subr.mxu0 0.0
  %1750 = vmatpush1.msra.mxu0 0.0
  %1751 = vmatprep.subr.mxu0 0.0
  %1752 = vmatpush1.msra.mxu0 0.0
  %1753 = vmatprep.subr.mxu0 0.0
  %1754 = vmatpush1.msra.mxu0 0.0
  %1755 = vmatprep.subr.mxu0 0.0
  %1756 = vmatpush1.msra.mxu0 0.0
  %1757 = vmatprep.subr.mxu0 0.0
  %1758 = vmatpush1.msra.mxu0 0.0
  %1759 = vmatprep.subr.mxu0 0.0
  %1760 = vmatpush1.msra.mxu0 0.0
  %1761 = vmatprep.subr.mxu0 0.0
  %1762 = vmatpush1.msra.mxu0 0.0
  %1763 = vmatprep.subr.mxu0 0.0
  %1764 = vmatpush1.msra.mxu0 0.0
  %1765 = vmatprep.subr.mxu0 0.0
  %1766 = vmatpush1.msra.mxu0 0.0
  %1767 = vmatprep.subr.mxu0 0.0
  %1768 = vmatpush1.msra.mxu0 0.0
  %1769 = vmatprep.subr.mxu0 0.0
  %1770 = vmatpush1.msra.mxu0 %v148
  %1771 = vmatprep.subr.mxu0 0.0
  %1772 = vmatpush2.msra.mxu0 0.0
  %1773 = vmatprep.subr.mxu0 0.0
  %1774 = vmatpush2.msra.mxu0 0.0
  %1775 = vmatprep.subr.mxu0 0.0
  %1776 = vmatpush2.msra.mxu0 0.0
  %1777 = vmatprep.subr.mxu0 0.0
  %1778 = vmatpush2.msra.mxu0 0.0
  %1779 = vmatprep.subr.mxu0 0.0
  %1780 = vmatpush2.msra.mxu0 0.0
  %1781 = vmatprep.subr.mxu0 0.0
  %1782 = vmatpush2.msra.mxu0 0.0
  %1783 = vmatprep.subr.mxu0 0.0
  %1784 = vmatpush2.msra.mxu0 0.0
  %1785 = vmatprep.subr.mxu0 0.0
  %1786 = vmatpush2.msra.mxu0 0.0
  %1787 = vmatprep.subr.mxu0 0.0
  %1788 = vmatpush2.msra.mxu0 0.0
  %1789 = vmatprep.subr.mxu0 0.0
  %1790 = vmatpush2.msra.mxu0 0.0
  %1791 = vmatprep.subr.mxu0 0.0
  %1792 = vmatpush2.msra.mxu0 0.0
  %1793 = vmatprep.subr.mxu0 0.0
  %1794 = vmatpush2.msra.mxu0 0.0
  %1795 = vmatprep.subr.mxu0 0.0
  %1796 = vmatpush2.msra.mxu0 0.0
  %1797 = vmatprep.subr.mxu0 0.0
  %1798 = vmatpush2.msra.mxu0 0.0
  %1799 = vmatprep.subr.mxu0 0.0
  %1800 = vmatpush2.msra.mxu0 0.0
  %1801 = vmatprep.subr.mxu0 0.0
  %1802 = vmatpush2.msra.mxu0 0.0
  %1803 = vmatprep.mubr.f32.mxu0 0.0
  %1804 = vmatmul.mubr.f32.gmra.mxu0 %v1728
  %v1805 = vpop.f32.mrf.mxu0
  %v1806 = vadd.f32 0.0, %v1805
  %v1807 = vpop.f32.mrf.mxu0
  %1808 = vmatprep.mubr.f32.mxu0 0.0
  %1809 = vmatmul.mubr.f32.gmra.mxu0 %v1731
  %v1810 = vpop.f32.mrf.mxu0
  %v1811 = vadd.f32 0.0, %v1810
  %v1812 = vpop.f32.mrf.mxu0
  %1813 = vmatprep.mubr.f32.mxu0 0.0
  %1814 = vmatmul.mubr.f32.gmra.mxu0 %v1734
  %v1815 = vpop.f32.mrf.mxu0
  %v1816 = vadd.f32 0.0, %v1815
  %v1817 = vpop.f32.mrf.mxu0
  %1818 = vmatprep.mubr.f32.mxu0 0.0
  %1819 = vmatmul.mubr.f32.gmra.mxu0 %v1737
  %v1820 = vpop.f32.mrf.mxu0
  %v1821 = vadd.f32 0.0, %v1820
  %v1822 = vpop.f32.mrf.mxu0
  %1823 = vdwg.mxu0
  %v1824 = vadd.f32 %v1309, %v1806
  %v1825 = vadd.f32 %v1314, %v1811
  %v1826 = vadd.f32 %v1319, %v1816
  %v1827 = vadd.f32 %v1324, %v1821
  %1828 = vrot.lane.b32.xlu0 %v327, 104
  %v1829 = vpop.permute.xlu0 %1828
  %1830 = vrot.lane.b32.xlu0 %v328, 104
  %v1831 = vpop.permute.xlu0 %1830
  %1832 = vrot.lane.b32.xlu0 %v309, 72
  %v1833 = vpop.permute.xlu0 %1832
  %1834 = vrot.lane.b32.xlu0 %v314, 72
  %v1835 = vpop.permute.xlu0 %1834
  %v1836 = vsel %vm337, %v1829, 0
  %v1838 = vsel %vm337, %v1831, 0
  %v1840 = vsel %vm337, %v1833, 0
  %v1842 = vsel %vm337, %v1835, 0
  %1844 = vmatprep.subr.mxu0 0.0
  %1845 = vmatpush1.xpose.msra.mxu0 0.0
  %1846 = vmatprep.subr.mxu0 0.0
  %1847 = vmatpush1.xpose.msra.mxu0 0.0
  %1848 = vmatprep.subr.mxu0 0.0
  %1849 = vmatpush1.xpose.msra.mxu0 0.0
  %1850 = vmatprep.subr.mxu0 0.0
  %1851 = vmatpush1.xpose.msra.mxu0 0.0
  %1852 = vmatprep.subr.mxu0 0.0
  %1853 = vmatpush1.xpose.msra.mxu0 0.0
  %1854 = vmatprep.subr.mxu0 0.0
  %1855 = vmatpush1.xpose.msra.mxu0 0.0
  %1856 = vmatprep.subr.mxu0 0.0
  %1857 = vmatpush1.xpose.msra.mxu0 0.0
  %1858 = vmatprep.subr.mxu0 0.0
  %1859 = vmatpush1.xpose.msra.mxu0 0.0
  %1860 = vmatprep.subr.mxu0 0.0
  %1861 = vmatpush1.xpose.msra.mxu0 0.0
  %1862 = vmatprep.subr.mxu0 0.0
  %1863 = vmatpush1.xpose.msra.mxu0 0.0
  %1864 = vmatprep.subr.mxu0 0.0
  %1865 = vmatpush1.xpose.msra.mxu0 0.0
  %1866 = vmatprep.subr.mxu0 0.0
  %1867 = vmatpush1.xpose.msra.mxu0 0.0
  %1868 = vmatprep.subr.mxu0 0.0
  %1869 = vmatpush1.xpose.msra.mxu0 0.0
  %1870 = vmatprep.subr.mxu0 0.0
  %1871 = vmatpush1.xpose.msra.mxu0 0.0
  %1872 = vmatprep.subr.mxu0 0.0
  %1873 = vmatpush1.xpose.msra.mxu0 %v1842
  %1874 = vmatprep.subr.mxu0 0.0
  %1875 = vmatpush1.xpose.msra.mxu0 %v1840
  %1876 = vmatprep.subr.mxu0 0.0
  %1877 = vmatpush2.xpose.msra.mxu0 0.0
  %1878 = vmatprep.subr.mxu0 0.0
  %1879 = vmatpush2.xpose.msra.mxu0 0.0
  %1880 = vmatprep.subr.mxu0 0.0
  %1881 = vmatpush2.xpose.msra.mxu0 0.0
  %1882 = vmatprep.subr.mxu0 0.0
  %1883 = vmatpush2.xpose.msra.mxu0 0.0
  %1884 = vmatprep.subr.mxu0 0.0
  %1885 = vmatpush2.xpose.msra.mxu0 0.0
  %1886 = vmatprep.subr.mxu0 0.0
  %1887 = vmatpush2.xpose.msra.mxu0 0.0
  %1888 = vmatprep.subr.mxu0 0.0
  %1889 = vmatpush2.xpose.msra.mxu0 0.0
  %1890 = vmatprep.subr.mxu0 0.0
  %1891 = vmatpush2.xpose.msra.mxu0 0.0
  %1892 = vmatprep.subr.mxu0 0.0
  %1893 = vmatpush2.xpose.msra.mxu0 0.0
  %1894 = vmatprep.subr.mxu0 0.0
  %1895 = vmatpush2.xpose.msra.mxu0 0.0
  %1896 = vmatprep.subr.mxu0 0.0
  %1897 = vmatpush2.xpose.msra.mxu0 0.0
  %1898 = vmatprep.subr.mxu0 0.0
  %1899 = vmatpush2.xpose.msra.mxu0 0.0
  %1900 = vmatprep.subr.mxu0 0.0
  %1901 = vmatpush2.xpose.msra.mxu0 0.0
  %1902 = vmatprep.subr.mxu0 0.0
  %1903 = vmatpush2.xpose.msra.mxu0 0.0
  %1904 = vmatprep.subr.mxu0 0.0
  %1905 = vmatpush2.xpose.msra.mxu0 0.0
  %1906 = vmatprep.subr.mxu0 0.0
  %1907 = vmatpush2.xpose.msra.mxu0 0.0
  %1908 = vmatprep.mubr.f32.mxu0 0.0
  %1909 = vmatmul.mubr.f32.gmra.mxu0 %v1836
  %v1910 = vpop.f32.mrf.mxu0
  %v1911 = vadd.f32 0.0, %v1910
  %v1912 = vpop.f32.mrf.mxu0
  %1913 = vmatprep.mubr.f32.mxu0 0.0
  %1914 = vmatmul.mubr.f32.gmra.mxu0 %v1838
  %v1915 = vpop.f32.mrf.mxu0
  %v1916 = vadd.f32 0.0, %v1915
  %v1917 = vpop.f32.mrf.mxu0
  %1918 = vdwg.mxu0
  %1919 = vrot.lane.b32.xlu0 %v329, 104
  %v1920 = vpop.permute.xlu0 %1919
  %1921 = vrot.lane.b32.xlu0 %v330, 104
  %v1922 = vpop.permute.xlu0 %1921
  %1923 = vrot.lane.b32.xlu0 %v319, 72
  %v1924 = vpop.permute.xlu0 %1923
  %1925 = vrot.lane.b32.xlu0 %v324, 72
  %v1926 = vpop.permute.xlu0 %1925
  %v1927 = vsel %vm337, %v1920, 0
  %v1929 = vsel %vm337, %v1922, 0
  %v1931 = vsel %vm337, %v1924, 0
  %v1933 = vsel %vm337, %v1926, 0
  %1935 = vmatprep.subr.mxu0 0.0
  %1936 = vmatpush1.xpose.msra.mxu0 0.0
  %1937 = vmatprep.subr.mxu0 0.0
  %1938 = vmatpush1.xpose.msra.mxu0 0.0
  %1939 = vmatprep.subr.mxu0 0.0
  %1940 = vmatpush1.xpose.msra.mxu0 0.0
  %1941 = vmatprep.subr.mxu0 0.0
  %1942 = vmatpush1.xpose.msra.mxu0 0.0
  %1943 = vmatprep.subr.mxu0 0.0
  %1944 = vmatpush1.xpose.msra.mxu0 0.0
  %1945 = vmatprep.subr.mxu0 0.0
  %1946 = vmatpush1.xpose.msra.mxu0 0.0
  %1947 = vmatprep.subr.mxu0 0.0
  %1948 = vmatpush1.xpose.msra.mxu0 0.0
  %1949 = vmatprep.subr.mxu0 0.0
  %1950 = vmatpush1.xpose.msra.mxu0 0.0
  %1951 = vmatprep.subr.mxu0 0.0
  %1952 = vmatpush1.xpose.msra.mxu0 0.0
  %1953 = vmatprep.subr.mxu0 0.0
  %1954 = vmatpush1.xpose.msra.mxu0 0.0
  %1955 = vmatprep.subr.mxu0 0.0
  %1956 = vmatpush1.xpose.msra.mxu0 0.0
  %1957 = vmatprep.subr.mxu0 0.0
  %1958 = vmatpush1.xpose.msra.mxu0 0.0
  %1959 = vmatprep.subr.mxu0 0.0
  %1960 = vmatpush1.xpose.msra.mxu0 0.0
  %1961 = vmatprep.subr.mxu0 0.0
  %1962 = vmatpush1.xpose.msra.mxu0 0.0
  %1963 = vmatprep.subr.mxu0 0.0
  %1964 = vmatpush1.xpose.msra.mxu0 %v1933
  %1965 = vmatprep.subr.mxu0 0.0
  %1966 = vmatpush1.xpose.msra.mxu0 %v1931
  %1967 = vmatprep.subr.mxu0 0.0
  %1968 = vmatpush2.xpose.msra.mxu0 0.0
  %1969 = vmatprep.subr.mxu0 0.0
  %1970 = vmatpush2.xpose.msra.mxu0 0.0
  %1971 = vmatprep.subr.mxu0 0.0
  %1972 = vmatpush2.xpose.msra.mxu0 0.0
  %1973 = vmatprep.subr.mxu0 0.0
  %1974 = vmatpush2.xpose.msra.mxu0 0.0
  %1975 = vmatprep.subr.mxu0 0.0
  %1976 = vmatpush2.xpose.msra.mxu0 0.0
  %1977 = vmatprep.subr.mxu0 0.0
  %1978 = vmatpush2.xpose.msra.mxu0 0.0
  %1979 = vmatprep.subr.mxu0 0.0
  %1980 = vmatpush2.xpose.msra.mxu0 0.0
  %1981 = vmatprep.subr.mxu0 0.0
  %1982 = vmatpush2.xpose.msra.mxu0 0.0
  %1983 = vmatprep.subr.mxu0 0.0
  %1984 = vmatpush2.xpose.msra.mxu0 0.0
  %1985 = vmatprep.subr.mxu0 0.0
  %1986 = vmatpush2.xpose.msra.mxu0 0.0
  %1987 = vmatprep.subr.mxu0 0.0
  %1988 = vmatpush2.xpose.msra.mxu0 0.0
  %1989 = vmatprep.subr.mxu0 0.0
  %1990 = vmatpush2.xpose.msra.mxu0 0.0
  %1991 = vmatprep.subr.mxu0 0.0
  %1992 = vmatpush2.xpose.msra.mxu0 0.0
  %1993 = vmatprep.subr.mxu0 0.0
  %1994 = vmatpush2.xpose.msra.mxu0 0.0
  %1995 = vmatprep.subr.mxu0 0.0
  %1996 = vmatpush2.xpose.msra.mxu0 0.0
  %1997 = vmatprep.subr.mxu0 0.0
  %1998 = vmatpush2.xpose.msra.mxu0 0.0
  %1999 = vmatprep.mubr.f32.mxu0 0.0
  %2000 = vmatmul.mubr.f32.gmra.mxu0 %v1927
  %v2001 = vpop.f32.mrf.mxu0
  %v2002 = vadd.f32 0.0, %v2001
  %v2003 = vpop.f32.mrf.mxu0
  %2004 = vmatprep.mubr.f32.mxu0 0.0
  %2005 = vmatmul.mubr.f32.gmra.mxu0 %v1929
  %v2006 = vpop.f32.mrf.mxu0
  %v2007 = vadd.f32 0.0, %v2006
  %v2008 = vpop.f32.mrf.mxu0
  %2009 = vdwg.mxu0
  %v2010 = vsel %vm514, %v1911, -inf
  %2011 = vmax.xlane.f32.xlu0 %v2010
  %v2012 = vpop.xlane.xlu0 %2011
  %v2013 = vsel %vm514, %v1916, -inf
  %2014 = vmax.xlane.f32.xlu0 %v2013
  %v2015 = vpop.xlane.xlu0 %2014
  %v2016 = vsel %vm514, %v2002, -inf
  %2017 = vmax.xlane.f32.xlu0 %v2016
  %v2018 = vpop.xlane.xlu0 %2017
  %v2019 = vsel %vm514, %v2007, -inf
  %2020 = vmax.xlane.f32.xlu0 %v2019
  %v2021 = vpop.xlane.xlu0 %2020
  %v2022 = vsub.f32 %v1911, %v2012
  %v2023 = vsub.f32 %v1916, %v2015
  %v2024 = vsub.f32 %v2002, %v2018
  %v2025 = vsub.f32 %v2007, %v2021
  %v2026 = vmul.f32 %v2022, 1.442695
  %v2027 = vpow.pop %v2026
  %v2028 = vmul.f32 %v2023, 1.442695
  %v2029 = vpow.pop %v2028
  %v2030 = vmul.f32 %v2024, 1.442695
  %v2031 = vpow.pop %v2030
  %v2032 = vmul.f32 %v2025, 1.442695
  %v2033 = vpow.pop %v2032
  %v2034 = vsel %vm514, %v2027, 0.0
  %2035 = vadd.xlane.f32.xlu0 %v2034
  %v2036 = vpop.xlane.xlu0 %2035
  %v2037 = vsel %vm514, %v2029, 0.0
  %2038 = vadd.xlane.f32.xlu0 %v2037
  %v2039 = vpop.xlane.xlu0 %2038
  %v2040 = vsel %vm514, %v2031, 0.0
  %2041 = vadd.xlane.f32.xlu0 %v2040
  %v2042 = vpop.xlane.xlu0 %2041
  %v2043 = vsel %vm514, %v2033, 0.0
  %2044 = vadd.xlane.f32.xlu0 %v2043
  %v2045 = vpop.xlane.xlu0 %2044
  %v2046 = vrcp.pop %v2036
  %v2047 = vrcp.pop %v2039
  %v2048 = vrcp.pop %v2042
  %v2049 = vrcp.pop %v2045
  %v2050 = vmul.f32 %v2027, %v2046
  %v2051 = vmul.f32 %v2029, %v2047
  %v2052 = vmul.f32 %v2031, %v2048
  %v2053 = vmul.f32 %v2033, %v2049
  %2054 = vrot.lane.b32.xlu0 %v309, 40
  %v2055 = vpop.permute.xlu0 %2054
  %2056 = vrot.lane.b32.xlu0 %v314, 40
  %v2057 = vpop.permute.xlu0 %2056
  %v2061 = vsel %vm514, %v2050, 0
  %v2064 = vsel %vm514, %v2051, 0
  %2066 = vmatprep.subr.mxu0 0.0
  %2067 = vmatpush1.msra.mxu0 0.0
  %2068 = vmatprep.subr.mxu0 0.0
  %2069 = vmatpush1.msra.mxu0 0.0
  %2070 = vmatprep.subr.mxu0 0.0
  %2071 = vmatpush1.msra.mxu0 0.0
  %2072 = vmatprep.subr.mxu0 0.0
  %2073 = vmatpush1.msra.mxu0 0.0
  %2074 = vmatprep.subr.mxu0 0.0
  %2075 = vmatpush1.msra.mxu0 0.0
  %2076 = vmatprep.subr.mxu0 0.0
  %2077 = vmatpush1.msra.mxu0 0.0
  %2078 = vmatprep.subr.mxu0 0.0
  %2079 = vmatpush1.msra.mxu0 0.0
  %2080 = vmatprep.subr.mxu0 0.0
  %2081 = vmatpush1.msra.mxu0 0.0
  %2082 = vmatprep.subr.mxu0 0.0
  %2083 = vmatpush1.msra.mxu0 0.0
  %2084 = vmatprep.subr.mxu0 0.0
  %2085 = vmatpush1.msra.mxu0 0.0
  %2086 = vmatprep.subr.mxu0 0.0
  %2087 = vmatpush1.msra.mxu0 0.0
  %2088 = vmatprep.subr.mxu0 0.0
  %2089 = vmatpush1.msra.mxu0 0.0
  %2090 = vmatprep.subr.mxu0 0.0
  %2091 = vmatpush1.msra.mxu0 0.0
  %2092 = vmatprep.subr.mxu0 0.0
  %2093 = vmatpush1.msra.mxu0 0.0
  %2094 = vmatprep.subr.mxu0 0.0
  %2095 = vmatpush1.msra.mxu0 %v2057
  %2096 = vmatprep.subr.mxu0 0.0
  %2097 = vmatpush1.msra.mxu0 %v2055
  %2098 = vmatprep.subr.mxu0 0.0
  %2099 = vmatpush2.msra.mxu0 0.0
  %2100 = vmatprep.subr.mxu0 0.0
  %2101 = vmatpush2.msra.mxu0 0.0
  %2102 = vmatprep.subr.mxu0 0.0
  %2103 = vmatpush2.msra.mxu0 0.0
  %2104 = vmatprep.subr.mxu0 0.0
  %2105 = vmatpush2.msra.mxu0 0.0
  %2106 = vmatprep.subr.mxu0 0.0
  %2107 = vmatpush2.msra.mxu0 0.0
  %2108 = vmatprep.subr.mxu0 0.0
  %2109 = vmatpush2.msra.mxu0 0.0
  %2110 = vmatprep.subr.mxu0 0.0
  %2111 = vmatpush2.msra.mxu0 0.0
  %2112 = vmatprep.subr.mxu0 0.0
  %2113 = vmatpush2.msra.mxu0 0.0
  %2114 = vmatprep.subr.mxu0 0.0
  %2115 = vmatpush2.msra.mxu0 0.0
  %2116 = vmatprep.subr.mxu0 0.0
  %2117 = vmatpush2.msra.mxu0 0.0
  %2118 = vmatprep.subr.mxu0 0.0
  %2119 = vmatpush2.msra.mxu0 0.0
  %2120 = vmatprep.subr.mxu0 0.0
  %2121 = vmatpush2.msra.mxu0 0.0
  %2122 = vmatprep.subr.mxu0 0.0
  %2123 = vmatpush2.msra.mxu0 0.0
  %2124 = vmatprep.subr.mxu0 0.0
  %2125 = vmatpush2.msra.mxu0 0.0
  %2126 = vmatprep.subr.mxu0 0.0
  %2127 = vmatpush2.msra.mxu0 0.0
  %2128 = vmatprep.subr.mxu0 0.0
  %2129 = vmatpush2.msra.mxu0 0.0
  %2130 = vmatprep.mubr.f32.mxu0 0.0
  %2131 = vmatmul.mubr.f32.gmra.mxu0 %v2061
  %v2132 = vpop.f32.mrf.mxu0
  %v2133 = vadd.f32 0.0, %v2132
  %v2134 = vpop.f32.mrf.mxu0
  %2135 = vmatprep.mubr.f32.mxu0 0.0
  %2136 = vmatmul.mubr.f32.gmra.mxu0 %v2064
  %v2137 = vpop.f32.mrf.mxu0
  %v2138 = vadd.f32 0.0, %v2137
  %v2139 = vpop.f32.mrf.mxu0
  %2140 = vdwg.mxu0
  %2141 = vrot.lane.b32.xlu0 %v319, 40
  %v2142 = vpop.permute.xlu0 %2141
  %2143 = vrot.lane.b32.xlu0 %v324, 40
  %v2144 = vpop.permute.xlu0 %2143
  %v2148 = vsel %vm514, %v2052, 0
  %v2151 = vsel %vm514, %v2053, 0
  %2153 = vmatprep.subr.mxu0 0.0
  %2154 = vmatpush1.msra.mxu0 0.0
  %2155 = vmatprep.subr.mxu0 0.0
  %2156 = vmatpush1.msra.mxu0 0.0
  %2157 = vmatprep.subr.mxu0 0.0
  %2158 = vmatpush1.msra.mxu0 0.0
  %2159 = vmatprep.subr.mxu0 0.0
  %2160 = vmatpush1.msra.mxu0 0.0
  %2161 = vmatprep.subr.mxu0 0.0
  %2162 = vmatpush1.msra.mxu0 0.0
  %2163 = vmatprep.subr.mxu0 0.0
  %2164 = vmatpush1.msra.mxu0 0.0
  %2165 = vmatprep.subr.mxu0 0.0
  %2166 = vmatpush1.msra.mxu0 0.0
  %2167 = vmatprep.subr.mxu0 0.0
  %2168 = vmatpush1.msra.mxu0 0.0
  %2169 = vmatprep.subr.mxu0 0.0
  %2170 = vmatpush1.msra.mxu0 0.0
  %2171 = vmatprep.subr.mxu0 0.0
  %2172 = vmatpush1.msra.mxu0 0.0
  %2173 = vmatprep.subr.mxu0 0.0
  %2174 = vmatpush1.msra.mxu0 0.0
  %2175 = vmatprep.subr.mxu0 0.0
  %2176 = vmatpush1.msra.mxu0 0.0
  %2177 = vmatprep.subr.mxu0 0.0
  %2178 = vmatpush1.msra.mxu0 0.0
  %2179 = vmatprep.subr.mxu0 0.0
  %2180 = vmatpush1.msra.mxu0 0.0
  %2181 = vmatprep.subr.mxu0 0.0
  %2182 = vmatpush1.msra.mxu0 %v2144
  %2183 = vmatprep.subr.mxu0 0.0
  %2184 = vmatpush1.msra.mxu0 %v2142
  %2185 = vmatprep.subr.mxu0 0.0
  %2186 = vmatpush2.msra.mxu0 0.0
  %2187 = vmatprep.subr.mxu0 0.0
  %2188 = vmatpush2.msra.mxu0 0.0
  %2189 = vmatprep.subr.mxu0 0.0
  %2190 = vmatpush2.msra.mxu0 0.0
  %2191 = vmatprep.subr.mxu0 0.0
  %2192 = vmatpush2.msra.mxu0 0.0
  %2193 = vmatprep.subr.mxu0 0.0
  %2194 = vmatpush2.msra.mxu0 0.0
  %2195 = vmatprep.subr.mxu0 0.0
  %2196 = vmatpush2.msra.mxu0 0.0
  %2197 = vmatprep.subr.mxu0 0.0
  %2198 = vmatpush2.msra.mxu0 0.0
  %2199 = vmatprep.subr.mxu0 0.0
  %2200 = vmatpush2.msra.mxu0 0.0
  %2201 = vmatprep.subr.mxu0 0.0
  %2202 = vmatpush2.msra.mxu0 0.0
  %2203 = vmatprep.subr.mxu0 0.0
  %2204 = vmatpush2.msra.mxu0 0.0
  %2205 = vmatprep.subr.mxu0 0.0
  %2206 = vmatpush2.msra.mxu0 0.0
  %2207 = vmatprep.subr.mxu0 0.0
  %2208 = vmatpush2.msra.mxu0 0.0
  %2209 = vmatprep.subr.mxu0 0.0
  %2210 = vmatpush2.msra.mxu0 0.0
  %2211 = vmatprep.subr.mxu0 0.0
  %2212 = vmatpush2.msra.mxu0 0.0
  %2213 = vmatprep.subr.mxu0 0.0
  %2214 = vmatpush2.msra.mxu0 0.0
  %2215 = vmatprep.subr.mxu0 0.0
  %2216 = vmatpush2.msra.mxu0 0.0
  %2217 = vmatprep.mubr.f32.mxu0 0.0
  %2218 = vmatmul.mubr.f32.gmra.mxu0 %v2148
  %v2219 = vpop.f32.mrf.mxu0
  %v2220 = vadd.f32 0.0, %v2219
  %v2221 = vpop.f32.mrf.mxu0
  %2222 = vmatprep.mubr.f32.mxu0 0.0
  %2223 = vmatmul.mubr.f32.gmra.mxu0 %v2151
  %v2224 = vpop.f32.mrf.mxu0
  %v2225 = vadd.f32 0.0, %v2224
  %v2226 = vpop.f32.mrf.mxu0
  %2227 = vdwg.mxu0
  %v2229 = vsel %vm337, %v2133, 0
  %v2232 = vsel %vm337, %v2138, 0
  %v2235 = vsel %vm337, %v2220, 0
  %v2238 = vsel %vm337, %v2225, 0
  %2240 = vmatprep.subr.mxu0 0.0
  %2241 = vmatpush1.msra.mxu0 0.0
  %2242 = vmatprep.subr.mxu0 0.0
  %2243 = vmatpush1.msra.mxu0 0.0
  %2244 = vmatprep.subr.mxu0 0.0
  %2245 = vmatpush1.msra.mxu0 0.0
  %2246 = vmatprep.subr.mxu0 0.0
  %2247 = vmatpush1.msra.mxu0 0.0
  %2248 = vmatprep.subr.mxu0 0.0
  %2249 = vmatpush1.msra.mxu0 0.0
  %2250 = vmatprep.subr.mxu0 0.0
  %2251 = vmatpush1.msra.mxu0 0.0
  %2252 = vmatprep.subr.mxu0 0.0
  %2253 = vmatpush1.msra.mxu0 0.0
  %2254 = vmatprep.subr.mxu0 0.0
  %2255 = vmatpush1.msra.mxu0 0.0
  %2256 = vmatprep.subr.mxu0 0.0
  %2257 = vmatpush1.msra.mxu0 0.0
  %2258 = vmatprep.subr.mxu0 0.0
  %2259 = vmatpush1.msra.mxu0 0.0
  %2260 = vmatprep.subr.mxu0 0.0
  %2261 = vmatpush1.msra.mxu0 0.0
  %2262 = vmatprep.subr.mxu0 0.0
  %2263 = vmatpush1.msra.mxu0 0.0
  %2264 = vmatprep.subr.mxu0 0.0
  %2265 = vmatpush1.msra.mxu0 0.0
  %2266 = vmatprep.subr.mxu0 0.0
  %2267 = vmatpush1.msra.mxu0 0.0
  %2268 = vmatprep.subr.mxu0 0.0
  %2269 = vmatpush1.msra.mxu0 0.0
  %2270 = vmatprep.subr.mxu0 0.0
  %2271 = vmatpush1.msra.mxu0 %v149
  %2272 = vmatprep.subr.mxu0 0.0
  %2273 = vmatpush2.msra.mxu0 0.0
  %2274 = vmatprep.subr.mxu0 0.0
  %2275 = vmatpush2.msra.mxu0 0.0
  %2276 = vmatprep.subr.mxu0 0.0
  %2277 = vmatpush2.msra.mxu0 0.0
  %2278 = vmatprep.subr.mxu0 0.0
  %2279 = vmatpush2.msra.mxu0 0.0
  %2280 = vmatprep.subr.mxu0 0.0
  %2281 = vmatpush2.msra.mxu0 0.0
  %2282 = vmatprep.subr.mxu0 0.0
  %2283 = vmatpush2.msra.mxu0 0.0
  %2284 = vmatprep.subr.mxu0 0.0
  %2285 = vmatpush2.msra.mxu0 0.0
  %2286 = vmatprep.subr.mxu0 0.0
  %2287 = vmatpush2.msra.mxu0 0.0
  %2288 = vmatprep.subr.mxu0 0.0
  %2289 = vmatpush2.msra.mxu0 0.0
  %2290 = vmatprep.subr.mxu0 0.0
  %2291 = vmatpush2.msra.mxu0 0.0
  %2292 = vmatprep.subr.mxu0 0.0
  %2293 = vmatpush2.msra.mxu0 0.0
  %2294 = vmatprep.subr.mxu0 0.0
  %2295 = vmatpush2.msra.mxu0 0.0
  %2296 = vmatprep.subr.mxu0 0.0
  %2297 = vmatpush2.msra.mxu0 0.0
  %2298 = vmatprep.subr.mxu0 0.0
  %2299 = vmatpush2.msra.mxu0 0.0
  %2300 = vmatprep.subr.mxu0 0.0
  %2301 = vmatpush2.msra.mxu0 0.0
  %2302 = vmatprep.subr.mxu0 0.0
  %2303 = vmatpush2.msra.mxu0 0.0
  %2304 = vmatprep.mubr.f32.mxu0 0.0
  %2305 = vmatmul.mubr.f32.gmra.mxu0 %v2229
  %v2306 = vpop.f32.mrf.mxu0
  %v2307 = vadd.f32 0.0, %v2306
  %v2308 = vpop.f32.mrf.mxu0
  %2309 = vmatprep.mubr.f32.mxu0 0.0
  %2310 = vmatmul.mubr.f32.gmra.mxu0 %v2232
  %v2311 = vpop.f32.mrf.mxu0
  %v2312 = vadd.f32 0.0, %v2311
  %v2313 = vpop.f32.mrf.mxu0
  %2314 = vmatprep.mubr.f32.mxu0 0.0
  %2315 = vmatmul.mubr.f32.gmra.mxu0 %v2235
  %v2316 = vpop.f32.mrf.mxu0
  %v2317 = vadd.f32 0.0, %v2316
  %v2318 = vpop.f32.mrf.mxu0
  %2319 = vmatprep.mubr.f32.mxu0 0.0
  %2320 = vmatmul.mubr.f32.gmra.mxu0 %v2238
  %v2321 = vpop.f32.mrf.mxu0
  %v2322 = vadd.f32 0.0, %v2321
  %v2323 = vpop.f32.mrf.mxu0
  %2324 = vdwg.mxu0
  %v2325 = vadd.f32 %v1824, %v2307
  %v2326 = vadd.f32 %v1825, %v2312
  %v2327 = vadd.f32 %v1826, %v2317
  %v2328 = vadd.f32 %v1827, %v2322
  %v2329 = vld [vmem:[%s5] sm:$0x1]
  %v2331 = vlaneseq
  %v2332 = vshrl.u32 %v2331, 7
  %v2333 = vsub.s32 0, %v2332
  %v2334 = vrot.slane %v2329, %v2333
  %v2336 = vadd.f32 %v2325, %v2334
  %v2337 = vadd.f32 %v2326, %v2334
  %v2338 = vadd.f32 %v2327, %v2334
  %v2339 = vadd.f32 %v2328, %v2334
  %v2340 = vadd.f32 %v2336, %v136
  %v2341 = vadd.f32 %v2337, %v137
  %v2342 = vadd.f32 %v2338, %v138
  %v2343 = vadd.f32 %v2339, %v139
  %v2344 = vsel %vm83, %v2340, 0.0
  %2345 = vadd.xlane.f32.xlu0 %v2344
  %v2346 = vpop.xlane.xlu0 %2345
  %v2347 = vsel %vm83, %v2341, 0.0
  %2348 = vadd.xlane.f32.xlu0 %v2347
  %v2349 = vpop.xlane.xlu0 %2348
  %v2350 = vsel %vm83, %v2342, 0.0
  %2351 = vadd.xlane.f32.xlu0 %v2350
  %v2352 = vpop.xlane.xlu0 %2351
  %v2353 = vsel %vm83, %v2343, 0.0
  %2354 = vadd.xlane.f32.xlu0 %v2353
  %v2355 = vpop.xlane.xlu0 %2354
  %v2356 = vmul.f32 %v2346, %v162
  %v2357 = vmul.f32 %v2349, %v162
  %v2358 = vmul.f32 %v2352, %v162
  %v2359 = vmul.f32 %v2355, %v162
  %v2360 = vsub.f32 %v2340, %v2356
  %v2361 = vsub.f32 %v2341, %v2357
  %v2362 = vsub.f32 %v2342, %v2358
  %v2363 = vsub.f32 %v2343, %v2359
  %v2364 = vmul.f32 %v2360, %v2360
  %v2365 = vmul.f32 %v2361, %v2361
  %v2366 = vmul.f32 %v2362, %v2362
  %v2367 = vmul.f32 %v2363, %v2363
  %v2368 = vsel %vm83, %v2364, 0.0
  %2369 = vadd.xlane.f32.xlu0 %v2368
  %v2370 = vpop.xlane.xlu0 %2369
  %v2371 = vsel %vm83, %v2365, 0.0
  %2372 = vadd.xlane.f32.xlu0 %v2371
  %v2373 = vpop.xlane.xlu0 %2372
  %v2374 = vsel %vm83, %v2366, 0.0
  %2375 = vadd.xlane.f32.xlu0 %v2374
  %v2376 = vpop.xlane.xlu0 %2375
  %v2377 = vsel %vm83, %v2367, 0.0
  %2378 = vadd.xlane.f32.xlu0 %v2377
  %v2379 = vpop.xlane.xlu0 %2378
  %v2380 = vmul.f32 %v2370, %v162
  %v2381 = vmul.f32 %v2373, %v162
  %v2382 = vmul.f32 %v2376, %v162
  %v2383 = vmul.f32 %v2379, %v162
  %v2384 = vadd.f32 %v2380, 1e-05
  %v2385 = vadd.f32 %v2381, 1e-05
  %v2386 = vadd.f32 %v2382, 1e-05
  %v2387 = vadd.f32 %v2383, 1e-05
  %v2388 = vrsqrt.pop %v2384
  %v2389 = vrsqrt.pop %v2385
  %v2390 = vrsqrt.pop %v2386
  %v2391 = vrsqrt.pop %v2387
  %v2392 = vmul.f32 %v2360, %v2388
  %v2393 = vmul.f32 %v2361, %v2389
  %v2394 = vmul.f32 %v2362, %v2390
  %v2395 = vmul.f32 %v2363, %v2391
  %v2396 = vmul.f32 %v2392, %v207
  %v2397 = vmul.f32 %v2393, %v207
  %v2398 = vmul.f32 %v2394, %v207
  %v2399 = vmul.f32 %v2395, %v207
  %v2400 = vadd.f32 %v2396, %v217
  %v2401 = vadd.f32 %v2397, %v217
  %v2402 = vadd.f32 %v2398, %v217
  %v2403 = vadd.f32 %v2399, %v217
  %v2404 = vld [vmem:[%s6] sm:$0xff]
  %v2405 = vld [vmem:[%s6 + $0x8] sm:$0xff]
  %v2406 = vld [vmem:[%s6 + $0x10] sm:$0xff]
  %v2407 = vld [vmem:[%s6 + $0x18] sm:$0xff]
  %v2408 = vld [vmem:[%s7] sm:$0x1]
  %v2410 = vlaneseq
  %v2411 = vshrl.u32 %v2410, 7
  %v2412 = vsub.s32 0, %v2411
  %v2413 = vrot.slane %v2408, %v2412
  %v2416 = vsel %vm83, %v2400, 0
  %v2419 = vsel %vm83, %v2401, 0
  %v2422 = vsel %vm83, %v2402, 0
  %v2425 = vsel %vm83, %v2403, 0
  %2427 = vmatprep.subr.mxu0 0.0
  %2428 = vmatpush1.msra.mxu0 0.0
  %2429 = vmatprep.subr.mxu0 0.0
  %2430 = vmatpush1.msra.mxu0 0.0
  %2431 = vmatprep.subr.mxu0 0.0
  %2432 = vmatpush1.msra.mxu0 0.0
  %2433 = vmatprep.subr.mxu0 0.0
  %2434 = vmatpush1.msra.mxu0 0.0
  %2435 = vmatprep.subr.mxu0 0.0
  %2436 = vmatpush1.msra.mxu0 0.0
  %2437 = vmatprep.subr.mxu0 0.0
  %2438 = vmatpush1.msra.mxu0 0.0
  %2439 = vmatprep.subr.mxu0 0.0
  %2440 = vmatpush1.msra.mxu0 0.0
  %2441 = vmatprep.subr.mxu0 0.0
  %2442 = vmatpush1.msra.mxu0 0.0
  %2443 = vmatprep.subr.mxu0 0.0
  %2444 = vmatpush1.msra.mxu0 0.0
  %2445 = vmatprep.subr.mxu0 0.0
  %2446 = vmatpush1.msra.mxu0 0.0
  %2447 = vmatprep.subr.mxu0 0.0
  %2448 = vmatpush1.msra.mxu0 0.0
  %2449 = vmatprep.subr.mxu0 0.0
  %2450 = vmatpush1.msra.mxu0 0.0
  %2451 = vmatprep.subr.mxu0 0.0
  %2452 = vmatpush1.msra.mxu0 %v2407
  %2453 = vmatprep.subr.mxu0 0.0
  %2454 = vmatpush1.msra.mxu0 %v2406
  %2455 = vmatprep.subr.mxu0 0.0
  %2456 = vmatpush1.msra.mxu0 %v2405
  %2457 = vmatprep.subr.mxu0 0.0
  %2458 = vmatpush1.msra.mxu0 %v2404
  %2459 = vmatprep.subr.mxu0 0.0
  %2460 = vmatpush2.msra.mxu0 0.0
  %2461 = vmatprep.subr.mxu0 0.0
  %2462 = vmatpush2.msra.mxu0 0.0
  %2463 = vmatprep.subr.mxu0 0.0
  %2464 = vmatpush2.msra.mxu0 0.0
  %2465 = vmatprep.subr.mxu0 0.0
  %2466 = vmatpush2.msra.mxu0 0.0
  %2467 = vmatprep.subr.mxu0 0.0
  %2468 = vmatpush2.msra.mxu0 0.0
  %2469 = vmatprep.subr.mxu0 0.0
  %2470 = vmatpush2.msra.mxu0 0.0
  %2471 = vmatprep.subr.mxu0 0.0
  %2472 = vmatpush2.msra.mxu0 0.0
  %2473 = vmatprep.subr.mxu0 0.0
  %2474 = vmatpush2.msra.mxu0 0.0
  %2475 = vmatprep.subr.mxu0 0.0
  %2476 = vmatpush2.msra.mxu0 0.0
  %2477 = vmatprep.subr.mxu0 0.0
  %2478 = vmatpush2.msra.mxu0 0.0
  %2479 = vmatprep.subr.mxu0 0.0
  %2480 = vmatpush2.msra.mxu0 0.0
  %2481 = vmatprep.subr.mxu0 0.0
  %2482 = vmatpush2.msra.mxu0 0.0
  %2483 = vmatprep.subr.mxu0 0.0
  %2484 = vmatpush2.msra.mxu0 0.0
  %2485 = vmatprep.subr.mxu0 0.0
  %2486 = vmatpush2.msra.mxu0 0.0
  %2487 = vmatprep.subr.mxu0 0.0
  %2488 = vmatpush2.msra.mxu0 0.0
  %2489 = vmatprep.subr.mxu0 0.0
  %2490 = vmatpush2.msra.mxu0 0.0
  %2491 = vmatprep.mubr.f32.mxu0 0.0
  %2492 = vmatmul.mubr.f32.gmra.mxu0 %v2416
  %v2493 = vpop.f32.mrf.mxu0
  %v2494 = vadd.f32 %v2413, %v2493
  %v2495 = vpop.f32.mrf.mxu0
  %2496 = vmatprep.mubr.f32.mxu0 0.0
  %2497 = vmatmul.mubr.f32.gmra.mxu0 %v2419
  %v2498 = vpop.f32.mrf.mxu0
  %v2499 = vadd.f32 %v2413, %v2498
  %v2500 = vpop.f32.mrf.mxu0
  %2501 = vmatprep.mubr.f32.mxu0 0.0
  %2502 = vmatmul.mubr.f32.gmra.mxu0 %v2422
  %v2503 = vpop.f32.mrf.mxu0
  %v2504 = vadd.f32 %v2413, %v2503
  %v2505 = vpop.f32.mrf.mxu0
  %2506 = vmatprep.mubr.f32.mxu0 0.0
  %2507 = vmatmul.mubr.f32.gmra.mxu0 %v2425
  %v2508 = vpop.f32.mrf.mxu0
  %v2509 = vadd.f32 %v2413, %v2508
  %v2510 = vpop.f32.mrf.mxu0
  %2511 = vdwg.mxu0
  %v2512 = vmax.f32 %v2494, 0.0
  %v2513 = vmax.f32 %v2499, 0.0
  %v2514 = vmax.f32 %v2504, 0.0
  %v2515 = vmax.f32 %v2509, 0.0
  %v2516 = vld [vmem:[%s8] sm:$0xff]
  %v2517 = vld [vmem:[%s8 + $0x8] sm:$0xff]
  %v2518 = vld [vmem:[%s8 + $0x10] sm:$0xff]
  %v2519 = vld [vmem:[%s8 + $0x18] sm:$0xff]
  %v2520 = vld [vmem:[%s8 + $0x20] sm:$0xff]
  %v2521 = vld [vmem:[%s8 + $0x28] sm:$0xff]
  %v2522 = vld [vmem:[%s8 + $0x30] sm:$0xff]
  %v2523 = vld [vmem:[%s8 + $0x38] sm:$0xff]
  %v2524 = vld [vmem:[%s9] sm:$0x1]
  %v2526 = vlaneseq
  %v2527 = vshrl.u32 %v2526, 7
  %v2528 = vsub.s32 0, %v2527
  %v2529 = vrot.slane %v2524, %v2528
  %vm2531 = vcmask 523264
  %v2533 = vsel %vm2531, %v2512, 0
  %v2536 = vsel %vm2531, %v2513, 0
  %v2539 = vsel %vm2531, %v2514, 0
  %v2542 = vsel %vm2531, %v2515, 0
  %2544 = vmatprep.subr.mxu0 0.0
  %2545 = vmatpush1.msra.mxu0 0.0
  %2546 = vmatprep.subr.mxu0 0.0
  %2547 = vmatpush1.msra.mxu0 0.0
  %2548 = vmatprep.subr.mxu0 0.0
  %2549 = vmatpush1.msra.mxu0 0.0
  %2550 = vmatprep.subr.mxu0 0.0
  %2551 = vmatpush1.msra.mxu0 0.0
  %2552 = vmatprep.subr.mxu0 0.0
  %2553 = vmatpush1.msra.mxu0 0.0
  %2554 = vmatprep.subr.mxu0 0.0
  %2555 = vmatpush1.msra.mxu0 0.0
  %2556 = vmatprep.subr.mxu0 0.0
  %2557 = vmatpush1.msra.mxu0 0.0
  %2558 = vmatprep.subr.mxu0 0.0
  %2559 = vmatpush1.msra.mxu0 0.0
  %2560 = vmatprep.subr.mxu0 0.0
  %2561 = vmatpush1.msra.mxu0 %v2523
  %2562 = vmatprep.subr.mxu0 0.0
  %2563 = vmatpush1.msra.mxu0 %v2522
  %2564 = vmatprep.subr.mxu0 0.0
  %2565 = vmatpush1.msra.mxu0 %v2521
  %2566 = vmatprep.subr.mxu0 0.0
  %2567 = vmatpush1.msra.mxu0 %v2520
  %2568 = vmatprep.subr.mxu0 0.0
  %2569 = vmatpush1.msra.mxu0 %v2519
  %2570 = vmatprep.subr.mxu0 0.0
  %2571 = vmatpush1.msra.mxu0 %v2518
  %2572 = vmatprep.subr.mxu0 0.0
  %2573 = vmatpush1.msra.mxu0 %v2517
  %2574 = vmatprep.subr.mxu0 0.0
  %2575 = vmatpush1.msra.mxu0 %v2516
  %2576 = vmatprep.subr.mxu0 0.0
  %2577 = vmatpush2.msra.mxu0 0.0
  %2578 = vmatprep.subr.mxu0 0.0
  %2579 = vmatpush2.msra.mxu0 0.0
  %2580 = vmatprep.subr.mxu0 0.0
  %2581 = vmatpush2.msra.mxu0 0.0
  %2582 = vmatprep.subr.mxu0 0.0
  %2583 = vmatpush2.msra.mxu0 0.0
  %2584 = vmatprep.subr.mxu0 0.0
  %2585 = vmatpush2.msra.mxu0 0.0
  %2586 = vmatprep.subr.mxu0 0.0
  %2587 = vmatpush2.msra.mxu0 0.0
  %2588 = vmatprep.subr.mxu0 0.0
  %2589 = vmatpush2.msra.mxu0 0.0
  %2590 = vmatprep.subr.mxu0 0.0
  %2591 = vmatpush2.msra.mxu0 0.0
  %2592 = vmatprep.subr.mxu0 0.0
  %2593 = vmatpush2.msra.mxu0 0.0
  %2594 = vmatprep.subr.mxu0 0.0
  %2595 = vmatpush2.msra.mxu0 0.0
  %2596 = vmatprep.subr.mxu0 0.0
  %2597 = vmatpush2.msra.mxu0 0.0
  %2598 = vmatprep.subr.mxu0 0.0
  %2599 = vmatpush2.msra.mxu0 0.0
  %2600 = vmatprep.subr.mxu0 0.0
  %2601 = vmatpush2.msra.mxu0 0.0
  %2602 = vmatprep.subr.mxu0 0.0
  %2603 = vmatpush2.msra.mxu0 0.0
  %2604 = vmatprep.subr.mxu0 0.0
  %2605 = vmatpush2.msra.mxu0 0.0
  %2606 = vmatprep.subr.mxu0 0.0
  %2607 = vmatpush2.msra.mxu0 0.0
  %2608 = vmatprep.mubr.f32.mxu0 0.0
  %2609 = vmatmul.mubr.f32.gmra.mxu0 %v2533
  %v2610 = vpop.f32.mrf.mxu0
  %v2611 = vadd.f32 %v2529, %v2610
  %v2612 = vpop.f32.mrf.mxu0
  %2613 = vmatprep.mubr.f32.mxu0 0.0
  %2614 = vmatmul.mubr.f32.gmra.mxu0 %v2536
  %v2615 = vpop.f32.mrf.mxu0
  %v2616 = vadd.f32 %v2529, %v2615
  %v2617 = vpop.f32.mrf.mxu0
  %2618 = vmatprep.mubr.f32.mxu0 0.0
  %2619 = vmatmul.mubr.f32.gmra.mxu0 %v2539
  %v2620 = vpop.f32.mrf.mxu0
  %v2621 = vadd.f32 %v2529, %v2620
  %v2622 = vpop.f32.mrf.mxu0
  %2623 = vmatprep.mubr.f32.mxu0 0.0
  %2624 = vmatmul.mubr.f32.gmra.mxu0 %v2542
  %v2625 = vpop.f32.mrf.mxu0
  %v2626 = vadd.f32 %v2529, %v2625
  %v2627 = vpop.f32.mrf.mxu0
  %2628 = vdwg.mxu0
  %v2629 = vadd.f32 %v2611, %v2340
  %v2630 = vadd.f32 %v2616, %v2341
  %v2631 = vadd.f32 %v2621, %v2342
  %v2632 = vadd.f32 %v2626, %v2343
  %s2633 = scalar_lea.vmem %s10, 1
  %v2634 = vld [vmem:[%s2633] sm:$0x1]
  %s2635 = scalar_lea.vmem %s11, 1
  %v2636 = vld [vmem:[%s2635] sm:$0x1]
  %s2637 = scalar_lea.vmem %s2, 32
  %v2638 = vld [vmem:[%s2637] sm:$0xff]
  %v2639 = vld [vmem:[%s2637 + $0x8] sm:$0xff]
  %v2640 = vld [vmem:[%s2637 + $0x10] sm:$0xff]
  %v2641 = vld [vmem:[%s2637 + $0x18] sm:$0xff]
  %s2642 = scalar_lea.vmem %s4, 32
  %v2643 = vld [vmem:[%s2642] sm:$0xff]
  %v2644 = vld [vmem:[%s2642 + $0x8] sm:$0xff]
  %v2645 = vld [vmem:[%s2642 + $0x10] sm:$0xff]
  %v2646 = vld [vmem:[%s2642 + $0x18] sm:$0xff]
  %v2647 = vsel %vm83, %v2629, 0.0
  %2648 = vadd.xlane.f32.xlu0 %v2647
  %v2649 = vpop.xlane.xlu0 %2648
  %v2650 = vsel %vm83, %v2630, 0.0
  %2651 = vadd.xlane.f32.xlu0 %v2650
  %v2652 = vpop.xlane.xlu0 %2651
  %v2653 = vsel %vm83, %v2631, 0.0
  %2654 = vadd.xlane.f32.xlu0 %v2653
  %v2655 = vpop.xlane.xlu0 %2654
  %v2656 = vsel %vm83, %v2632, 0.0
  %2657 = vadd.xlane.f32.xlu0 %v2656
  %v2658 = vpop.xlane.xlu0 %2657
  %v2659 = vmul.f32 %v2649, %v162
  %v2660 = vmul.f32 %v2652, %v162
  %v2661 = vmul.f32 %v2655, %v162
  %v2662 = vmul.f32 %v2658, %v162
  %v2663 = vsub.f32 %v2629, %v2659
  %v2664 = vsub.f32 %v2630, %v2660
  %v2665 = vsub.f32 %v2631, %v2661
  %v2666 = vsub.f32 %v2632, %v2662
  %v2667 = vmul.f32 %v2663, %v2663
  %v2668 = vmul.f32 %v2664, %v2664
  %v2669 = vmul.f32 %v2665, %v2665
  %v2670 = vmul.f32 %v2666, %v2666
  %v2671 = vsel %vm83, %v2667, 0.0
  %2672 = vadd.xlane.f32.xlu0 %v2671
  %v2673 = vpop.xlane.xlu0 %2672
  %v2674 = vsel %vm83, %v2668, 0.0
  %2675 = vadd.xlane.f32.xlu0 %v2674
  %v2676 = vpop.xlane.xlu0 %2675
  %v2677 = vsel %vm83, %v2669, 0.0
  %2678 = vadd.xlane.f32.xlu0 %v2677
  %v2679 = vpop.xlane.xlu0 %2678
  %v2680 = vsel %vm83, %v2670, 0.0
  %2681 = vadd.xlane.f32.xlu0 %v2680
  %v2682 = vpop.xlane.xlu0 %2681
  %v2683 = vmul.f32 %v2673, %v162
  %v2684 = vmul.f32 %v2676, %v162
  %v2685 = vmul.f32 %v2679, %v162
  %v2686 = vmul.f32 %v2682, %v162
  %v2687 = vadd.f32 %v2683, 1e-05
  %v2688 = vadd.f32 %v2684, 1e-05
  %v2689 = vadd.f32 %v2685, 1e-05
  %v2690 = vadd.f32 %v2686, 1e-05
  %v2691 = vrsqrt.pop %v2687
  %v2692 = vrsqrt.pop %v2688
  %v2693 = vrsqrt.pop %v2689
  %v2694 = vrsqrt.pop %v2690
  %v2695 = vmul.f32 %v2663, %v2691
  %v2696 = vmul.f32 %v2664, %v2692
  %v2697 = vmul.f32 %v2665, %v2693
  %v2698 = vmul.f32 %v2666, %v2694
  %v2700 = vlaneseq
  %v2701 = vshrl.u32 %v2700, 7
  %v2702 = vsub.s32 0, %v2701
  %v2703 = vrot.slane %v2634, %v2702
  %v2705 = vmul.f32 %v2695, %v2703
  %v2706 = vmul.f32 %v2696, %v2703
  %v2707 = vmul.f32 %v2697, %v2703
  %v2708 = vmul.f32 %v2698, %v2703
  %v2710 = vlaneseq
  %v2711 = vshrl.u32 %v2710, 7
  %v2712 = vsub.s32 0, %v2711
  %v2713 = vrot.slane %v2636, %v2712
  %v2715 = vadd.f32 %v2705, %v2713
  %v2716 = vadd.f32 %v2706, %v2713
  %v2717 = vadd.f32 %v2707, %v2713
  %v2718 = vadd.f32 %v2708, %v2713
  %s2719 = scalar_lea.vmem %s3, 1
  %v2720 = vld [vmem:[%s2719] sm:$0x1]
  %v2722 = vlaneseq
  %v2723 = vshrl.u32 %v2722, 7
  %v2724 = vsub.s32 0, %v2723
  %v2725 = vrot.slane %v2720, %v2724
  %v2728 = vsel %vm83, %v2715, 0
  %v2731 = vsel %vm83, %v2716, 0
  %v2734 = vsel %vm83, %v2717, 0
  %v2737 = vsel %vm83, %v2718, 0
  %2739 = vmatprep.subr.mxu0 0.0
  %2740 = vmatpush1.msra.mxu0 0.0
  %2741 = vmatprep.subr.mxu0 0.0
  %2742 = vmatpush1.msra.mxu0 0.0
  %2743 = vmatprep.subr.mxu0 0.0
  %2744 = vmatpush1.msra.mxu0 0.0
  %2745 = vmatprep.subr.mxu0 0.0
  %2746 = vmatpush1.msra.mxu0 0.0
  %2747 = vmatprep.subr.mxu0 0.0
  %2748 = vmatpush1.msra.mxu0 0.0
  %2749 = vmatprep.subr.mxu0 0.0
  %2750 = vmatpush1.msra.mxu0 0.0
  %2751 = vmatprep.subr.mxu0 0.0
  %2752 = vmatpush1.msra.mxu0 0.0
  %2753 = vmatprep.subr.mxu0 0.0
  %2754 = vmatpush1.msra.mxu0 0.0
  %2755 = vmatprep.subr.mxu0 0.0
  %2756 = vmatpush1.msra.mxu0 0.0
  %2757 = vmatprep.subr.mxu0 0.0
  %2758 = vmatpush1.msra.mxu0 0.0
  %2759 = vmatprep.subr.mxu0 0.0
  %2760 = vmatpush1.msra.mxu0 0.0
  %2761 = vmatprep.subr.mxu0 0.0
  %2762 = vmatpush1.msra.mxu0 0.0
  %2763 = vmatprep.subr.mxu0 0.0
  %2764 = vmatpush1.msra.mxu0 %v2641
  %2765 = vmatprep.subr.mxu0 0.0
  %2766 = vmatpush1.msra.mxu0 %v2640
  %2767 = vmatprep.subr.mxu0 0.0
  %2768 = vmatpush1.msra.mxu0 %v2639
  %2769 = vmatprep.subr.mxu0 0.0
  %2770 = vmatpush1.msra.mxu0 %v2638
  %2771 = vmatprep.subr.mxu0 0.0
  %2772 = vmatpush2.msra.mxu0 0.0
  %2773 = vmatprep.subr.mxu0 0.0
  %2774 = vmatpush2.msra.mxu0 0.0
  %2775 = vmatprep.subr.mxu0 0.0
  %2776 = vmatpush2.msra.mxu0 0.0
  %2777 = vmatprep.subr.mxu0 0.0
  %2778 = vmatpush2.msra.mxu0 0.0
  %2779 = vmatprep.subr.mxu0 0.0
  %2780 = vmatpush2.msra.mxu0 0.0
  %2781 = vmatprep.subr.mxu0 0.0
  %2782 = vmatpush2.msra.mxu0 0.0
  %2783 = vmatprep.subr.mxu0 0.0
  %2784 = vmatpush2.msra.mxu0 0.0
  %2785 = vmatprep.subr.mxu0 0.0
  %2786 = vmatpush2.msra.mxu0 0.0
  %2787 = vmatprep.subr.mxu0 0.0
  %2788 = vmatpush2.msra.mxu0 0.0
  %2789 = vmatprep.subr.mxu0 0.0
  %2790 = vmatpush2.msra.mxu0 0.0
  %2791 = vmatprep.subr.mxu0 0.0
  %2792 = vmatpush2.msra.mxu0 0.0
  %2793 = vmatprep.subr.mxu0 0.0
  %2794 = vmatpush2.msra.mxu0 0.0
  %2795 = vmatprep.subr.mxu0 0.0
  %2796 = vmatpush2.msra.mxu0 0.0
  %2797 = vmatprep.subr.mxu0 0.0
  %2798 = vmatpush2.msra.mxu0 0.0
  %2799 = vmatprep.subr.mxu0 0.0
  %2800 = vmatpush2.msra.mxu0 0.0
  %2801 = vmatprep.subr.mxu0 0.0
  %2802 = vmatpush2.msra.mxu0 0.0
  %2803 = vmatprep.mubr.f32.mxu0 0.0
  %2804 = vmatmul.mubr.f32.gmra.mxu0 %v2728
  %v2805 = vpop.f32.mrf.mxu0
  %v2806 = vadd.f32 %v2725, %v2805
  %v2807 = vpop.f32.mrf.mxu0
  %2808 = vmatprep.mubr.f32.mxu0 0.0
  %2809 = vmatmul.mubr.f32.gmra.mxu0 %v2731
  %v2810 = vpop.f32.mrf.mxu0
  %v2811 = vadd.f32 %v2725, %v2810
  %v2812 = vpop.f32.mrf.mxu0
  %2813 = vmatprep.mubr.f32.mxu0 0.0
  %2814 = vmatmul.mubr.f32.gmra.mxu0 %v2734
  %v2815 = vpop.f32.mrf.mxu0
  %v2816 = vadd.f32 %v2725, %v2815
  %v2817 = vpop.f32.mrf.mxu0
  %2818 = vmatprep.mubr.f32.mxu0 0.0
  %2819 = vmatmul.mubr.f32.gmra.mxu0 %v2737
  %v2820 = vpop.f32.mrf.mxu0
  %v2821 = vadd.f32 %v2725, %v2820
  %v2822 = vpop.f32.mrf.mxu0
  %2823 = vdwg.mxu0
  %v2824 = vmul.f32 %v2806, 0.35355338
  %v2825 = vmul.f32 %v2811, 0.35355338
  %v2826 = vmul.f32 %v2816, 0.35355338
  %v2827 = vmul.f32 %v2821, 0.35355338
  %2830 = vrot.lane.b32.xlu0 %v2806, 96
  %v2831 = vpop.permute.xlu0 %2830
  %2832 = vrot.lane.b32.xlu0 %v2811, 96
  %v2833 = vpop.permute.xlu0 %2832
  %v2835 = vsel %vm337, %v2824, 0
  %v2838 = vsel %vm337, %v2825, 0
  %v2840 = vsel %vm337, %v2831, 0
  %v2842 = vsel %vm337, %v2833, 0
  %2844 = vmatprep.subr.mxu0 0.0
  %2845 = vmatpush1.xpose.msra.mxu0 0.0
  %2846 = vmatprep.subr.mxu0 0.0
  %2847 = vmatpush1.xpose.msra.mxu0 0.0
  %2848 = vmatprep.subr.mxu0 0.0
  %2849 = vmatpush1.xpose.msra.mxu0 0.0
  %2850 = vmatprep.subr.mxu0 0.0
  %2851 = vmatpush1.xpose.msra.mxu0 0.0
  %2852 = vmatprep.subr.mxu0 0.0
  %2853 = vmatpush1.xpose.msra.mxu0 0.0
  %2854 = vmatprep.subr.mxu0 0.0
  %2855 = vmatpush1.xpose.msra.mxu0 0.0
  %2856 = vmatprep.subr.mxu0 0.0
  %2857 = vmatpush1.xpose.msra.mxu0 0.0
  %2858 = vmatprep.subr.mxu0 0.0
  %2859 = vmatpush1.xpose.msra.mxu0 0.0
  %2860 = vmatprep.subr.mxu0 0.0
  %2861 = vmatpush1.xpose.msra.mxu0 0.0
  %2862 = vmatprep.subr.mxu0 0.0
  %2863 = vmatpush1.xpose.msra.mxu0 0.0
  %2864 = vmatprep.subr.mxu0 0.0
  %2865 = vmatpush1.xpose.msra.mxu0 0.0
  %2866 = vmatprep.subr.mxu0 0.0
  %2867 = vmatpush1.xpose.msra.mxu0 0.0
  %2868 = vmatprep.subr.mxu0 0.0
  %2869 = vmatpush1.xpose.msra.mxu0 0.0
  %2870 = vmatprep.subr.mxu0 0.0
  %2871 = vmatpush1.xpose.msra.mxu0 0.0
  %2872 = vmatprep.subr.mxu0 0.0
  %2873 = vmatpush1.xpose.msra.mxu0 %v2842
  %2874 = vmatprep.subr.mxu0 0.0
  %2875 = vmatpush1.xpose.msra.mxu0 %v2840
  %2876 = vmatprep.subr.mxu0 0.0
  %2877 = vmatpush2.xpose.msra.mxu0 0.0
  %2878 = vmatprep.subr.mxu0 0.0
  %2879 = vmatpush2.xpose.msra.mxu0 0.0
  %2880 = vmatprep.subr.mxu0 0.0
  %2881 = vmatpush2.xpose.msra.mxu0 0.0
  %2882 = vmatprep.subr.mxu0 0.0
  %2883 = vmatpush2.xpose.msra.mxu0 0.0
  %2884 = vmatprep.subr.mxu0 0.0
  %2885 = vmatpush2.xpose.msra.mxu0 0.0
  %2886 = vmatprep.subr.mxu0 0.0
  %2887 = vmatpush2.xpose.msra.mxu0 0.0
  %2888 = vmatprep.subr.mxu0 0.0
  %2889 = vmatpush2.xpose.msra.mxu0 0.0
  %2890 = vmatprep.subr.mxu0 0.0
  %2891 = vmatpush2.xpose.msra.mxu0 0.0
  %2892 = vmatprep.subr.mxu0 0.0
  %2893 = vmatpush2.xpose.msra.mxu0 0.0
  %2894 = vmatprep.subr.mxu0 0.0
  %2895 = vmatpush2.xpose.msra.mxu0 0.0
  %2896 = vmatprep.subr.mxu0 0.0
  %2897 = vmatpush2.xpose.msra.mxu0 0.0
  %2898 = vmatprep.subr.mxu0 0.0
  %2899 = vmatpush2.xpose.msra.mxu0 0.0
  %2900 = vmatprep.subr.mxu0 0.0
  %2901 = vmatpush2.xpose.msra.mxu0 0.0
  %2902 = vmatprep.subr.mxu0 0.0
  %2903 = vmatpush2.xpose.msra.mxu0 0.0
  %2904 = vmatprep.subr.mxu0 0.0
  %2905 = vmatpush2.xpose.msra.mxu0 0.0
  %2906 = vmatprep.subr.mxu0 0.0
  %2907 = vmatpush2.xpose.msra.mxu0 0.0
  %2908 = vmatprep.mubr.f32.mxu0 0.0
  %2909 = vmatmul.mubr.f32.gmra.mxu0 %v2835
  %v2910 = vpop.f32.mrf.mxu0
  %v2911 = vadd.f32 0.0, %v2910
  %v2912 = vpop.f32.mrf.mxu0
  %2913 = vmatprep.mubr.f32.mxu0 0.0
  %2914 = vmatmul.mubr.f32.gmra.mxu0 %v2838
  %v2915 = vpop.f32.mrf.mxu0
  %v2916 = vadd.f32 0.0, %v2915
  %v2917 = vpop.f32.mrf.mxu0
  %2918 = vdwg.mxu0
  %2921 = vrot.lane.b32.xlu0 %v2816, 96
  %v2922 = vpop.permute.xlu0 %2921
  %2923 = vrot.lane.b32.xlu0 %v2821, 96
  %v2924 = vpop.permute.xlu0 %2923
  %v2926 = vsel %vm337, %v2826, 0
  %v2929 = vsel %vm337, %v2827, 0
  %v2931 = vsel %vm337, %v2922, 0
  %v2933 = vsel %vm337, %v2924, 0
  %2935 = vmatprep.subr.mxu0 0.0
  %2936 = vmatpush1.xpose.msra.mxu0 0.0
  %2937 = vmatprep.subr.mxu0 0.0
  %2938 = vmatpush1.xpose.msra.mxu0 0.0
  %2939 = vmatprep.subr.mxu0 0.0
  %2940 = vmatpush1.xpose.msra.mxu0 0.0
  %2941 = vmatprep.subr.mxu0 0.0
  %2942 = vmatpush1.xpose.msra.mxu0 0.0
  %2943 = vmatprep.subr.mxu0 0.0
  %2944 = vmatpush1.xpose.msra.mxu0 0.0
  %2945 = vmatprep.subr.mxu0 0.0
  %2946 = vmatpush1.xpose.msra.mxu0 0.0
  %2947 = vmatprep.subr.mxu0 0.0
  %2948 = vmatpush1.xpose.msra.mxu0 0.0
  %2949 = vmatprep.subr.mxu0 0.0
  %2950 = vmatpush1.xpose.msra.mxu0 0.0
  %2951 = vmatprep.subr.mxu0 0.0
  %2952 = vmatpush1.xpose.msra.mxu0 0.0
  %2953 = vmatprep.subr.mxu0 0.0
  %2954 = vmatpush1.xpose.msra.mxu0 0.0
  %2955 = vmatprep.subr.mxu0 0.0
  %2956 = vmatpush1.xpose.msra.mxu0 0.0
  %2957 = vmatprep.subr.mxu0 0.0
  %2958 = vmatpush1.xpose.msra.mxu0 0.0
  %2959 = vmatprep.subr.mxu0 0.0
  %2960 = vmatpush1.xpose.msra.mxu0 0.0
  %2961 = vmatprep.subr.mxu0 0.0
  %2962 = vmatpush1.xpose.msra.mxu0 0.0
  %2963 = vmatprep.subr.mxu0 0.0
  %2964 = vmatpush1.xpose.msra.mxu0 %v2933
  %2965 = vmatprep.subr.mxu0 0.0
  %2966 = vmatpush1.xpose.msra.mxu0 %v2931
  %2967 = vmatprep.subr.mxu0 0.0
  %2968 = vmatpush2.xpose.msra.mxu0 0.0
  %2969 = vmatprep.subr.mxu0 0.0
  %2970 = vmatpush2.xpose.msra.mxu0 0.0
  %2971 = vmatprep.subr.mxu0 0.0
  %2972 = vmatpush2.xpose.msra.mxu0 0.0
  %2973 = vmatprep.subr.mxu0 0.0
  %2974 = vmatpush2.xpose.msra.mxu0 0.0
  %2975 = vmatprep.subr.mxu0 0.0
  %2976 = vmatpush2.xpose.msra.mxu0 0.0
  %2977 = vmatprep.subr.mxu0 0.0
  %2978 = vmatpush2.xpose.msra.mxu0 0.0
  %2979 = vmatprep.subr.mxu0 0.0
  %2980 = vmatpush2.xpose.msra.mxu0 0.0
  %2981 = vmatprep.subr.mxu0 0.0
  %2982 = vmatpush2.xpose.msra.mxu0 0.0
  %2983 = vmatprep.subr.mxu0 0.0
  %2984 = vmatpush2.xpose.msra.mxu0 0.0
  %2985 = vmatprep.subr.mxu0 0.0
  %2986 = vmatpush2.xpose.msra.mxu0 0.0
  %2987 = vmatprep.subr.mxu0 0.0
  %2988 = vmatpush2.xpose.msra.mxu0 0.0
  %2989 = vmatprep.subr.mxu0 0.0
  %2990 = vmatpush2.xpose.msra.mxu0 0.0
  %2991 = vmatprep.subr.mxu0 0.0
  %2992 = vmatpush2.xpose.msra.mxu0 0.0
  %2993 = vmatprep.subr.mxu0 0.0
  %2994 = vmatpush2.xpose.msra.mxu0 0.0
  %2995 = vmatprep.subr.mxu0 0.0
  %2996 = vmatpush2.xpose.msra.mxu0 0.0
  %2997 = vmatprep.subr.mxu0 0.0
  %2998 = vmatpush2.xpose.msra.mxu0 0.0
  %2999 = vmatprep.mubr.f32.mxu0 0.0
  %3000 = vmatmul.mubr.f32.gmra.mxu0 %v2926
  %v3001 = vpop.f32.mrf.mxu0
  %v3002 = vadd.f32 0.0, %v3001
  %v3003 = vpop.f32.mrf.mxu0
  %3004 = vmatprep.mubr.f32.mxu0 0.0
  %3005 = vmatmul.mubr.f32.gmra.mxu0 %v2929
  %v3006 = vpop.f32.mrf.mxu0
  %v3007 = vadd.f32 0.0, %v3006
  %v3008 = vpop.f32.mrf.mxu0
  %3009 = vdwg.mxu0
  %v3010 = vsel %vm514, %v2911, -inf
  %3011 = vmax.xlane.f32.xlu0 %v3010
  %v3012 = vpop.xlane.xlu0 %3011
  %v3013 = vsel %vm514, %v2916, -inf
  %3014 = vmax.xlane.f32.xlu0 %v3013
  %v3015 = vpop.xlane.xlu0 %3014
  %v3016 = vsel %vm514, %v3002, -inf
  %3017 = vmax.xlane.f32.xlu0 %v3016
  %v3018 = vpop.xlane.xlu0 %3017
  %v3019 = vsel %vm514, %v3007, -inf
  %3020 = vmax.xlane.f32.xlu0 %v3019
  %v3021 = vpop.xlane.xlu0 %3020
  %v3022 = vsub.f32 %v2911, %v3012
  %v3023 = vsub.f32 %v2916, %v3015
  %v3024 = vsub.f32 %v3002, %v3018
  %v3025 = vsub.f32 %v3007, %v3021
  %v3026 = vmul.f32 %v3022, 1.442695
  %v3027 = vpow.pop %v3026
  %v3028 = vmul.f32 %v3023, 1.442695
  %v3029 = vpow.pop %v3028
  %v3030 = vmul.f32 %v3024, 1.442695
  %v3031 = vpow.pop %v3030
  %v3032 = vmul.f32 %v3025, 1.442695
  %v3033 = vpow.pop %v3032
  %v3034 = vsel %vm514, %v3027, 0.0
  %3035 = vadd.xlane.f32.xlu0 %v3034
  %v3036 = vpop.xlane.xlu0 %3035
  %v3037 = vsel %vm514, %v3029, 0.0
  %3038 = vadd.xlane.f32.xlu0 %v3037
  %v3039 = vpop.xlane.xlu0 %3038
  %v3040 = vsel %vm514, %v3031, 0.0
  %3041 = vadd.xlane.f32.xlu0 %v3040
  %v3042 = vpop.xlane.xlu0 %3041
  %v3043 = vsel %vm514, %v3033, 0.0
  %3044 = vadd.xlane.f32.xlu0 %v3043
  %v3045 = vpop.xlane.xlu0 %3044
  %v3046 = vrcp.pop %v3036
  %v3047 = vrcp.pop %v3039
  %v3048 = vrcp.pop %v3042
  %v3049 = vrcp.pop %v3045
  %v3050 = vmul.f32 %v3027, %v3046
  %v3051 = vmul.f32 %v3029, %v3047
  %v3052 = vmul.f32 %v3031, %v3048
  %v3053 = vmul.f32 %v3033, %v3049
  %3054 = vrot.lane.b32.xlu0 %v2806, 64
  %v3055 = vpop.permute.xlu0 %3054
  %3056 = vrot.lane.b32.xlu0 %v2811, 64
  %v3057 = vpop.permute.xlu0 %3056
  %v3061 = vsel %vm514, %v3050, 0
  %v3064 = vsel %vm514, %v3051, 0
  %3066 = vmatprep.subr.mxu0 0.0
  %3067 = vmatpush1.msra.mxu0 0.0
  %3068 = vmatprep.subr.mxu0 0.0
  %3069 = vmatpush1.msra.mxu0 0.0
  %3070 = vmatprep.subr.mxu0 0.0
  %3071 = vmatpush1.msra.mxu0 0.0
  %3072 = vmatprep.subr.mxu0 0.0
  %3073 = vmatpush1.msra.mxu0 0.0
  %3074 = vmatprep.subr.mxu0 0.0
  %3075 = vmatpush1.msra.mxu0 0.0
  %3076 = vmatprep.subr.mxu0 0.0
  %3077 = vmatpush1.msra.mxu0 0.0
  %3078 = vmatprep.subr.mxu0 0.0
  %3079 = vmatpush1.msra.mxu0 0.0
  %3080 = vmatprep.subr.mxu0 0.0
  %3081 = vmatpush1.msra.mxu0 0.0
  %3082 = vmatprep.subr.mxu0 0.0
  %3083 = vmatpush1.msra.mxu0 0.0
  %3084 = vmatprep.subr.mxu0 0.0
  %3085 = vmatpush1.msra.mxu0 0.0
  %3086 = vmatprep.subr.mxu0 0.0
  %3087 = vmatpush1.msra.mxu0 0.0
  %3088 = vmatprep.subr.mxu0 0.0
  %3089 = vmatpush1.msra.mxu0 0.0
  %3090 = vmatprep.subr.mxu0 0.0
  %3091 = vmatpush1.msra.mxu0 0.0
  %3092 = vmatprep.subr.mxu0 0.0
  %3093 = vmatpush1.msra.mxu0 0.0
  %3094 = vmatprep.subr.mxu0 0.0
  %3095 = vmatpush1.msra.mxu0 %v3057
  %3096 = vmatprep.subr.mxu0 0.0
  %3097 = vmatpush1.msra.mxu0 %v3055
  %3098 = vmatprep.subr.mxu0 0.0
  %3099 = vmatpush2.msra.mxu0 0.0
  %3100 = vmatprep.subr.mxu0 0.0
  %3101 = vmatpush2.msra.mxu0 0.0
  %3102 = vmatprep.subr.mxu0 0.0
  %3103 = vmatpush2.msra.mxu0 0.0
  %3104 = vmatprep.subr.mxu0 0.0
  %3105 = vmatpush2.msra.mxu0 0.0
  %3106 = vmatprep.subr.mxu0 0.0
  %3107 = vmatpush2.msra.mxu0 0.0
  %3108 = vmatprep.subr.mxu0 0.0
  %3109 = vmatpush2.msra.mxu0 0.0
  %3110 = vmatprep.subr.mxu0 0.0
  %3111 = vmatpush2.msra.mxu0 0.0
  %3112 = vmatprep.subr.mxu0 0.0
  %3113 = vmatpush2.msra.mxu0 0.0
  %3114 = vmatprep.subr.mxu0 0.0
  %3115 = vmatpush2.msra.mxu0 0.0
  %3116 = vmatprep.subr.mxu0 0.0
  %3117 = vmatpush2.msra.mxu0 0.0
  %3118 = vmatprep.subr.mxu0 0.0
  %3119 = vmatpush2.msra.mxu0 0.0
  %3120 = vmatprep.subr.mxu0 0.0
  %3121 = vmatpush2.msra.mxu0 0.0
  %3122 = vmatprep.subr.mxu0 0.0
  %3123 = vmatpush2.msra.mxu0 0.0
  %3124 = vmatprep.subr.mxu0 0.0
  %3125 = vmatpush2.msra.mxu0 0.0
  %3126 = vmatprep.subr.mxu0 0.0
  %3127 = vmatpush2.msra.mxu0 0.0
  %3128 = vmatprep.subr.mxu0 0.0
  %3129 = vmatpush2.msra.mxu0 0.0
  %3130 = vmatprep.mubr.f32.mxu0 0.0
  %3131 = vmatmul.mubr.f32.gmra.mxu0 %v3061
  %v3132 = vpop.f32.mrf.mxu0
  %v3133 = vadd.f32 0.0, %v3132
  %v3134 = vpop.f32.mrf.mxu0
  %3135 = vmatprep.mubr.f32.mxu0 0.0
  %3136 = vmatmul.mubr.f32.gmra.mxu0 %v3064
  %v3137 = vpop.f32.mrf.mxu0
  %v3138 = vadd.f32 0.0, %v3137
  %v3139 = vpop.f32.mrf.mxu0
  %3140 = vdwg.mxu0
  %3141 = vrot.lane.b32.xlu0 %v2816, 64
  %v3142 = vpop.permute.xlu0 %3141
  %3143 = vrot.lane.b32.xlu0 %v2821, 64
  %v3144 = vpop.permute.xlu0 %3143
  %v3148 = vsel %vm514, %v3052, 0
  %v3151 = vsel %vm514, %v3053, 0
  %3153 = vmatprep.subr.mxu0 0.0
  %3154 = vmatpush1.msra.mxu0 0.0
  %3155 = vmatprep.subr.mxu0 0.0
  %3156 = vmatpush1.msra.mxu0 0.0
  %3157 = vmatprep.subr.mxu0 0.0
  %3158 = vmatpush1.msra.mxu0 0.0
  %3159 = vmatprep.subr.mxu0 0.0
  %3160 = vmatpush1.msra.mxu0 0.0
  %3161 = vmatprep.subr.mxu0 0.0
  %3162 = vmatpush1.msra.mxu0 0.0
  %3163 = vmatprep.subr.mxu0 0.0
  %3164 = vmatpush1.msra.mxu0 0.0
  %3165 = vmatprep.subr.mxu0 0.0
  %3166 = vmatpush1.msra.mxu0 0.0
  %3167 = vmatprep.subr.mxu0 0.0
  %3168 = vmatpush1.msra.mxu0 0.0
  %3169 = vmatprep.subr.mxu0 0.0
  %3170 = vmatpush1.msra.mxu0 0.0
  %3171 = vmatprep.subr.mxu0 0.0
  %3172 = vmatpush1.msra.mxu0 0.0
  %3173 = vmatprep.subr.mxu0 0.0
  %3174 = vmatpush1.msra.mxu0 0.0
  %3175 = vmatprep.subr.mxu0 0.0
  %3176 = vmatpush1.msra.mxu0 0.0
  %3177 = vmatprep.subr.mxu0 0.0
  %3178 = vmatpush1.msra.mxu0 0.0
  %3179 = vmatprep.subr.mxu0 0.0
  %3180 = vmatpush1.msra.mxu0 0.0
  %3181 = vmatprep.subr.mxu0 0.0
  %3182 = vmatpush1.msra.mxu0 %v3144
  %3183 = vmatprep.subr.mxu0 0.0
  %3184 = vmatpush1.msra.mxu0 %v3142
  %3185 = vmatprep.subr.mxu0 0.0
  %3186 = vmatpush2.msra.mxu0 0.0
  %3187 = vmatprep.subr.mxu0 0.0
  %3188 = vmatpush2.msra.mxu0 0.0
  %3189 = vmatprep.subr.mxu0 0.0
  %3190 = vmatpush2.msra.mxu0 0.0
  %3191 = vmatprep.subr.mxu0 0.0
  %3192 = vmatpush2.msra.mxu0 0.0
  %3193 = vmatprep.subr.mxu0 0.0
  %3194 = vmatpush2.msra.mxu0 0.0
  %3195 = vmatprep.subr.mxu0 0.0
  %3196 = vmatpush2.msra.mxu0 0.0
  %3197 = vmatprep.subr.mxu0 0.0
  %3198 = vmatpush2.msra.mxu0 0.0
  %3199 = vmatprep.subr.mxu0 0.0
  %3200 = vmatpush2.msra.mxu0 0.0
  %3201 = vmatprep.subr.mxu0 0.0
  %3202 = vmatpush2.msra.mxu0 0.0
  %3203 = vmatprep.subr.mxu0 0.0
  %3204 = vmatpush2.msra.mxu0 0.0
  %3205 = vmatprep.subr.mxu0 0.0
  %3206 = vmatpush2.msra.mxu0 0.0
  %3207 = vmatprep.subr.mxu0 0.0
  %3208 = vmatpush2.msra.mxu0 0.0
  %3209 = vmatprep.subr.mxu0 0.0
  %3210 = vmatpush2.msra.mxu0 0.0
  %3211 = vmatprep.subr.mxu0 0.0
  %3212 = vmatpush2.msra.mxu0 0.0
  %3213 = vmatprep.subr.mxu0 0.0
  %3214 = vmatpush2.msra.mxu0 0.0
  %3215 = vmatprep.subr.mxu0 0.0
  %3216 = vmatpush2.msra.mxu0 0.0
  %3217 = vmatprep.mubr.f32.mxu0 0.0
  %3218 = vmatmul.mubr.f32.gmra.mxu0 %v3148
  %v3219 = vpop.f32.mrf.mxu0
  %v3220 = vadd.f32 0.0, %v3219
  %v3221 = vpop.f32.mrf.mxu0
  %3222 = vmatprep.mubr.f32.mxu0 0.0
  %3223 = vmatmul.mubr.f32.gmra.mxu0 %v3151
  %v3224 = vpop.f32.mrf.mxu0
  %v3225 = vadd.f32 0.0, %v3224
  %v3226 = vpop.f32.mrf.mxu0
  %3227 = vdwg.mxu0
  %3228 = vrot.lane.b32.xlu0 %v2824, 120
  %v3229 = vpop.permute.xlu0 %3228
  %3230 = vrot.lane.b32.xlu0 %v2825, 120
  %v3231 = vpop.permute.xlu0 %3230
  %3232 = vrot.lane.b32.xlu0 %v2806, 88
  %v3233 = vpop.permute.xlu0 %3232
  %3234 = vrot.lane.b32.xlu0 %v2811, 88
  %v3235 = vpop.permute.xlu0 %3234
  %v3236 = vsel %vm337, %v3229, 0
  %v3238 = vsel %vm337, %v3231, 0
  %v3240 = vsel %vm337, %v3233, 0
  %v3242 = vsel %vm337, %v3235, 0
  %3244 = vmatprep.subr.mxu0 0.0
  %3245 = vmatpush1.xpose.msra.mxu0 0.0
  %3246 = vmatprep.subr.mxu0 0.0
  %3247 = vmatpush1.xpose.msra.mxu0 0.0
  %3248 = vmatprep.subr.mxu0 0.0
  %3249 = vmatpush1.xpose.msra.mxu0 0.0
  %3250 = vmatprep.subr.mxu0 0.0
  %3251 = vmatpush1.xpose.msra.mxu0 0.0
  %3252 = vmatprep.subr.mxu0 0.0
  %3253 = vmatpush1.xpose.msra.mxu0 0.0
  %3254 = vmatprep.subr.mxu0 0.0
  %3255 = vmatpush1.xpose.msra.mxu0 0.0
  %3256 = vmatprep.subr.mxu0 0.0
  %3257 = vmatpush1.xpose.msra.mxu0 0.0
  %3258 = vmatprep.subr.mxu0 0.0
  %3259 = vmatpush1.xpose.msra.mxu0 0.0
  %3260 = vmatprep.subr.mxu0 0.0
  %3261 = vmatpush1.xpose.msra.mxu0 0.0
  %3262 = vmatprep.subr.mxu0 0.0
  %3263 = vmatpush1.xpose.msra.mxu0 0.0
  %3264 = vmatprep.subr.mxu0 0.0
  %3265 = vmatpush1.xpose.msra.mxu0 0.0
  %3266 = vmatprep.subr.mxu0 0.0
  %3267 = vmatpush1.xpose.msra.mxu0 0.0
  %3268 = vmatprep.subr.mxu0 0.0
  %3269 = vmatpush1.xpose.msra.mxu0 0.0
  %3270 = vmatprep.subr.mxu0 0.0
  %3271 = vmatpush1.xpose.msra.mxu0 0.0
  %3272 = vmatprep.subr.mxu0 0.0
  %3273 = vmatpush1.xpose.msra.mxu0 %v3242
  %3274 = vmatprep.subr.mxu0 0.0
  %3275 = vmatpush1.xpose.msra.mxu0 %v3240
  %3276 = vmatprep.subr.mxu0 0.0
  %3277 = vmatpush2.xpose.msra.mxu0 0.0
  %3278 = vmatprep.subr.mxu0 0.0
  %3279 = vmatpush2.xpose.msra.mxu0 0.0
  %3280 = vmatprep.subr.mxu0 0.0
  %3281 = vmatpush2.xpose.msra.mxu0 0.0
  %3282 = vmatprep.subr.mxu0 0.0
  %3283 = vmatpush2.xpose.msra.mxu0 0.0
  %3284 = vmatprep.subr.mxu0 0.0
  %3285 = vmatpush2.xpose.msra.mxu0 0.0
  %3286 = vmatprep.subr.mxu0 0.0
  %3287 = vmatpush2.xpose.msra.mxu0 0.0
  %3288 = vmatprep.subr.mxu0 0.0
  %3289 = vmatpush2.xpose.msra.mxu0 0.0
  %3290 = vmatprep.subr.mxu0 0.0
  %3291 = vmatpush2.xpose.msra.mxu0 0.0
  %3292 = vmatprep.subr.mxu0 0.0
  %3293 = vmatpush2.xpose.msra.mxu0 0.0
  %3294 = vmatprep.subr.mxu0 0.0
  %3295 = vmatpush2.xpose.msra.mxu0 0.0
  %3296 = vmatprep.subr.mxu0 0.0
  %3297 = vmatpush2.xpose.msra.mxu0 0.0
  %3298 = vmatprep.subr.mxu0 0.0
  %3299 = vmatpush2.xpose.msra.mxu0 0.0
  %3300 = vmatprep.subr.mxu0 0.0
  %3301 = vmatpush2.xpose.msra.mxu0 0.0
  %3302 = vmatprep.subr.mxu0 0.0
  %3303 = vmatpush2.xpose.msra.mxu0 0.0
  %3304 = vmatprep.subr.mxu0 0.0
  %3305 = vmatpush2.xpose.msra.mxu0 0.0
  %3306 = vmatprep.subr.mxu0 0.0
  %3307 = vmatpush2.xpose.msra.mxu0 0.0
  %3308 = vmatprep.mubr.f32.mxu0 0.0
  %3309 = vmatmul.mubr.f32.gmra.mxu0 %v3236
  %v3310 = vpop.f32.mrf.mxu0
  %v3311 = vadd.f32 0.0, %v3310
  %v3312 = vpop.f32.mrf.mxu0
  %3313 = vmatprep.mubr.f32.mxu0 0.0
  %3314 = vmatmul.mubr.f32.gmra.mxu0 %v3238
  %v3315 = vpop.f32.mrf.mxu0
  %v3316 = vadd.f32 0.0, %v3315
  %v3317 = vpop.f32.mrf.mxu0
  %3318 = vdwg.mxu0
  %3319 = vrot.lane.b32.xlu0 %v2826, 120
  %v3320 = vpop.permute.xlu0 %3319
  %3321 = vrot.lane.b32.xlu0 %v2827, 120
  %v3322 = vpop.permute.xlu0 %3321
  %3323 = vrot.lane.b32.xlu0 %v2816, 88
  %v3324 = vpop.permute.xlu0 %3323
  %3325 = vrot.lane.b32.xlu0 %v2821, 88
  %v3326 = vpop.permute.xlu0 %3325
  %v3327 = vsel %vm337, %v3320, 0
  %v3329 = vsel %vm337, %v3322, 0
  %v3331 = vsel %vm337, %v3324, 0
  %v3333 = vsel %vm337, %v3326, 0
  %3335 = vmatprep.subr.mxu0 0.0
  %3336 = vmatpush1.xpose.msra.mxu0 0.0
  %3337 = vmatprep.subr.mxu0 0.0
  %3338 = vmatpush1.xpose.msra.mxu0 0.0
  %3339 = vmatprep.subr.mxu0 0.0
  %3340 = vmatpush1.xpose.msra.mxu0 0.0
  %3341 = vmatprep.subr.mxu0 0.0
  %3342 = vmatpush1.xpose.msra.mxu0 0.0
  %3343 = vmatprep.subr.mxu0 0.0
  %3344 = vmatpush1.xpose.msra.mxu0 0.0
  %3345 = vmatprep.subr.mxu0 0.0
  %3346 = vmatpush1.xpose.msra.mxu0 0.0
  %3347 = vmatprep.subr.mxu0 0.0
  %3348 = vmatpush1.xpose.msra.mxu0 0.0
  %3349 = vmatprep.subr.mxu0 0.0
  %3350 = vmatpush1.xpose.msra.mxu0 0.0
  %3351 = vmatprep.subr.mxu0 0.0
  %3352 = vmatpush1.xpose.msra.mxu0 0.0
  %3353 = vmatprep.subr.mxu0 0.0
  %3354 = vmatpush1.xpose.msra.mxu0 0.0
  %3355 = vmatprep.subr.mxu0 0.0
  %3356 = vmatpush1.xpose.msra.mxu0 0.0
  %3357 = vmatprep.subr.mxu0 0.0
  %3358 = vmatpush1.xpose.msra.mxu0 0.0
  %3359 = vmatprep.subr.mxu0 0.0
  %3360 = vmatpush1.xpose.msra.mxu0 0.0
  %3361 = vmatprep.subr.mxu0 0.0
  %3362 = vmatpush1.xpose.msra.mxu0 0.0
  %3363 = vmatprep.subr.mxu0 0.0
  %3364 = vmatpush1.xpose.msra.mxu0 %v3333
  %3365 = vmatprep.subr.mxu0 0.0
  %3366 = vmatpush1.xpose.msra.mxu0 %v3331
  %3367 = vmatprep.subr.mxu0 0.0
  %3368 = vmatpush2.xpose.msra.mxu0 0.0
  %3369 = vmatprep.subr.mxu0 0.0
  %3370 = vmatpush2.xpose.msra.mxu0 0.0
  %3371 = vmatprep.subr.mxu0 0.0
  %3372 = vmatpush2.xpose.msra.mxu0 0.0
  %3373 = vmatprep.subr.mxu0 0.0
  %3374 = vmatpush2.xpose.msra.mxu0 0.0
  %3375 = vmatprep.subr.mxu0 0.0
  %3376 = vmatpush2.xpose.msra.mxu0 0.0
  %3377 = vmatprep.subr.mxu0 0.0
  %3378 = vmatpush2.xpose.msra.mxu0 0.0
  %3379 = vmatprep.subr.mxu0 0.0
  %3380 = vmatpush2.xpose.msra.mxu0 0.0
  %3381 = vmatprep.subr.mxu0 0.0
  %3382 = vmatpush2.xpose.msra.mxu0 0.0
  %3383 = vmatprep.subr.mxu0 0.0
  %3384 = vmatpush2.xpose.msra.mxu0 0.0
  %3385 = vmatprep.subr.mxu0 0.0
  %3386 = vmatpush2.xpose.msra.mxu0 0.0
  %3387 = vmatprep.subr.mxu0 0.0
  %3388 = vmatpush2.xpose.msra.mxu0 0.0
  %3389 = vmatprep.subr.mxu0 0.0
  %3390 = vmatpush2.xpose.msra.mxu0 0.0
  %3391 = vmatprep.subr.mxu0 0.0
  %3392 = vmatpush2.xpose.msra.mxu0 0.0
  %3393 = vmatprep.subr.mxu0 0.0
  %3394 = vmatpush2.xpose.msra.mxu0 0.0
  %3395 = vmatprep.subr.mxu0 0.0
  %3396 = vmatpush2.xpose.msra.mxu0 0.0
  %3397 = vmatprep.subr.mxu0 0.0
  %3398 = vmatpush2.xpose.msra.mxu0 0.0
  %3399 = vmatprep.mubr.f32.mxu0 0.0
  %3400 = vmatmul.mubr.f32.gmra.mxu0 %v3327
  %v3401 = vpop.f32.mrf.mxu0
  %v3402 = vadd.f32 0.0, %v3401
  %v3403 = vpop.f32.mrf.mxu0
  %3404 = vmatprep.mubr.f32.mxu0 0.0
  %3405 = vmatmul.mubr.f32.gmra.mxu0 %v3329
  %v3406 = vpop.f32.mrf.mxu0
  %v3407 = vadd.f32 0.0, %v3406
  %v3408 = vpop.f32.mrf.mxu0
  %3409 = vdwg.mxu0
  %v3410 = vsel %vm514, %v3311, -inf
  %3411 = vmax.xlane.f32.xlu0 %v3410
  %v3412 = vpop.xlane.xlu0 %3411
  %v3413 = vsel %vm514, %v3316, -inf
  %3414 = vmax.xlane.f32.xlu0 %v3413
  %v3415 = vpop.xlane.xlu0 %3414
  %v3416 = vsel %vm514, %v3402, -inf
  %3417 = vmax.xlane.f32.xlu0 %v3416
  %v3418 = vpop.xlane.xlu0 %3417
  %v3419 = vsel %vm514, %v3407, -inf
  %3420 = vmax.xlane.f32.xlu0 %v3419
  %v3421 = vpop.xlane.xlu0 %3420
  %v3422 = vsub.f32 %v3311, %v3412
  %v3423 = vsub.f32 %v3316, %v3415
  %v3424 = vsub.f32 %v3402, %v3418
  %v3425 = vsub.f32 %v3407, %v3421
  %v3426 = vmul.f32 %v3422, 1.442695
  %v3427 = vpow.pop %v3426
  %v3428 = vmul.f32 %v3423, 1.442695
  %v3429 = vpow.pop %v3428
  %v3430 = vmul.f32 %v3424, 1.442695
  %v3431 = vpow.pop %v3430
  %v3432 = vmul.f32 %v3425, 1.442695
  %v3433 = vpow.pop %v3432
  %v3434 = vsel %vm514, %v3427, 0.0
  %3435 = vadd.xlane.f32.xlu0 %v3434
  %v3436 = vpop.xlane.xlu0 %3435
  %v3437 = vsel %vm514, %v3429, 0.0
  %3438 = vadd.xlane.f32.xlu0 %v3437
  %v3439 = vpop.xlane.xlu0 %3438
  %v3440 = vsel %vm514, %v3431, 0.0
  %3441 = vadd.xlane.f32.xlu0 %v3440
  %v3442 = vpop.xlane.xlu0 %3441
  %v3443 = vsel %vm514, %v3433, 0.0
  %3444 = vadd.xlane.f32.xlu0 %v3443
  %v3445 = vpop.xlane.xlu0 %3444
  %v3446 = vrcp.pop %v3436
  %v3447 = vrcp.pop %v3439
  %v3448 = vrcp.pop %v3442
  %v3449 = vrcp.pop %v3445
  %v3450 = vmul.f32 %v3427, %v3446
  %v3451 = vmul.f32 %v3429, %v3447
  %v3452 = vmul.f32 %v3431, %v3448
  %v3453 = vmul.f32 %v3433, %v3449
  %3454 = vrot.lane.b32.xlu0 %v2806, 56
  %v3455 = vpop.permute.xlu0 %3454
  %3456 = vrot.lane.b32.xlu0 %v2811, 56
  %v3457 = vpop.permute.xlu0 %3456
  %v3461 = vsel %vm514, %v3450, 0
  %v3464 = vsel %vm514, %v3451, 0
  %3466 = vmatprep.subr.mxu0 0.0
  %3467 = vmatpush1.msra.mxu0 0.0
  %3468 = vmatprep.subr.mxu0 0.0
  %3469 = vmatpush1.msra.mxu0 0.0
  %3470 = vmatprep.subr.mxu0 0.0
  %3471 = vmatpush1.msra.mxu0 0.0
  %3472 = vmatprep.subr.mxu0 0.0
  %3473 = vmatpush1.msra.mxu0 0.0
  %3474 = vmatprep.subr.mxu0 0.0
  %3475 = vmatpush1.msra.mxu0 0.0
  %3476 = vmatprep.subr.mxu0 0.0
  %3477 = vmatpush1.msra.mxu0 0.0
  %3478 = vmatprep.subr.mxu0 0.0
  %3479 = vmatpush1.msra.mxu0 0.0
  %3480 = vmatprep.subr.mxu0 0.0
  %3481 = vmatpush1.msra.mxu0 0.0
  %3482 = vmatprep.subr.mxu0 0.0
  %3483 = vmatpush1.msra.mxu0 0.0
  %3484 = vmatprep.subr.mxu0 0.0
  %3485 = vmatpush1.msra.mxu0 0.0
  %3486 = vmatprep.subr.mxu0 0.0
  %3487 = vmatpush1.msra.mxu0 0.0
  %3488 = vmatprep.subr.mxu0 0.0
  %3489 = vmatpush1.msra.mxu0 0.0
  %3490 = vmatprep.subr.mxu0 0.0
  %3491 = vmatpush1.msra.mxu0 0.0
  %3492 = vmatprep.subr.mxu0 0.0
  %3493 = vmatpush1.msra.mxu0 0.0
  %3494 = vmatprep.subr.mxu0 0.0
  %3495 = vmatpush1.msra.mxu0 %v3457
  %3496 = vmatprep.subr.mxu0 0.0
  %3497 = vmatpush1.msra.mxu0 %v3455
  %3498 = vmatprep.subr.mxu0 0.0
  %3499 = vmatpush2.msra.mxu0 0.0
  %3500 = vmatprep.subr.mxu0 0.0
  %3501 = vmatpush2.msra.mxu0 0.0
  %3502 = vmatprep.subr.mxu0 0.0
  %3503 = vmatpush2.msra.mxu0 0.0
  %3504 = vmatprep.subr.mxu0 0.0
  %3505 = vmatpush2.msra.mxu0 0.0
  %3506 = vmatprep.subr.mxu0 0.0
  %3507 = vmatpush2.msra.mxu0 0.0
  %3508 = vmatprep.subr.mxu0 0.0
  %3509 = vmatpush2.msra.mxu0 0.0
  %3510 = vmatprep.subr.mxu0 0.0
  %3511 = vmatpush2.msra.mxu0 0.0
  %3512 = vmatprep.subr.mxu0 0.0
  %3513 = vmatpush2.msra.mxu0 0.0
  %3514 = vmatprep.subr.mxu0 0.0
  %3515 = vmatpush2.msra.mxu0 0.0
  %3516 = vmatprep.subr.mxu0 0.0
  %3517 = vmatpush2.msra.mxu0 0.0
  %3518 = vmatprep.subr.mxu0 0.0
  %3519 = vmatpush2.msra.mxu0 0.0
  %3520 = vmatprep.subr.mxu0 0.0
  %3521 = vmatpush2.msra.mxu0 0.0
  %3522 = vmatprep.subr.mxu0 0.0
  %3523 = vmatpush2.msra.mxu0 0.0
  %3524 = vmatprep.subr.mxu0 0.0
  %3525 = vmatpush2.msra.mxu0 0.0
  %3526 = vmatprep.subr.mxu0 0.0
  %3527 = vmatpush2.msra.mxu0 0.0
  %3528 = vmatprep.subr.mxu0 0.0
  %3529 = vmatpush2.msra.mxu0 0.0
  %3530 = vmatprep.mubr.f32.mxu0 0.0
  %3531 = vmatmul.mubr.f32.gmra.mxu0 %v3461
  %v3532 = vpop.f32.mrf.mxu0
  %v3533 = vadd.f32 0.0, %v3532
  %v3534 = vpop.f32.mrf.mxu0
  %3535 = vmatprep.mubr.f32.mxu0 0.0
  %3536 = vmatmul.mubr.f32.gmra.mxu0 %v3464
  %v3537 = vpop.f32.mrf.mxu0
  %v3538 = vadd.f32 0.0, %v3537
  %v3539 = vpop.f32.mrf.mxu0
  %3540 = vdwg.mxu0
  %3541 = vrot.lane.b32.xlu0 %v2816, 56
  %v3542 = vpop.permute.xlu0 %3541
  %3543 = vrot.lane.b32.xlu0 %v2821, 56
  %v3544 = vpop.permute.xlu0 %3543
  %v3548 = vsel %vm514, %v3452, 0
  %v3551 = vsel %vm514, %v3453, 0
  %3553 = vmatprep.subr.mxu0 0.0
  %3554 = vmatpush1.msra.mxu0 0.0
  %3555 = vmatprep.subr.mxu0 0.0
  %3556 = vmatpush1.msra.mxu0 0.0
  %3557 = vmatprep.subr.mxu0 0.0
  %3558 = vmatpush1.msra.mxu0 0.0
  %3559 = vmatprep.subr.mxu0 0.0
  %3560 = vmatpush1.msra.mxu0 0.0
  %3561 = vmatprep.subr.mxu0 0.0
  %3562 = vmatpush1.msra.mxu0 0.0
  %3563 = vmatprep.subr.mxu0 0.0
  %3564 = vmatpush1.msra.mxu0 0.0
  %3565 = vmatprep.subr.mxu0 0.0
  %3566 = vmatpush1.msra.mxu0 0.0
  %3567 = vmatprep.subr.mxu0 0.0
  %3568 = vmatpush1.msra.mxu0 0.0
  %3569 = vmatprep.subr.mxu0 0.0
  %3570 = vmatpush1.msra.mxu0 0.0
  %3571 = vmatprep.subr.mxu0 0.0
  %3572 = vmatpush1.msra.mxu0 0.0
  %3573 = vmatprep.subr.mxu0 0.0
  %3574 = vmatpush1.msra.mxu0 0.0
  %3575 = vmatprep.subr.mxu0 0.0
  %3576 = vmatpush1.msra.mxu0 0.0
  %3577 = vmatprep.subr.mxu0 0.0
  %3578 = vmatpush1.msra.mxu0 0.0
  %3579 = vmatprep.subr.mxu0 0.0
  %3580 = vmatpush1.msra.mxu0 0.0
  %3581 = vmatprep.subr.mxu0 0.0
  %3582 = vmatpush1.msra.mxu0 %v3544
  %3583 = vmatprep.subr.mxu0 0.0
  %3584 = vmatpush1.msra.mxu0 %v3542
  %3585 = vmatprep.subr.mxu0 0.0
  %3586 = vmatpush2.msra.mxu0 0.0
  %3587 = vmatprep.subr.mxu0 0.0
  %3588 = vmatpush2.msra.mxu0 0.0
  %3589 = vmatprep.subr.mxu0 0.0
  %3590 = vmatpush2.msra.mxu0 0.0
  %3591 = vmatprep.subr.mxu0 0.0
  %3592 = vmatpush2.msra.mxu0 0.0
  %3593 = vmatprep.subr.mxu0 0.0
  %3594 = vmatpush2.msra.mxu0 0.0
  %3595 = vmatprep.subr.mxu0 0.0
  %3596 = vmatpush2.msra.mxu0 0.0
  %3597 = vmatprep.subr.mxu0 0.0
  %3598 = vmatpush2.msra.mxu0 0.0
  %3599 = vmatprep.subr.mxu0 0.0
  %3600 = vmatpush2.msra.mxu0 0.0
  %3601 = vmatprep.subr.mxu0 0.0
  %3602 = vmatpush2.msra.mxu0 0.0
  %3603 = vmatprep.subr.mxu0 0.0
  %3604 = vmatpush2.msra.mxu0 0.0
  %3605 = vmatprep.subr.mxu0 0.0
  %3606 = vmatpush2.msra.mxu0 0.0
  %3607 = vmatprep.subr.mxu0 0.0
  %3608 = vmatpush2.msra.mxu0 0.0
  %3609 = vmatprep.subr.mxu0 0.0
  %3610 = vmatpush2.msra.mxu0 0.0
  %3611 = vmatprep.subr.mxu0 0.0
  %3612 = vmatpush2.msra.mxu0 0.0
  %3613 = vmatprep.subr.mxu0 0.0
  %3614 = vmatpush2.msra.mxu0 0.0
  %3615 = vmatprep.subr.mxu0 0.0
  %3616 = vmatpush2.msra.mxu0 0.0
  %3617 = vmatprep.mubr.f32.mxu0 0.0
  %3618 = vmatmul.mubr.f32.gmra.mxu0 %v3548
  %v3619 = vpop.f32.mrf.mxu0
  %v3620 = vadd.f32 0.0, %v3619
  %v3621 = vpop.f32.mrf.mxu0
  %3622 = vmatprep.mubr.f32.mxu0 0.0
  %3623 = vmatmul.mubr.f32.gmra.mxu0 %v3551
  %v3624 = vpop.f32.mrf.mxu0
  %v3625 = vadd.f32 0.0, %v3624
  %v3626 = vpop.f32.mrf.mxu0
  %3627 = vdwg.mxu0
  %v3629 = vsel %vm337, %v3533, 0
  %v3632 = vsel %vm337, %v3538, 0
  %v3635 = vsel %vm337, %v3620, 0
  %v3638 = vsel %vm337, %v3625, 0
  %3640 = vmatprep.subr.mxu0 0.0
  %3641 = vmatpush1.msra.mxu0 0.0
  %3642 = vmatprep.subr.mxu0 0.0
  %3643 = vmatpush1.msra.mxu0 0.0
  %3644 = vmatprep.subr.mxu0 0.0
  %3645 = vmatpush1.msra.mxu0 0.0
  %3646 = vmatprep.subr.mxu0 0.0
  %3647 = vmatpush1.msra.mxu0 0.0
  %3648 = vmatprep.subr.mxu0 0.0
  %3649 = vmatpush1.msra.mxu0 0.0
  %3650 = vmatprep.subr.mxu0 0.0
  %3651 = vmatpush1.msra.mxu0 0.0
  %3652 = vmatprep.subr.mxu0 0.0
  %3653 = vmatpush1.msra.mxu0 0.0
  %3654 = vmatprep.subr.mxu0 0.0
  %3655 = vmatpush1.msra.mxu0 0.0
  %3656 = vmatprep.subr.mxu0 0.0
  %3657 = vmatpush1.msra.mxu0 0.0
  %3658 = vmatprep.subr.mxu0 0.0
  %3659 = vmatpush1.msra.mxu0 0.0
  %3660 = vmatprep.subr.mxu0 0.0
  %3661 = vmatpush1.msra.mxu0 0.0
  %3662 = vmatprep.subr.mxu0 0.0
  %3663 = vmatpush1.msra.mxu0 0.0
  %3664 = vmatprep.subr.mxu0 0.0
  %3665 = vmatpush1.msra.mxu0 0.0
  %3666 = vmatprep.subr.mxu0 0.0
  %3667 = vmatpush1.msra.mxu0 0.0
  %3668 = vmatprep.subr.mxu0 0.0
  %3669 = vmatpush1.msra.mxu0 0.0
  %3670 = vmatprep.subr.mxu0 0.0
  %3671 = vmatpush1.msra.mxu0 %v2644
  %3672 = vmatprep.subr.mxu0 0.0
  %3673 = vmatpush2.msra.mxu0 0.0
  %3674 = vmatprep.subr.mxu0 0.0
  %3675 = vmatpush2.msra.mxu0 0.0
  %3676 = vmatprep.subr.mxu0 0.0
  %3677 = vmatpush2.msra.mxu0 0.0
  %3678 = vmatprep.subr.mxu0 0.0
  %3679 = vmatpush2.msra.mxu0 0.0
  %3680 = vmatprep.subr.mxu0 0.0
  %3681 = vmatpush2.msra.mxu0 0.0
  %3682 = vmatprep.subr.mxu0 0.0
  %3683 = vmatpush2.msra.mxu0 0.0
  %3684 = vmatprep.subr.mxu0 0.0
  %3685 = vmatpush2.msra.mxu0 0.0
  %3686 = vmatprep.subr.mxu0 0.0
  %3687 = vmatpush2.msra.mxu0 0.0
  %3688 = vmatprep.subr.mxu0 0.0
  %3689 = vmatpush2.msra.mxu0 0.0
  %3690 = vmatprep.subr.mxu0 0.0
  %3691 = vmatpush2.msra.mxu0 0.0
  %3692 = vmatprep.subr.mxu0 0.0
  %3693 = vmatpush2.msra.mxu0 0.0
  %3694 = vmatprep.subr.mxu0 0.0
  %3695 = vmatpush2.msra.mxu0 0.0
  %3696 = vmatprep.subr.mxu0 0.0
  %3697 = vmatpush2.msra.mxu0 0.0
  %3698 = vmatprep.subr.mxu0 0.0
  %3699 = vmatpush2.msra.mxu0 0.0
  %3700 = vmatprep.subr.mxu0 0.0
  %3701 = vmatpush2.msra.mxu0 0.0
  %3702 = vmatprep.subr.mxu0 0.0
  %3703 = vmatpush2.msra.mxu0 0.0
  %3704 = vmatprep.mubr.f32.mxu0 0.0
  %3705 = vmatmul.mubr.f32.gmra.mxu0 %v3629
  %v3706 = vpop.f32.mrf.mxu0
  %v3707 = vadd.f32 0.0, %v3706
  %v3708 = vpop.f32.mrf.mxu0
  %3709 = vmatprep.mubr.f32.mxu0 0.0
  %3710 = vmatmul.mubr.f32.gmra.mxu0 %v3632
  %v3711 = vpop.f32.mrf.mxu0
  %v3712 = vadd.f32 0.0, %v3711
  %v3713 = vpop.f32.mrf.mxu0
  %3714 = vmatprep.mubr.f32.mxu0 0.0
  %3715 = vmatmul.mubr.f32.gmra.mxu0 %v3635
  %v3716 = vpop.f32.mrf.mxu0
  %v3717 = vadd.f32 0.0, %v3716
  %v3718 = vpop.f32.mrf.mxu0
  %3719 = vmatprep.mubr.f32.mxu0 0.0
  %3720 = vmatmul.mubr.f32.gmra.mxu0 %v3638
  %v3721 = vpop.f32.mrf.mxu0
  %v3722 = vadd.f32 0.0, %v3721
  %v3723 = vpop.f32.mrf.mxu0
  %3724 = vdwg.mxu0
  %v3726 = vsel %vm337, %v3133, 0
  %v3729 = vsel %vm337, %v3138, 0
  %v3732 = vsel %vm337, %v3220, 0
  %v3735 = vsel %vm337, %v3225, 0
  %3737 = vmatprep.subr.mxu0 0.0
  %3738 = vmatpush1.msra.mxu0 0.0
  %3739 = vmatprep.subr.mxu0 0.0
  %3740 = vmatpush1.msra.mxu0 0.0
  %3741 = vmatprep.subr.mxu0 0.0
  %3742 = vmatpush1.msra.mxu0 0.0
  %3743 = vmatprep.subr.mxu0 0.0
  %3744 = vmatpush1.msra.mxu0 0.0
  %3745 = vmatprep.subr.mxu0 0.0
  %3746 = vmatpush1.msra.mxu0 0.0
  %3747 = vmatprep.subr.mxu0 0.0
  %3748 = vmatpush1.msra.mxu0 0.0
  %3749 = vmatprep.subr.mxu0 0.0
  %3750 = vmatpush1.msra.mxu0 0.0
  %3751 = vmatprep.subr.mxu0 0.0
  %3752 = vmatpush1.msra.mxu0 0.0
  %3753 = vmatprep.subr.mxu0 0.0
  %3754 = vmatpush1.msra.mxu0 0.0
  %3755 = vmatprep.subr.mxu0 0.0
  %3756 = vmatpush1.msra.mxu0 0.0
  %3757 = vmatprep.subr.mxu0 0.0
  %3758 = vmatpush1.msra.mxu0 0.0
  %3759 = vmatprep.subr.mxu0 0.0
  %3760 = vmatpush1.msra.mxu0 0.0
  %3761 = vmatprep.subr.mxu0 0.0
  %3762 = vmatpush1.msra.mxu0 0.0
  %3763 = vmatprep.subr.mxu0 0.0
  %3764 = vmatpush1.msra.mxu0 0.0
  %3765 = vmatprep.subr.mxu0 0.0
  %3766 = vmatpush1.msra.mxu0 0.0
  %3767 = vmatprep.subr.mxu0 0.0
  %3768 = vmatpush1.msra.mxu0 %v2643
  %3769 = vmatprep.subr.mxu0 0.0
  %3770 = vmatpush2.msra.mxu0 0.0
  %3771 = vmatprep.subr.mxu0 0.0
  %3772 = vmatpush2.msra.mxu0 0.0
  %3773 = vmatprep.subr.mxu0 0.0
  %3774 = vmatpush2.msra.mxu0 0.0
  %3775 = vmatprep.subr.mxu0 0.0
  %3776 = vmatpush2.msra.mxu0 0.0
  %3777 = vmatprep.subr.mxu0 0.0
  %3778 = vmatpush2.msra.mxu0 0.0
  %3779 = vmatprep.subr.mxu0 0.0
  %3780 = vmatpush2.msra.mxu0 0.0
  %3781 = vmatprep.subr.mxu0 0.0
  %3782 = vmatpush2.msra.mxu0 0.0
  %3783 = vmatprep.subr.mxu0 0.0
  %3784 = vmatpush2.msra.mxu0 0.0
  %3785 = vmatprep.subr.mxu0 0.0
  %3786 = vmatpush2.msra.mxu0 0.0
  %3787 = vmatprep.subr.mxu0 0.0
  %3788 = vmatpush2.msra.mxu0 0.0
  %3789 = vmatprep.subr.mxu0 0.0
  %3790 = vmatpush2.msra.mxu0 0.0
  %3791 = vmatprep.subr.mxu0 0.0
  %3792 = vmatpush2.msra.mxu0 0.0
  %3793 = vmatprep.subr.mxu0 0.0
  %3794 = vmatpush2.msra.mxu0 0.0
  %3795 = vmatprep.subr.mxu0 0.0
  %3796 = vmatpush2.msra.mxu0 0.0
  %3797 = vmatprep.subr.mxu0 0.0
  %3798 = vmatpush2.msra.mxu0 0.0
  %3799 = vmatprep.subr.mxu0 0.0
  %3800 = vmatpush2.msra.mxu0 0.0
  %3801 = vmatprep.mubr.f32.mxu0 0.0
  %3802 = vmatmul.mubr.f32.gmra.mxu0 %v3726
  %v3803 = vpop.f32.mrf.mxu0
  %v3804 = vadd.f32 %v3707, %v3803
  %v3805 = vpop.f32.mrf.mxu0
  %3806 = vmatprep.mubr.f32.mxu0 0.0
  %3807 = vmatmul.mubr.f32.gmra.mxu0 %v3729
  %v3808 = vpop.f32.mrf.mxu0
  %v3809 = vadd.f32 %v3712, %v3808
  %v3810 = vpop.f32.mrf.mxu0
  %3811 = vmatprep.mubr.f32.mxu0 0.0
  %3812 = vmatmul.mubr.f32.gmra.mxu0 %v3732
  %v3813 = vpop.f32.mrf.mxu0
  %v3814 = vadd.f32 %v3717, %v3813
  %v3815 = vpop.f32.mrf.mxu0
  %3816 = vmatprep.mubr.f32.mxu0 0.0
  %3817 = vmatmul.mubr.f32.gmra.mxu0 %v3735
  %v3818 = vpop.f32.mrf.mxu0
  %v3819 = vadd.f32 %v3722, %v3818
  %v3820 = vpop.f32.mrf.mxu0
  %3821 = vdwg.mxu0
  %3822 = vrot.lane.b32.xlu0 %v2824, 112
  %v3823 = vpop.permute.xlu0 %3822
  %3824 = vrot.lane.b32.xlu0 %v2825, 112
  %v3825 = vpop.permute.xlu0 %3824
  %3826 = vrot.lane.b32.xlu0 %v2806, 80
  %v3827 = vpop.permute.xlu0 %3826
  %3828 = vrot.lane.b32.xlu0 %v2811, 80
  %v3829 = vpop.permute.xlu0 %3828
  %v3830 = vsel %vm337, %v3823, 0
  %v3832 = vsel %vm337, %v3825, 0
  %v3834 = vsel %vm337, %v3827, 0
  %v3836 = vsel %vm337, %v3829, 0
  %3838 = vmatprep.subr.mxu0 0.0
  %3839 = vmatpush1.xpose.msra.mxu0 0.0
  %3840 = vmatprep.subr.mxu0 0.0
  %3841 = vmatpush1.xpose.msra.mxu0 0.0
  %3842 = vmatprep.subr.mxu0 0.0
  %3843 = vmatpush1.xpose.msra.mxu0 0.0
  %3844 = vmatprep.subr.mxu0 0.0
  %3845 = vmatpush1.xpose.msra.mxu0 0.0
  %3846 = vmatprep.subr.mxu0 0.0
  %3847 = vmatpush1.xpose.msra.mxu0 0.0
  %3848 = vmatprep.subr.mxu0 0.0
  %3849 = vmatpush1.xpose.msra.mxu0 0.0
  %3850 = vmatprep.subr.mxu0 0.0
  %3851 = vmatpush1.xpose.msra.mxu0 0.0
  %3852 = vmatprep.subr.mxu0 0.0
  %3853 = vmatpush1.xpose.msra.mxu0 0.0
  %3854 = vmatprep.subr.mxu0 0.0
  %3855 = vmatpush1.xpose.msra.mxu0 0.0
  %3856 = vmatprep.subr.mxu0 0.0
  %3857 = vmatpush1.xpose.msra.mxu0 0.0
  %3858 = vmatprep.subr.mxu0 0.0
  %3859 = vmatpush1.xpose.msra.mxu0 0.0
  %3860 = vmatprep.subr.mxu0 0.0
  %3861 = vmatpush1.xpose.msra.mxu0 0.0
  %3862 = vmatprep.subr.mxu0 0.0
  %3863 = vmatpush1.xpose.msra.mxu0 0.0
  %3864 = vmatprep.subr.mxu0 0.0
  %3865 = vmatpush1.xpose.msra.mxu0 0.0
  %3866 = vmatprep.subr.mxu0 0.0
  %3867 = vmatpush1.xpose.msra.mxu0 %v3836
  %3868 = vmatprep.subr.mxu0 0.0
  %3869 = vmatpush1.xpose.msra.mxu0 %v3834
  %3870 = vmatprep.subr.mxu0 0.0
  %3871 = vmatpush2.xpose.msra.mxu0 0.0
  %3872 = vmatprep.subr.mxu0 0.0
  %3873 = vmatpush2.xpose.msra.mxu0 0.0
  %3874 = vmatprep.subr.mxu0 0.0
  %3875 = vmatpush2.xpose.msra.mxu0 0.0
  %3876 = vmatprep.subr.mxu0 0.0
  %3877 = vmatpush2.xpose.msra.mxu0 0.0
  %3878 = vmatprep.subr.mxu0 0.0
  %3879 = vmatpush2.xpose.msra.mxu0 0.0
  %3880 = vmatprep.subr.mxu0 0.0
  %3881 = vmatpush2.xpose.msra.mxu0 0.0
  %3882 = vmatprep.subr.mxu0 0.0
  %3883 = vmatpush2.xpose.msra.mxu0 0.0
  %3884 = vmatprep.subr.mxu0 0.0
  %3885 = vmatpush2.xpose.msra.mxu0 0.0
  %3886 = vmatprep.subr.mxu0 0.0
  %3887 = vmatpush2.xpose.msra.mxu0 0.0
  %3888 = vmatprep.subr.mxu0 0.0
  %3889 = vmatpush2.xpose.msra.mxu0 0.0
  %3890 = vmatprep.subr.mxu0 0.0
  %3891 = vmatpush2.xpose.msra.mxu0 0.0
  %3892 = vmatprep.subr.mxu0 0.0
  %3893 = vmatpush2.xpose.msra.mxu0 0.0
  %3894 = vmatprep.subr.mxu0 0.0
  %3895 = vmatpush2.xpose.msra.mxu0 0.0
  %3896 = vmatprep.subr.mxu0 0.0
  %3897 = vmatpush2.xpose.msra.mxu0 0.0
  %3898 = vmatprep.subr.mxu0 0.0
  %3899 = vmatpush2.xpose.msra.mxu0 0.0
  %3900 = vmatprep.subr.mxu0 0.0
  %3901 = vmatpush2.xpose.msra.mxu0 0.0
  %3902 = vmatprep.mubr.f32.mxu0 0.0
  %3903 = vmatmul.mubr.f32.gmra.mxu0 %v3830
  %v3904 = vpop.f32.mrf.mxu0
  %v3905 = vadd.f32 0.0, %v3904
  %v3906 = vpop.f32.mrf.mxu0
  %3907 = vmatprep.mubr.f32.mxu0 0.0
  %3908 = vmatmul.mubr.f32.gmra.mxu0 %v3832
  %v3909 = vpop.f32.mrf.mxu0
  %v3910 = vadd.f32 0.0, %v3909
  %v3911 = vpop.f32.mrf.mxu0
  %3912 = vdwg.mxu0
  %3913 = vrot.lane.b32.xlu0 %v2826, 112
  %v3914 = vpop.permute.xlu0 %3913
  %3915 = vrot.lane.b32.xlu0 %v2827, 112
  %v3916 = vpop.permute.xlu0 %3915
  %3917 = vrot.lane.b32.xlu0 %v2816, 80
  %v3918 = vpop.permute.xlu0 %3917
  %3919 = vrot.lane.b32.xlu0 %v2821, 80
  %v3920 = vpop.permute.xlu0 %3919
  %v3921 = vsel %vm337, %v3914, 0
  %v3923 = vsel %vm337, %v3916, 0
  %v3925 = vsel %vm337, %v3918, 0
  %v3927 = vsel %vm337, %v3920, 0
  %3929 = vmatprep.subr.mxu0 0.0
  %3930 = vmatpush1.xpose.msra.mxu0 0.0
  %3931 = vmatprep.subr.mxu0 0.0
  %3932 = vmatpush1.xpose.msra.mxu0 0.0
  %3933 = vmatprep.subr.mxu0 0.0
  %3934 = vmatpush1.xpose.msra.mxu0 0.0
  %3935 = vmatprep.subr.mxu0 0.0
  %3936 = vmatpush1.xpose.msra.mxu0 0.0
  %3937 = vmatprep.subr.mxu0 0.0
  %3938 = vmatpush1.xpose.msra.mxu0 0.0
  %3939 = vmatprep.subr.mxu0 0.0
  %3940 = vmatpush1.xpose.msra.mxu0 0.0
  %3941 = vmatprep.subr.mxu0 0.0
  %3942 = vmatpush1.xpose.msra.mxu0 0.0
  %3943 = vmatprep.subr.mxu0 0.0
  %3944 = vmatpush1.xpose.msra.mxu0 0.0
  %3945 = vmatprep.subr.mxu0 0.0
  %3946 = vmatpush1.xpose.msra.mxu0 0.0
  %3947 = vmatprep.subr.mxu0 0.0
  %3948 = vmatpush1.xpose.msra.mxu0 0.0
  %3949 = vmatprep.subr.mxu0 0.0
  %3950 = vmatpush1.xpose.msra.mxu0 0.0
  %3951 = vmatprep.subr.mxu0 0.0
  %3952 = vmatpush1.xpose.msra.mxu0 0.0
  %3953 = vmatprep.subr.mxu0 0.0
  %3954 = vmatpush1.xpose.msra.mxu0 0.0
  %3955 = vmatprep.subr.mxu0 0.0
  %3956 = vmatpush1.xpose.msra.mxu0 0.0
  %3957 = vmatprep.subr.mxu0 0.0
  %3958 = vmatpush1.xpose.msra.mxu0 %v3927
  %3959 = vmatprep.subr.mxu0 0.0
  %3960 = vmatpush1.xpose.msra.mxu0 %v3925
  %3961 = vmatprep.subr.mxu0 0.0
  %3962 = vmatpush2.xpose.msra.mxu0 0.0
  %3963 = vmatprep.subr.mxu0 0.0
  %3964 = vmatpush2.xpose.msra.mxu0 0.0
  %3965 = vmatprep.subr.mxu0 0.0
  %3966 = vmatpush2.xpose.msra.mxu0 0.0
  %3967 = vmatprep.subr.mxu0 0.0
  %3968 = vmatpush2.xpose.msra.mxu0 0.0
  %3969 = vmatprep.subr.mxu0 0.0
  %3970 = vmatpush2.xpose.msra.mxu0 0.0
  %3971 = vmatprep.subr.mxu0 0.0
  %3972 = vmatpush2.xpose.msra.mxu0 0.0
  %3973 = vmatprep.subr.mxu0 0.0
  %3974 = vmatpush2.xpose.msra.mxu0 0.0
  %3975 = vmatprep.subr.mxu0 0.0
  %3976 = vmatpush2.xpose.msra.mxu0 0.0
  %3977 = vmatprep.subr.mxu0 0.0
  %3978 = vmatpush2.xpose.msra.mxu0 0.0
  %3979 = vmatprep.subr.mxu0 0.0
  %3980 = vmatpush2.xpose.msra.mxu0 0.0
  %3981 = vmatprep.subr.mxu0 0.0
  %3982 = vmatpush2.xpose.msra.mxu0 0.0
  %3983 = vmatprep.subr.mxu0 0.0
  %3984 = vmatpush2.xpose.msra.mxu0 0.0
  %3985 = vmatprep.subr.mxu0 0.0
  %3986 = vmatpush2.xpose.msra.mxu0 0.0
  %3987 = vmatprep.subr.mxu0 0.0
  %3988 = vmatpush2.xpose.msra.mxu0 0.0
  %3989 = vmatprep.subr.mxu0 0.0
  %3990 = vmatpush2.xpose.msra.mxu0 0.0
  %3991 = vmatprep.subr.mxu0 0.0
  %3992 = vmatpush2.xpose.msra.mxu0 0.0
  %3993 = vmatprep.mubr.f32.mxu0 0.0
  %3994 = vmatmul.mubr.f32.gmra.mxu0 %v3921
  %v3995 = vpop.f32.mrf.mxu0
  %v3996 = vadd.f32 0.0, %v3995
  %v3997 = vpop.f32.mrf.mxu0
  %3998 = vmatprep.mubr.f32.mxu0 0.0
  %3999 = vmatmul.mubr.f32.gmra.mxu0 %v3923
  %v4000 = vpop.f32.mrf.mxu0
  %v4001 = vadd.f32 0.0, %v4000
  %v4002 = vpop.f32.mrf.mxu0
  %4003 = vdwg.mxu0
  %v4004 = vsel %vm514, %v3905, -inf
  %4005 = vmax.xlane.f32.xlu0 %v4004
  %v4006 = vpop.xlane.xlu0 %4005
  %v4007 = vsel %vm514, %v3910, -inf
  %4008 = vmax.xlane.f32.xlu0 %v4007
  %v4009 = vpop.xlane.xlu0 %4008
  %v4010 = vsel %vm514, %v3996, -inf
  %4011 = vmax.xlane.f32.xlu0 %v4010
  %v4012 = vpop.xlane.xlu0 %4011
  %v4013 = vsel %vm514, %v4001, -inf
  %4014 = vmax.xlane.f32.xlu0 %v4013
  %v4015 = vpop.xlane.xlu0 %4014
  %v4016 = vsub.f32 %v3905, %v4006
  %v4017 = vsub.f32 %v3910, %v4009
  %v4018 = vsub.f32 %v3996, %v4012
  %v4019 = vsub.f32 %v4001, %v4015
  %v4020 = vmul.f32 %v4016, 1.442695
  %v4021 = vpow.pop %v4020
  %v4022 = vmul.f32 %v4017, 1.442695
  %v4023 = vpow.pop %v4022
  %v4024 = vmul.f32 %v4018, 1.442695
  %v4025 = vpow.pop %v4024
  %v4026 = vmul.f32 %v4019, 1.442695
  %v4027 = vpow.pop %v4026
  %v4028 = vsel %vm514, %v4021, 0.0
  %4029 = vadd.xlane.f32.xlu0 %v4028
  %v4030 = vpop.xlane.xlu0 %4029
  %v4031 = vsel %vm514, %v4023, 0.0
  %4032 = vadd.xlane.f32.xlu0 %v4031
  %v4033 = vpop.xlane.xlu0 %4032
  %v4034 = vsel %vm514, %v4025, 0.0
  %4035 = vadd.xlane.f32.xlu0 %v4034
  %v4036 = vpop.xlane.xlu0 %4035
  %v4037 = vsel %vm514, %v4027, 0.0
  %4038 = vadd.xlane.f32.xlu0 %v4037
  %v4039 = vpop.xlane.xlu0 %4038
  %v4040 = vrcp.pop %v4030
  %v4041 = vrcp.pop %v4033
  %v4042 = vrcp.pop %v4036
  %v4043 = vrcp.pop %v4039
  %v4044 = vmul.f32 %v4021, %v4040
  %v4045 = vmul.f32 %v4023, %v4041
  %v4046 = vmul.f32 %v4025, %v4042
  %v4047 = vmul.f32 %v4027, %v4043
  %4048 = vrot.lane.b32.xlu0 %v2806, 48
  %v4049 = vpop.permute.xlu0 %4048
  %4050 = vrot.lane.b32.xlu0 %v2811, 48
  %v4051 = vpop.permute.xlu0 %4050
  %v4055 = vsel %vm514, %v4044, 0
  %v4058 = vsel %vm514, %v4045, 0
  %4060 = vmatprep.subr.mxu0 0.0
  %4061 = vmatpush1.msra.mxu0 0.0
  %4062 = vmatprep.subr.mxu0 0.0
  %4063 = vmatpush1.msra.mxu0 0.0
  %4064 = vmatprep.subr.mxu0 0.0
  %4065 = vmatpush1.msra.mxu0 0.0
  %4066 = vmatprep.subr.mxu0 0.0
  %4067 = vmatpush1.msra.mxu0 0.0
  %4068 = vmatprep.subr.mxu0 0.0
  %4069 = vmatpush1.msra.mxu0 0.0
  %4070 = vmatprep.subr.mxu0 0.0
  %4071 = vmatpush1.msra.mxu0 0.0
  %4072 = vmatprep.subr.mxu0 0.0
  %4073 = vmatpush1.msra.mxu0 0.0
  %4074 = vmatprep.subr.mxu0 0.0
  %4075 = vmatpush1.msra.mxu0 0.0
  %4076 = vmatprep.subr.mxu0 0.0
  %4077 = vmatpush1.msra.mxu0 0.0
  %4078 = vmatprep.subr.mxu0 0.0
  %4079 = vmatpush1.msra.mxu0 0.0
  %4080 = vmatprep.subr.mxu0 0.0
  %4081 = vmatpush1.msra.mxu0 0.0
  %4082 = vmatprep.subr.mxu0 0.0
  %4083 = vmatpush1.msra.mxu0 0.0
  %4084 = vmatprep.subr.mxu0 0.0
  %4085 = vmatpush1.msra.mxu0 0.0
  %4086 = vmatprep.subr.mxu0 0.0
  %4087 = vmatpush1.msra.mxu0 0.0
  %4088 = vmatprep.subr.mxu0 0.0
  %4089 = vmatpush1.msra.mxu0 %v4051
  %4090 = vmatprep.subr.mxu0 0.0
  %4091 = vmatpush1.msra.mxu0 %v4049
  %4092 = vmatprep.subr.mxu0 0.0
  %4093 = vmatpush2.msra.mxu0 0.0
  %4094 = vmatprep.subr.mxu0 0.0
  %4095 = vmatpush2.msra.mxu0 0.0
  %4096 = vmatprep.subr.mxu0 0.0
  %4097 = vmatpush2.msra.mxu0 0.0
  %4098 = vmatprep.subr.mxu0 0.0
  %4099 = vmatpush2.msra.mxu0 0.0
  %4100 = vmatprep.subr.mxu0 0.0
  %4101 = vmatpush2.msra.mxu0 0.0
  %4102 = vmatprep.subr.mxu0 0.0
  %4103 = vmatpush2.msra.mxu0 0.0
  %4104 = vmatprep.subr.mxu0 0.0
  %4105 = vmatpush2.msra.mxu0 0.0
  %4106 = vmatprep.subr.mxu0 0.0
  %4107 = vmatpush2.msra.mxu0 0.0
  %4108 = vmatprep.subr.mxu0 0.0
  %4109 = vmatpush2.msra.mxu0 0.0
  %4110 = vmatprep.subr.mxu0 0.0
  %4111 = vmatpush2.msra.mxu0 0.0
  %4112 = vmatprep.subr.mxu0 0.0
  %4113 = vmatpush2.msra.mxu0 0.0
  %4114 = vmatprep.subr.mxu0 0.0
  %4115 = vmatpush2.msra.mxu0 0.0
  %4116 = vmatprep.subr.mxu0 0.0
  %4117 = vmatpush2.msra.mxu0 0.0
  %4118 = vmatprep.subr.mxu0 0.0
  %4119 = vmatpush2.msra.mxu0 0.0
  %4120 = vmatprep.subr.mxu0 0.0
  %4121 = vmatpush2.msra.mxu0 0.0
  %4122 = vmatprep.subr.mxu0 0.0
  %4123 = vmatpush2.msra.mxu0 0.0
  %4124 = vmatprep.mubr.f32.mxu0 0.0
  %4125 = vmatmul.mubr.f32.gmra.mxu0 %v4055
  %v4126 = vpop.f32.mrf.mxu0
  %v4127 = vadd.f32 0.0, %v4126
  %v4128 = vpop.f32.mrf.mxu0
  %4129 = vmatprep.mubr.f32.mxu0 0.0
  %4130 = vmatmul.mubr.f32.gmra.mxu0 %v4058
  %v4131 = vpop.f32.mrf.mxu0
  %v4132 = vadd.f32 0.0, %v4131
  %v4133 = vpop.f32.mrf.mxu0
  %4134 = vdwg.mxu0
  %4135 = vrot.lane.b32.xlu0 %v2816, 48
  %v4136 = vpop.permute.xlu0 %4135
  %4137 = vrot.lane.b32.xlu0 %v2821, 48
  %v4138 = vpop.permute.xlu0 %4137
  %v4142 = vsel %vm514, %v4046, 0
  %v4145 = vsel %vm514, %v4047, 0
  %4147 = vmatprep.subr.mxu0 0.0
  %4148 = vmatpush1.msra.mxu0 0.0
  %4149 = vmatprep.subr.mxu0 0.0
  %4150 = vmatpush1.msra.mxu0 0.0
  %4151 = vmatprep.subr.mxu0 0.0
  %4152 = vmatpush1.msra.mxu0 0.0
  %4153 = vmatprep.subr.mxu0 0.0
  %4154 = vmatpush1.msra.mxu0 0.0
  %4155 = vmatprep.subr.mxu0 0.0
  %4156 = vmatpush1.msra.mxu0 0.0
  %4157 = vmatprep.subr.mxu0 0.0
  %4158 = vmatpush1.msra.mxu0 0.0
  %4159 = vmatprep.subr.mxu0 0.0
  %4160 = vmatpush1.msra.mxu0 0.0
  %4161 = vmatprep.subr.mxu0 0.0
  %4162 = vmatpush1.msra.mxu0 0.0
  %4163 = vmatprep.subr.mxu0 0.0
  %4164 = vmatpush1.msra.mxu0 0.0
  %4165 = vmatprep.subr.mxu0 0.0
  %4166 = vmatpush1.msra.mxu0 0.0
  %4167 = vmatprep.subr.mxu0 0.0
  %4168 = vmatpush1.msra.mxu0 0.0
  %4169 = vmatprep.subr.mxu0 0.0
  %4170 = vmatpush1.msra.mxu0 0.0
  %4171 = vmatprep.subr.mxu0 0.0
  %4172 = vmatpush1.msra.mxu0 0.0
  %4173 = vmatprep.subr.mxu0 0.0
  %4174 = vmatpush1.msra.mxu0 0.0
  %4175 = vmatprep.subr.mxu0 0.0
  %4176 = vmatpush1.msra.mxu0 %v4138
  %4177 = vmatprep.subr.mxu0 0.0
  %4178 = vmatpush1.msra.mxu0 %v4136
  %4179 = vmatprep.subr.mxu0 0.0
  %4180 = vmatpush2.msra.mxu0 0.0
  %4181 = vmatprep.subr.mxu0 0.0
  %4182 = vmatpush2.msra.mxu0 0.0
  %4183 = vmatprep.subr.mxu0 0.0
  %4184 = vmatpush2.msra.mxu0 0.0
  %4185 = vmatprep.subr.mxu0 0.0
  %4186 = vmatpush2.msra.mxu0 0.0
  %4187 = vmatprep.subr.mxu0 0.0
  %4188 = vmatpush2.msra.mxu0 0.0
  %4189 = vmatprep.subr.mxu0 0.0
  %4190 = vmatpush2.msra.mxu0 0.0
  %4191 = vmatprep.subr.mxu0 0.0
  %4192 = vmatpush2.msra.mxu0 0.0
  %4193 = vmatprep.subr.mxu0 0.0
  %4194 = vmatpush2.msra.mxu0 0.0
  %4195 = vmatprep.subr.mxu0 0.0
  %4196 = vmatpush2.msra.mxu0 0.0
  %4197 = vmatprep.subr.mxu0 0.0
  %4198 = vmatpush2.msra.mxu0 0.0
  %4199 = vmatprep.subr.mxu0 0.0
  %4200 = vmatpush2.msra.mxu0 0.0
  %4201 = vmatprep.subr.mxu0 0.0
  %4202 = vmatpush2.msra.mxu0 0.0
  %4203 = vmatprep.subr.mxu0 0.0
  %4204 = vmatpush2.msra.mxu0 0.0
  %4205 = vmatprep.subr.mxu0 0.0
  %4206 = vmatpush2.msra.mxu0 0.0
  %4207 = vmatprep.subr.mxu0 0.0
  %4208 = vmatpush2.msra.mxu0 0.0
  %4209 = vmatprep.subr.mxu0 0.0
  %4210 = vmatpush2.msra.mxu0 0.0
  %4211 = vmatprep.mubr.f32.mxu0 0.0
  %4212 = vmatmul.mubr.f32.gmra.mxu0 %v4142
  %v4213 = vpop.f32.mrf.mxu0
  %v4214 = vadd.f32 0.0, %v4213
  %v4215 = vpop.f32.mrf.mxu0
  %4216 = vmatprep.mubr.f32.mxu0 0.0
  %4217 = vmatmul.mubr.f32.gmra.mxu0 %v4145
  %v4218 = vpop.f32.mrf.mxu0
  %v4219 = vadd.f32 0.0, %v4218
  %v4220 = vpop.f32.mrf.mxu0
  %4221 = vdwg.mxu0
  %v4223 = vsel %vm337, %v4127, 0
  %v4226 = vsel %vm337, %v4132, 0
  %v4229 = vsel %vm337, %v4214, 0
  %v4232 = vsel %vm337, %v4219, 0
  %4234 = vmatprep.subr.mxu0 0.0
  %4235 = vmatpush1.msra.mxu0 0.0
  %4236 = vmatprep.subr.mxu0 0.0
  %4237 = vmatpush1.msra.mxu0 0.0
  %4238 = vmatprep.subr.mxu0 0.0
  %4239 = vmatpush1.msra.mxu0 0.0
  %4240 = vmatprep.subr.mxu0 0.0
  %4241 = vmatpush1.msra.mxu0 0.0
  %4242 = vmatprep.subr.mxu0 0.0
  %4243 = vmatpush1.msra.mxu0 0.0
  %4244 = vmatprep.subr.mxu0 0.0
  %4245 = vmatpush1.msra.mxu0 0.0
  %4246 = vmatprep.subr.mxu0 0.0
  %4247 = vmatpush1.msra.mxu0 0.0
  %4248 = vmatprep.subr.mxu0 0.0
  %4249 = vmatpush1.msra.mxu0 0.0
  %4250 = vmatprep.subr.mxu0 0.0
  %4251 = vmatpush1.msra.mxu0 0.0
  %4252 = vmatprep.subr.mxu0 0.0
  %4253 = vmatpush1.msra.mxu0 0.0
  %4254 = vmatprep.subr.mxu0 0.0
  %4255 = vmatpush1.msra.mxu0 0.0
  %4256 = vmatprep.subr.mxu0 0.0
  %4257 = vmatpush1.msra.mxu0 0.0
  %4258 = vmatprep.subr.mxu0 0.0
  %4259 = vmatpush1.msra.mxu0 0.0
  %4260 = vmatprep.subr.mxu0 0.0
  %4261 = vmatpush1.msra.mxu0 0.0
  %4262 = vmatprep.subr.mxu0 0.0
  %4263 = vmatpush1.msra.mxu0 0.0
  %4264 = vmatprep.subr.mxu0 0.0
  %4265 = vmatpush1.msra.mxu0 %v2645
  %4266 = vmatprep.subr.mxu0 0.0
  %4267 = vmatpush2.msra.mxu0 0.0
  %4268 = vmatprep.subr.mxu0 0.0
  %4269 = vmatpush2.msra.mxu0 0.0
  %4270 = vmatprep.subr.mxu0 0.0
  %4271 = vmatpush2.msra.mxu0 0.0
  %4272 = vmatprep.subr.mxu0 0.0
  %4273 = vmatpush2.msra.mxu0 0.0
  %4274 = vmatprep.subr.mxu0 0.0
  %4275 = vmatpush2.msra.mxu0 0.0
  %4276 = vmatprep.subr.mxu0 0.0
  %4277 = vmatpush2.msra.mxu0 0.0
  %4278 = vmatprep.subr.mxu0 0.0
  %4279 = vmatpush2.msra.mxu0 0.0
  %4280 = vmatprep.subr.mxu0 0.0
  %4281 = vmatpush2.msra.mxu0 0.0
  %4282 = vmatprep.subr.mxu0 0.0
  %4283 = vmatpush2.msra.mxu0 0.0
  %4284 = vmatprep.subr.mxu0 0.0
  %4285 = vmatpush2.msra.mxu0 0.0
  %4286 = vmatprep.subr.mxu0 0.0
  %4287 = vmatpush2.msra.mxu0 0.0
  %4288 = vmatprep.subr.mxu0 0.0
  %4289 = vmatpush2.msra.mxu0 0.0
  %4290 = vmatprep.subr.mxu0 0.0
  %4291 = vmatpush2.msra.mxu0 0.0
  %4292 = vmatprep.subr.mxu0 0.0
  %4293 = vmatpush2.msra.mxu0 0.0
  %4294 = vmatprep.subr.mxu0 0.0
  %4295 = vmatpush2.msra.mxu0 0.0
  %4296 = vmatprep.subr.mxu0 0.0
  %4297 = vmatpush2.msra.mxu0 0.0
  %4298 = vmatprep.mubr.f32.mxu0 0.0
  %4299 = vmatmul.mubr.f32.gmra.mxu0 %v4223
  %v4300 = vpop.f32.mrf.mxu0
  %v4301 = vadd.f32 0.0, %v4300
  %v4302 = vpop.f32.mrf.mxu0
  %4303 = vmatprep.mubr.f32.mxu0 0.0
  %4304 = vmatmul.mubr.f32.gmra.mxu0 %v4226
  %v4305 = vpop.f32.mrf.mxu0
  %v4306 = vadd.f32 0.0, %v4305
  %v4307 = vpop.f32.mrf.mxu0
  %4308 = vmatprep.mubr.f32.mxu0 0.0
  %4309 = vmatmul.mubr.f32.gmra.mxu0 %v4229
  %v4310 = vpop.f32.mrf.mxu0
  %v4311 = vadd.f32 0.0, %v4310
  %v4312 = vpop.f32.mrf.mxu0
  %4313 = vmatprep.mubr.f32.mxu0 0.0
  %4314 = vmatmul.mubr.f32.gmra.mxu0 %v4232
  %v4315 = vpop.f32.mrf.mxu0
  %v4316 = vadd.f32 0.0, %v4315
  %v4317 = vpop.f32.mrf.mxu0
  %4318 = vdwg.mxu0
  %v4319 = vadd.f32 %v3804, %v4301
  %v4320 = vadd.f32 %v3809, %v4306
  %v4321 = vadd.f32 %v3814, %v4311
  %v4322 = vadd.f32 %v3819, %v4316
  %4323 = vrot.lane.b32.xlu0 %v2824, 104
  %v4324 = vpop.permute.xlu0 %4323
  %4325 = vrot.lane.b32.xlu0 %v2825, 104
  %v4326 = vpop.permute.xlu0 %4325
  %4327 = vrot.lane.b32.xlu0 %v2806, 72
  %v4328 = vpop.permute.xlu0 %4327
  %4329 = vrot.lane.b32.xlu0 %v2811, 72
  %v4330 = vpop.permute.xlu0 %4329
  %v4331 = vsel %vm337, %v4324, 0
  %v4333 = vsel %vm337, %v4326, 0
  %v4335 = vsel %vm337, %v4328, 0
  %v4337 = vsel %vm337, %v4330, 0
  %4339 = vmatprep.subr.mxu0 0.0
  %4340 = vmatpush1.xpose.msra.mxu0 0.0
  %4341 = vmatprep.subr.mxu0 0.0
  %4342 = vmatpush1.xpose.msra.mxu0 0.0
  %4343 = vmatprep.subr.mxu0 0.0
  %4344 = vmatpush1.xpose.msra.mxu0 0.0
  %4345 = vmatprep.subr.mxu0 0.0
  %4346 = vmatpush1.xpose.msra.mxu0 0.0
  %4347 = vmatprep.subr.mxu0 0.0
  %4348 = vmatpush1.xpose.msra.mxu0 0.0
  %4349 = vmatprep.subr.mxu0 0.0
  %4350 = vmatpush1.xpose.msra.mxu0 0.0
  %4351 = vmatprep.subr.mxu0 0.0
  %4352 = vmatpush1.xpose.msra.mxu0 0.0
  %4353 = vmatprep.subr.mxu0 0.0
  %4354 = vmatpush1.xpose.msra.mxu0 0.0
  %4355 = vmatprep.subr.mxu0 0.0
  %4356 = vmatpush1.xpose.msra.mxu0 0.0
  %4357 = vmatprep.subr.mxu0 0.0
  %4358 = vmatpush1.xpose.msra.mxu0 0.0
  %4359 = vmatprep.subr.mxu0 0.0
  %4360 = vmatpush1.xpose.msra.mxu0 0.0
  %4361 = vmatprep.subr.mxu0 0.0
  %4362 = vmatpush1.xpose.msra.mxu0 0.0
  %4363 = vmatprep.subr.mxu0 0.0
  %4364 = vmatpush1.xpose.msra.mxu0 0.0
  %4365 = vmatprep.subr.mxu0 0.0
  %4366 = vmatpush1.xpose.msra.mxu0 0.0
  %4367 = vmatprep.subr.mxu0 0.0
  %4368 = vmatpush1.xpose.msra.mxu0 %v4337
  %4369 = vmatprep.subr.mxu0 0.0
  %4370 = vmatpush1.xpose.msra.mxu0 %v4335
  %4371 = vmatprep.subr.mxu0 0.0
  %4372 = vmatpush2.xpose.msra.mxu0 0.0
  %4373 = vmatprep.subr.mxu0 0.0
  %4374 = vmatpush2.xpose.msra.mxu0 0.0
  %4375 = vmatprep.subr.mxu0 0.0
  %4376 = vmatpush2.xpose.msra.mxu0 0.0
  %4377 = vmatprep.subr.mxu0 0.0
  %4378 = vmatpush2.xpose.msra.mxu0 0.0
  %4379 = vmatprep.subr.mxu0 0.0
  %4380 = vmatpush2.xpose.msra.mxu0 0.0
  %4381 = vmatprep.subr.mxu0 0.0
  %4382 = vmatpush2.xpose.msra.mxu0 0.0
  %4383 = vmatprep.subr.mxu0 0.0
  %4384 = vmatpush2.xpose.msra.mxu0 0.0
  %4385 = vmatprep.subr.mxu0 0.0
  %4386 = vmatpush2.xpose.msra.mxu0 0.0
  %4387 = vmatprep.subr.mxu0 0.0
  %4388 = vmatpush2.xpose.msra.mxu0 0.0
  %4389 = vmatprep.subr.mxu0 0.0
  %4390 = vmatpush2.xpose.msra.mxu0 0.0
  %4391 = vmatprep.subr.mxu0 0.0
  %4392 = vmatpush2.xpose.msra.mxu0 0.0
  %4393 = vmatprep.subr.mxu0 0.0
  %4394 = vmatpush2.xpose.msra.mxu0 0.0
  %4395 = vmatprep.subr.mxu0 0.0
  %4396 = vmatpush2.xpose.msra.mxu0 0.0
  %4397 = vmatprep.subr.mxu0 0.0
  %4398 = vmatpush2.xpose.msra.mxu0 0.0
  %4399 = vmatprep.subr.mxu0 0.0
  %4400 = vmatpush2.xpose.msra.mxu0 0.0
  %4401 = vmatprep.subr.mxu0 0.0
  %4402 = vmatpush2.xpose.msra.mxu0 0.0
  %4403 = vmatprep.mubr.f32.mxu0 0.0
  %4404 = vmatmul.mubr.f32.gmra.mxu0 %v4331
  %v4405 = vpop.f32.mrf.mxu0
  %v4406 = vadd.f32 0.0, %v4405
  %v4407 = vpop.f32.mrf.mxu0
  %4408 = vmatprep.mubr.f32.mxu0 0.0
  %4409 = vmatmul.mubr.f32.gmra.mxu0 %v4333
  %v4410 = vpop.f32.mrf.mxu0
  %v4411 = vadd.f32 0.0, %v4410
  %v4412 = vpop.f32.mrf.mxu0
  %4413 = vdwg.mxu0
  %4414 = vrot.lane.b32.xlu0 %v2826, 104
  %v4415 = vpop.permute.xlu0 %4414
  %4416 = vrot.lane.b32.xlu0 %v2827, 104
  %v4417 = vpop.permute.xlu0 %4416
  %4418 = vrot.lane.b32.xlu0 %v2816, 72
  %v4419 = vpop.permute.xlu0 %4418
  %4420 = vrot.lane.b32.xlu0 %v2821, 72
  %v4421 = vpop.permute.xlu0 %4420
  %v4422 = vsel %vm337, %v4415, 0
  %v4424 = vsel %vm337, %v4417, 0
  %v4426 = vsel %vm337, %v4419, 0
  %v4428 = vsel %vm337, %v4421, 0
  %4430 = vmatprep.subr.mxu0 0.0
  %4431 = vmatpush1.xpose.msra.mxu0 0.0
  %4432 = vmatprep.subr.mxu0 0.0
  %4433 = vmatpush1.xpose.msra.mxu0 0.0
  %4434 = vmatprep.subr.mxu0 0.0
  %4435 = vmatpush1.xpose.msra.mxu0 0.0
  %4436 = vmatprep.subr.mxu0 0.0
  %4437 = vmatpush1.xpose.msra.mxu0 0.0
  %4438 = vmatprep.subr.mxu0 0.0
  %4439 = vmatpush1.xpose.msra.mxu0 0.0
  %4440 = vmatprep.subr.mxu0 0.0
  %4441 = vmatpush1.xpose.msra.mxu0 0.0
  %4442 = vmatprep.subr.mxu0 0.0
  %4443 = vmatpush1.xpose.msra.mxu0 0.0
  %4444 = vmatprep.subr.mxu0 0.0
  %4445 = vmatpush1.xpose.msra.mxu0 0.0
  %4446 = vmatprep.subr.mxu0 0.0
  %4447 = vmatpush1.xpose.msra.mxu0 0.0
  %4448 = vmatprep.subr.mxu0 0.0
  %4449 = vmatpush1.xpose.msra.mxu0 0.0
  %4450 = vmatprep.subr.mxu0 0.0
  %4451 = vmatpush1.xpose.msra.mxu0 0.0
  %4452 = vmatprep.subr.mxu0 0.0
  %4453 = vmatpush1.xpose.msra.mxu0 0.0
  %4454 = vmatprep.subr.mxu0 0.0
  %4455 = vmatpush1.xpose.msra.mxu0 0.0
  %4456 = vmatprep.subr.mxu0 0.0
  %4457 = vmatpush1.xpose.msra.mxu0 0.0
  %4458 = vmatprep.subr.mxu0 0.0
  %4459 = vmatpush1.xpose.msra.mxu0 %v4428
  %4460 = vmatprep.subr.mxu0 0.0
  %4461 = vmatpush1.xpose.msra.mxu0 %v4426
  %4462 = vmatprep.subr.mxu0 0.0
  %4463 = vmatpush2.xpose.msra.mxu0 0.0
  %4464 = vmatprep.subr.mxu0 0.0
  %4465 = vmatpush2.xpose.msra.mxu0 0.0
  %4466 = vmatprep.subr.mxu0 0.0
  %4467 = vmatpush2.xpose.msra.mxu0 0.0
  %4468 = vmatprep.subr.mxu0 0.0
  %4469 = vmatpush2.xpose.msra.mxu0 0.0
  %4470 = vmatprep.subr.mxu0 0.0
  %4471 = vmatpush2.xpose.msra.mxu0 0.0
  %4472 = vmatprep.subr.mxu0 0.0
  %4473 = vmatpush2.xpose.msra.mxu0 0.0
  %4474 = vmatprep.subr.mxu0 0.0
  %4475 = vmatpush2.xpose.msra.mxu0 0.0
  %4476 = vmatprep.subr.mxu0 0.0
  %4477 = vmatpush2.xpose.msra.mxu0 0.0
  %4478 = vmatprep.subr.mxu0 0.0
  %4479 = vmatpush2.xpose.msra.mxu0 0.0
  %4480 = vmatprep.subr.mxu0 0.0
  %4481 = vmatpush2.xpose.msra.mxu0 0.0
  %4482 = vmatprep.subr.mxu0 0.0
  %4483 = vmatpush2.xpose.msra.mxu0 0.0
  %4484 = vmatprep.subr.mxu0 0.0
  %4485 = vmatpush2.xpose.msra.mxu0 0.0
  %4486 = vmatprep.subr.mxu0 0.0
  %4487 = vmatpush2.xpose.msra.mxu0 0.0
  %4488 = vmatprep.subr.mxu0 0.0
  %4489 = vmatpush2.xpose.msra.mxu0 0.0
  %4490 = vmatprep.subr.mxu0 0.0
  %4491 = vmatpush2.xpose.msra.mxu0 0.0
  %4492 = vmatprep.subr.mxu0 0.0
  %4493 = vmatpush2.xpose.msra.mxu0 0.0
  %4494 = vmatprep.mubr.f32.mxu0 0.0
  %4495 = vmatmul.mubr.f32.gmra.mxu0 %v4422
  %v4496 = vpop.f32.mrf.mxu0
  %v4497 = vadd.f32 0.0, %v4496
  %v4498 = vpop.f32.mrf.mxu0
  %4499 = vmatprep.mubr.f32.mxu0 0.0
  %4500 = vmatmul.mubr.f32.gmra.mxu0 %v4424
  %v4501 = vpop.f32.mrf.mxu0
  %v4502 = vadd.f32 0.0, %v4501
  %v4503 = vpop.f32.mrf.mxu0
  %4504 = vdwg.mxu0
  %v4505 = vsel %vm514, %v4406, -inf
  %4506 = vmax.xlane.f32.xlu0 %v4505
  %v4507 = vpop.xlane.xlu0 %4506
  %v4508 = vsel %vm514, %v4411, -inf
  %4509 = vmax.xlane.f32.xlu0 %v4508
  %v4510 = vpop.xlane.xlu0 %4509
  %v4511 = vsel %vm514, %v4497, -inf
  %4512 = vmax.xlane.f32.xlu0 %v4511
  %v4513 = vpop.xlane.xlu0 %4512
  %v4514 = vsel %vm514, %v4502, -inf
  %4515 = vmax.xlane.f32.xlu0 %v4514
  %v4516 = vpop.xlane.xlu0 %4515
  %v4517 = vsub.f32 %v4406, %v4507
  %v4518 = vsub.f32 %v4411, %v4510
  %v4519 = vsub.f32 %v4497, %v4513
  %v4520 = vsub.f32 %v4502, %v4516
  %v4521 = vmul.f32 %v4517, 1.442695
  %v4522 = vpow.pop %v4521
  %v4523 = vmul.f32 %v4518, 1.442695
  %v4524 = vpow.pop %v4523
  %v4525 = vmul.f32 %v4519, 1.442695
  %v4526 = vpow.pop %v4525
  %v4527 = vmul.f32 %v4520, 1.442695
  %v4528 = vpow.pop %v4527
  %v4529 = vsel %vm514, %v4522, 0.0
  %4530 = vadd.xlane.f32.xlu0 %v4529
  %v4531 = vpop.xlane.xlu0 %4530
  %v4532 = vsel %vm514, %v4524, 0.0
  %4533 = vadd.xlane.f32.xlu0 %v4532
  %v4534 = vpop.xlane.xlu0 %4533
  %v4535 = vsel %vm514, %v4526, 0.0
  %4536 = vadd.xlane.f32.xlu0 %v4535
  %v4537 = vpop.xlane.xlu0 %4536
  %v4538 = vsel %vm514, %v4528, 0.0
  %4539 = vadd.xlane.f32.xlu0 %v4538
  %v4540 = vpop.xlane.xlu0 %4539
  %v4541 = vrcp.pop %v4531
  %v4542 = vrcp.pop %v4534
  %v4543 = vrcp.pop %v4537
  %v4544 = vrcp.pop %v4540
  %v4545 = vmul.f32 %v4522, %v4541
  %v4546 = vmul.f32 %v4524, %v4542
  %v4547 = vmul.f32 %v4526, %v4543
  %v4548 = vmul.f32 %v4528, %v4544
  %4549 = vrot.lane.b32.xlu0 %v2806, 40
  %v4550 = vpop.permute.xlu0 %4549
  %4551 = vrot.lane.b32.xlu0 %v2811, 40
  %v4552 = vpop.permute.xlu0 %4551
  %v4556 = vsel %vm514, %v4545, 0
  %v4559 = vsel %vm514, %v4546, 0
  %4561 = vmatprep.subr.mxu0 0.0
  %4562 = vmatpush1.msra.mxu0 0.0
  %4563 = vmatprep.subr.mxu0 0.0
  %4564 = vmatpush1.msra.mxu0 0.0
  %4565 = vmatprep.subr.mxu0 0.0
  %4566 = vmatpush1.msra.mxu0 0.0
  %4567 = vmatprep.subr.mxu0 0.0
  %4568 = vmatpush1.msra.mxu0 0.0
  %4569 = vmatprep.subr.mxu0 0.0
  %4570 = vmatpush1.msra.mxu0 0.0
  %4571 = vmatprep.subr.mxu0 0.0
  %4572 = vmatpush1.msra.mxu0 0.0
  %4573 = vmatprep.subr.mxu0 0.0
  %4574 = vmatpush1.msra.mxu0 0.0
  %4575 = vmatprep.subr.mxu0 0.0
  %4576 = vmatpush1.msra.mxu0 0.0
  %4577 = vmatprep.subr.mxu0 0.0
  %4578 = vmatpush1.msra.mxu0 0.0
  %4579 = vmatprep.subr.mxu0 0.0
  %4580 = vmatpush1.msra.mxu0 0.0
  %4581 = vmatprep.subr.mxu0 0.0
  %4582 = vmatpush1.msra.mxu0 0.0
  %4583 = vmatprep.subr.mxu0 0.0
  %4584 = vmatpush1.msra.mxu0 0.0
  %4585 = vmatprep.subr.mxu0 0.0
  %4586 = vmatpush1.msra.mxu0 0.0
  %4587 = vmatprep.subr.mxu0 0.0
  %4588 = vmatpush1.msra.mxu0 0.0
  %4589 = vmatprep.subr.mxu0 0.0
  %4590 = vmatpush1.msra.mxu0 %v4552
  %4591 = vmatprep.subr.mxu0 0.0
  %4592 = vmatpush1.msra.mxu0 %v4550
  %4593 = vmatprep.subr.mxu0 0.0
  %4594 = vmatpush2.msra.mxu0 0.0
  %4595 = vmatprep.subr.mxu0 0.0
  %4596 = vmatpush2.msra.mxu0 0.0
  %4597 = vmatprep.subr.mxu0 0.0
  %4598 = vmatpush2.msra.mxu0 0.0
  %4599 = vmatprep.subr.mxu0 0.0
  %4600 = vmatpush2.msra.mxu0 0.0
  %4601 = vmatprep.subr.mxu0 0.0
  %4602 = vmatpush2.msra.mxu0 0.0
  %4603 = vmatprep.subr.mxu0 0.0
  %4604 = vmatpush2.msra.mxu0 0.0
  %4605 = vmatprep.subr.mxu0 0.0
  %4606 = vmatpush2.msra.mxu0 0.0
  %4607 = vmatprep.subr.mxu0 0.0
  %4608 = vmatpush2.msra.mxu0 0.0
  %4609 = vmatprep.subr.mxu0 0.0
  %4610 = vmatpush2.msra.mxu0 0.0
  %4611 = vmatprep.subr.mxu0 0.0
  %4612 = vmatpush2.msra.mxu0 0.0
  %4613 = vmatprep.subr.mxu0 0.0
  %4614 = vmatpush2.msra.mxu0 0.0
  %4615 = vmatprep.subr.mxu0 0.0
  %4616 = vmatpush2.msra.mxu0 0.0
  %4617 = vmatprep.subr.mxu0 0.0
  %4618 = vmatpush2.msra.mxu0 0.0
  %4619 = vmatprep.subr.mxu0 0.0
  %4620 = vmatpush2.msra.mxu0 0.0
  %4621 = vmatprep.subr.mxu0 0.0
  %4622 = vmatpush2.msra.mxu0 0.0
  %4623 = vmatprep.subr.mxu0 0.0
  %4624 = vmatpush2.msra.mxu0 0.0
  %4625 = vmatprep.mubr.f32.mxu0 0.0
  %4626 = vmatmul.mubr.f32.gmra.mxu0 %v4556
  %v4627 = vpop.f32.mrf.mxu0
  %v4628 = vadd.f32 0.0, %v4627
  %v4629 = vpop.f32.mrf.mxu0
  %4630 = vmatprep.mubr.f32.mxu0 0.0
  %4631 = vmatmul.mubr.f32.gmra.mxu0 %v4559
  %v4632 = vpop.f32.mrf.mxu0
  %v4633 = vadd.f32 0.0, %v4632
  %v4634 = vpop.f32.mrf.mxu0
  %4635 = vdwg.mxu0
  %4636 = vrot.lane.b32.xlu0 %v2816, 40
  %v4637 = vpop.permute.xlu0 %4636
  %4638 = vrot.lane.b32.xlu0 %v2821, 40
  %v4639 = vpop.permute.xlu0 %4638
  %v4643 = vsel %vm514, %v4547, 0
  %v4646 = vsel %vm514, %v4548, 0
  %4648 = vmatprep.subr.mxu0 0.0
  %4649 = vmatpush1.msra.mxu0 0.0
  %4650 = vmatprep.subr.mxu0 0.0
  %4651 = vmatpush1.msra.mxu0 0.0
  %4652 = vmatprep.subr.mxu0 0.0
  %4653 = vmatpush1.msra.mxu0 0.0
  %4654 = vmatprep.subr.mxu0 0.0
  %4655 = vmatpush1.msra.mxu0 0.0
  %4656 = vmatprep.subr.mxu0 0.0
  %4657 = vmatpush1.msra.mxu0 0.0
  %4658 = vmatprep.subr.mxu0 0.0
  %4659 = vmatpush1.msra.mxu0 0.0
  %4660 = vmatprep.subr.mxu0 0.0
  %4661 = vmatpush1.msra.mxu0 0.0
  %4662 = vmatprep.subr.mxu0 0.0
  %4663 = vmatpush1.msra.mxu0 0.0
  %4664 = vmatprep.subr.mxu0 0.0
  %4665 = vmatpush1.msra.mxu0 0.0
  %4666 = vmatprep.subr.mxu0 0.0
  %4667 = vmatpush1.msra.mxu0 0.0
  %4668 = vmatprep.subr.mxu0 0.0
  %4669 = vmatpush1.msra.mxu0 0.0
  %4670 = vmatprep.subr.mxu0 0.0
  %4671 = vmatpush1.msra.mxu0 0.0
  %4672 = vmatprep.subr.mxu0 0.0
  %4673 = vmatpush1.msra.mxu0 0.0
  %4674 = vmatprep.subr.mxu0 0.0
  %4675 = vmatpush1.msra.mxu0 0.0
  %4676 = vmatprep.subr.mxu0 0.0
  %4677 = vmatpush1.msra.mxu0 %v4639
  %4678 = vmatprep.subr.mxu0 0.0
  %4679 = vmatpush1.msra.mxu0 %v4637
  %4680 = vmatprep.subr.mxu0 0.0
  %4681 = vmatpush2.msra.mxu0 0.0
  %4682 = vmatprep.subr.mxu0 0.0
  %4683 = vmatpush2.msra.mxu0 0.0
  %4684 = vmatprep.subr.mxu0 0.0
  %4685 = vmatpush2.msra.mxu0 0.0
  %4686 = vmatprep.subr.mxu0 0.0
  %4687 = vmatpush2.msra.mxu0 0.0
  %4688 = vmatprep.subr.mxu0 0.0
  %4689 = vmatpush2.msra.mxu0 0.0
  %4690 = vmatprep.subr.mxu0 0.0
  %4691 = vmatpush2.msra.mxu0 0.0
  %4692 = vmatprep.subr.mxu0 0.0
  %4693 = vmatpush2.msra.mxu0 0.0
  %4694 = vmatprep.subr.mxu0 0.0
  %4695 = vmatpush2.msra.mxu0 0.0
  %4696 = vmatprep.subr.mxu0 0.0
  %4697 = vmatpush2.msra.mxu0 0.0
  %4698 = vmatprep.subr.mxu0 0.0
  %4699 = vmatpush2.msra.mxu0 0.0
  %4700 = vmatprep.subr.mxu0 0.0
  %4701 = vmatpush2.msra.mxu0 0.0
  %4702 = vmatprep.subr.mxu0 0.0
  %4703 = vmatpush2.msra.mxu0 0.0
  %4704 = vmatprep.subr.mxu0 0.0
  %4705 = vmatpush2.msra.mxu0 0.0
  %4706 = vmatprep.subr.mxu0 0.0
  %4707 = vmatpush2.msra.mxu0 0.0
  %4708 = vmatprep.subr.mxu0 0.0
  %4709 = vmatpush2.msra.mxu0 0.0
  %4710 = vmatprep.subr.mxu0 0.0
  %4711 = vmatpush2.msra.mxu0 0.0
  %4712 = vmatprep.mubr.f32.mxu0 0.0
  %4713 = vmatmul.mubr.f32.gmra.mxu0 %v4643
  %v4714 = vpop.f32.mrf.mxu0
  %v4715 = vadd.f32 0.0, %v4714
  %v4716 = vpop.f32.mrf.mxu0
  %4717 = vmatprep.mubr.f32.mxu0 0.0
  %4718 = vmatmul.mubr.f32.gmra.mxu0 %v4646
  %v4719 = vpop.f32.mrf.mxu0
  %v4720 = vadd.f32 0.0, %v4719
  %v4721 = vpop.f32.mrf.mxu0
  %4722 = vdwg.mxu0
  %v4724 = vsel %vm337, %v4628, 0
  %v4727 = vsel %vm337, %v4633, 0
  %v4730 = vsel %vm337, %v4715, 0
  %v4733 = vsel %vm337, %v4720, 0
  %4735 = vmatprep.subr.mxu0 0.0
  %4736 = vmatpush1.msra.mxu0 0.0
  %4737 = vmatprep.subr.mxu0 0.0
  %4738 = vmatpush1.msra.mxu0 0.0
  %4739 = vmatprep.subr.mxu0 0.0
  %4740 = vmatpush1.msra.mxu0 0.0
  %4741 = vmatprep.subr.mxu0 0.0
  %4742 = vmatpush1.msra.mxu0 0.0
  %4743 = vmatprep.subr.mxu0 0.0
  %4744 = vmatpush1.msra.mxu0 0.0
  %4745 = vmatprep.subr.mxu0 0.0
  %4746 = vmatpush1.msra.mxu0 0.0
  %4747 = vmatprep.subr.mxu0 0.0
  %4748 = vmatpush1.msra.mxu0 0.0
  %4749 = vmatprep.subr.mxu0 0.0
  %4750 = vmatpush1.msra.mxu0 0.0
  %4751 = vmatprep.subr.mxu0 0.0
  %4752 = vmatpush1.msra.mxu0 0.0
  %4753 = vmatprep.subr.mxu0 0.0
  %4754 = vmatpush1.msra.mxu0 0.0
  %4755 = vmatprep.subr.mxu0 0.0
  %4756 = vmatpush1.msra.mxu0 0.0
  %4757 = vmatprep.subr.mxu0 0.0
  %4758 = vmatpush1.msra.mxu0 0.0
  %4759 = vmatprep.subr.mxu0 0.0
  %4760 = vmatpush1.msra.mxu0 0.0
  %4761 = vmatprep.subr.mxu0 0.0
  %4762 = vmatpush1.msra.mxu0 0.0
  %4763 = vmatprep.subr.mxu0 0.0
  %4764 = vmatpush1.msra.mxu0 0.0
  %4765 = vmatprep.subr.mxu0 0.0
  %4766 = vmatpush1.msra.mxu0 %v2646
  %4767 = vmatprep.subr.mxu0 0.0
  %4768 = vmatpush2.msra.mxu0 0.0
  %4769 = vmatprep.subr.mxu0 0.0
  %4770 = vmatpush2.msra.mxu0 0.0
  %4771 = vmatprep.subr.mxu0 0.0
  %4772 = vmatpush2.msra.mxu0 0.0
  %4773 = vmatprep.subr.mxu0 0.0
  %4774 = vmatpush2.msra.mxu0 0.0
  %4775 = vmatprep.subr.mxu0 0.0
  %4776 = vmatpush2.msra.mxu0 0.0
  %4777 = vmatprep.subr.mxu0 0.0
  %4778 = vmatpush2.msra.mxu0 0.0
  %4779 = vmatprep.subr.mxu0 0.0
  %4780 = vmatpush2.msra.mxu0 0.0
  %4781 = vmatprep.subr.mxu0 0.0
  %4782 = vmatpush2.msra.mxu0 0.0
  %4783 = vmatprep.subr.mxu0 0.0
  %4784 = vmatpush2.msra.mxu0 0.0
  %4785 = vmatprep.subr.mxu0 0.0
  %4786 = vmatpush2.msra.mxu0 0.0
  %4787 = vmatprep.subr.mxu0 0.0
  %4788 = vmatpush2.msra.mxu0 0.0
  %4789 = vmatprep.subr.mxu0 0.0
  %4790 = vmatpush2.msra.mxu0 0.0
  %4791 = vmatprep.subr.mxu0 0.0
  %4792 = vmatpush2.msra.mxu0 0.0
  %4793 = vmatprep.subr.mxu0 0.0
  %4794 = vmatpush2.msra.mxu0 0.0
  %4795 = vmatprep.subr.mxu0 0.0
  %4796 = vmatpush2.msra.mxu0 0.0
  %4797 = vmatprep.subr.mxu0 0.0
  %4798 = vmatpush2.msra.mxu0 0.0
  %4799 = vmatprep.mubr.f32.mxu0 0.0
  %4800 = vmatmul.mubr.f32.gmra.mxu0 %v4724
  %v4801 = vpop.f32.mrf.mxu0
  %v4802 = vadd.f32 0.0, %v4801
  %v4803 = vpop.f32.mrf.mxu0
  %4804 = vmatprep.mubr.f32.mxu0 0.0
  %4805 = vmatmul.mubr.f32.gmra.mxu0 %v4727
  %v4806 = vpop.f32.mrf.mxu0
  %v4807 = vadd.f32 0.0, %v4806
  %v4808 = vpop.f32.mrf.mxu0
  %4809 = vmatprep.mubr.f32.mxu0 0.0
  %4810 = vmatmul.mubr.f32.gmra.mxu0 %v4730
  %v4811 = vpop.f32.mrf.mxu0
  %v4812 = vadd.f32 0.0, %v4811
  %v4813 = vpop.f32.mrf.mxu0
  %4814 = vmatprep.mubr.f32.mxu0 0.0
  %4815 = vmatmul.mubr.f32.gmra.mxu0 %v4733
  %v4816 = vpop.f32.mrf.mxu0
  %v4817 = vadd.f32 0.0, %v4816
  %v4818 = vpop.f32.mrf.mxu0
  %4819 = vdwg.mxu0
  %v4820 = vadd.f32 %v4319, %v4802
  %v4821 = vadd.f32 %v4320, %v4807
  %v4822 = vadd.f32 %v4321, %v4812
  %v4823 = vadd.f32 %v4322, %v4817
  %s4824 = scalar_lea.vmem %s5, 1
  %v4825 = vld [vmem:[%s4824] sm:$0x1]
  %v4827 = vlaneseq
  %v4828 = vshrl.u32 %v4827, 7
  %v4829 = vsub.s32 0, %v4828
  %v4830 = vrot.slane %v4825, %v4829
  %v4832 = vadd.f32 %v4820, %v4830
  %v4833 = vadd.f32 %v4821, %v4830
  %v4834 = vadd.f32 %v4822, %v4830
  %v4835 = vadd.f32 %v4823, %v4830
  %v4836 = vadd.f32 %v4832, %v2629
  %v4837 = vadd.f32 %v4833, %v2630
  %v4838 = vadd.f32 %v4834, %v2631
  %v4839 = vadd.f32 %v4835, %v2632
  %v4840 = vsel %vm83, %v4836, 0.0
  %4841 = vadd.xlane.f32.xlu0 %v4840
  %v4842 = vpop.xlane.xlu0 %4841
  %v4843 = vsel %vm83, %v4837, 0.0
  %4844 = vadd.xlane.f32.xlu0 %v4843
  %v4845 = vpop.xlane.xlu0 %4844
  %v4846 = vsel %vm83, %v4838, 0.0
  %4847 = vadd.xlane.f32.xlu0 %v4846
  %v4848 = vpop.xlane.xlu0 %4847
  %v4849 = vsel %vm83, %v4839, 0.0
  %4850 = vadd.xlane.f32.xlu0 %v4849
  %v4851 = vpop.xlane.xlu0 %4850
  %v4852 = vmul.f32 %v4842, %v162
  %v4853 = vmul.f32 %v4845, %v162
  %v4854 = vmul.f32 %v4848, %v162
  %v4855 = vmul.f32 %v4851, %v162
  %v4856 = vsub.f32 %v4836, %v4852
  %v4857 = vsub.f32 %v4837, %v4853
  %v4858 = vsub.f32 %v4838, %v4854
  %v4859 = vsub.f32 %v4839, %v4855
  %v4860 = vmul.f32 %v4856, %v4856
  %v4861 = vmul.f32 %v4857, %v4857
  %v4862 = vmul.f32 %v4858, %v4858
  %v4863 = vmul.f32 %v4859, %v4859
  %v4864 = vsel %vm83, %v4860, 0.0
  %4865 = vadd.xlane.f32.xlu0 %v4864
  %v4866 = vpop.xlane.xlu0 %4865
  %v4867 = vsel %vm83, %v4861, 0.0
  %4868 = vadd.xlane.f32.xlu0 %v4867
  %v4869 = vpop.xlane.xlu0 %4868
  %v4870 = vsel %vm83, %v4862, 0.0
  %4871 = vadd.xlane.f32.xlu0 %v4870
  %v4872 = vpop.xlane.xlu0 %4871
  %v4873 = vsel %vm83, %v4863, 0.0
  %4874 = vadd.xlane.f32.xlu0 %v4873
  %v4875 = vpop.xlane.xlu0 %4874
  %v4876 = vmul.f32 %v4866, %v162
  %v4877 = vmul.f32 %v4869, %v162
  %v4878 = vmul.f32 %v4872, %v162
  %v4879 = vmul.f32 %v4875, %v162
  %v4880 = vadd.f32 %v4876, 1e-05
  %v4881 = vadd.f32 %v4877, 1e-05
  %v4882 = vadd.f32 %v4878, 1e-05
  %v4883 = vadd.f32 %v4879, 1e-05
  %v4884 = vrsqrt.pop %v4880
  %v4885 = vrsqrt.pop %v4881
  %v4886 = vrsqrt.pop %v4882
  %v4887 = vrsqrt.pop %v4883
  %v4888 = vmul.f32 %v4856, %v4884
  %v4889 = vmul.f32 %v4857, %v4885
  %v4890 = vmul.f32 %v4858, %v4886
  %v4891 = vmul.f32 %v4859, %v4887
  %v4892 = vmul.f32 %v4888, %v2703
  %v4893 = vmul.f32 %v4889, %v2703
  %v4894 = vmul.f32 %v4890, %v2703
  %v4895 = vmul.f32 %v4891, %v2703
  %v4896 = vadd.f32 %v4892, %v2713
  %v4897 = vadd.f32 %v4893, %v2713
  %v4898 = vadd.f32 %v4894, %v2713
  %v4899 = vadd.f32 %v4895, %v2713
  %s4900 = scalar_lea.vmem %s6, 32
  %v4901 = vld [vmem:[%s4900] sm:$0xff]
  %v4902 = vld [vmem:[%s4900 + $0x8] sm:$0xff]
  %v4903 = vld [vmem:[%s4900 + $0x10] sm:$0xff]
  %v4904 = vld [vmem:[%s4900 + $0x18] sm:$0xff]
  %s4905 = scalar_lea.vmem %s7, 1
  %v4906 = vld [vmem:[%s4905] sm:$0x1]
  %v4908 = vlaneseq
  %v4909 = vshrl.u32 %v4908, 7
  %v4910 = vsub.s32 0, %v4909
  %v4911 = vrot.slane %v4906, %v4910
  %v4914 = vsel %vm83, %v4896, 0
  %v4917 = vsel %vm83, %v4897, 0
  %v4920 = vsel %vm83, %v4898, 0
  %v4923 = vsel %vm83, %v4899, 0
  %4925 = vmatprep.subr.mxu0 0.0
  %4926 = vmatpush1.msra.mxu0 0.0
  %4927 = vmatprep.subr.mxu0 0.0
  %4928 = vmatpush1.msra.mxu0 0.0
  %4929 = vmatprep.subr.mxu0 0.0
  %4930 = vmatpush1.msra.mxu0 0.0
  %4931 = vmatprep.subr.mxu0 0.0
  %4932 = vmatpush1.msra.mxu0 0.0
  %4933 = vmatprep.subr.mxu0 0.0
  %4934 = vmatpush1.msra.mxu0 0.0
  %4935 = vmatprep.subr.mxu0 0.0
  %4936 = vmatpush1.msra.mxu0 0.0
  %4937 = vmatprep.subr.mxu0 0.0
  %4938 = vmatpush1.msra.mxu0 0.0
  %4939 = vmatprep.subr.mxu0 0.0
  %4940 = vmatpush1.msra.mxu0 0.0
  %4941 = vmatprep.subr.mxu0 0.0
  %4942 = vmatpush1.msra.mxu0 0.0
  %4943 = vmatprep.subr.mxu0 0.0
  %4944 = vmatpush1.msra.mxu0 0.0
  %4945 = vmatprep.subr.mxu0 0.0
  %4946 = vmatpush1.msra.mxu0 0.0
  %4947 = vmatprep.subr.mxu0 0.0
  %4948 = vmatpush1.msra.mxu0 0.0
  %4949 = vmatprep.subr.mxu0 0.0
  %4950 = vmatpush1.msra.mxu0 %v4904
  %4951 = vmatprep.subr.mxu0 0.0
  %4952 = vmatpush1.msra.mxu0 %v4903
  %4953 = vmatprep.subr.mxu0 0.0
  %4954 = vmatpush1.msra.mxu0 %v4902
  %4955 = vmatprep.subr.mxu0 0.0
  %4956 = vmatpush1.msra.mxu0 %v4901
  %4957 = vmatprep.subr.mxu0 0.0
  %4958 = vmatpush2.msra.mxu0 0.0
  %4959 = vmatprep.subr.mxu0 0.0
  %4960 = vmatpush2.msra.mxu0 0.0
  %4961 = vmatprep.subr.mxu0 0.0
  %4962 = vmatpush2.msra.mxu0 0.0
  %4963 = vmatprep.subr.mxu0 0.0
  %4964 = vmatpush2.msra.mxu0 0.0
  %4965 = vmatprep.subr.mxu0 0.0
  %4966 = vmatpush2.msra.mxu0 0.0
  %4967 = vmatprep.subr.mxu0 0.0
  %4968 = vmatpush2.msra.mxu0 0.0
  %4969 = vmatprep.subr.mxu0 0.0
  %4970 = vmatpush2.msra.mxu0 0.0
  %4971 = vmatprep.subr.mxu0 0.0
  %4972 = vmatpush2.msra.mxu0 0.0
  %4973 = vmatprep.subr.mxu0 0.0
  %4974 = vmatpush2.msra.mxu0 0.0
  %4975 = vmatprep.subr.mxu0 0.0
  %4976 = vmatpush2.msra.mxu0 0.0
  %4977 = vmatprep.subr.mxu0 0.0
  %4978 = vmatpush2.msra.mxu0 0.0
  %4979 = vmatprep.subr.mxu0 0.0
  %4980 = vmatpush2.msra.mxu0 0.0
  %4981 = vmatprep.subr.mxu0 0.0
  %4982 = vmatpush2.msra.mxu0 0.0
  %4983 = vmatprep.subr.mxu0 0.0
  %4984 = vmatpush2.msra.mxu0 0.0
  %4985 = vmatprep.subr.mxu0 0.0
  %4986 = vmatpush2.msra.mxu0 0.0
  %4987 = vmatprep.subr.mxu0 0.0
  %4988 = vmatpush2.msra.mxu0 0.0
  %4989 = vmatprep.mubr.f32.mxu0 0.0
  %4990 = vmatmul.mubr.f32.gmra.mxu0 %v4914
  %v4991 = vpop.f32.mrf.mxu0
  %v4992 = vadd.f32 %v4911, %v4991
  %v4993 = vpop.f32.mrf.mxu0
  %4994 = vmatprep.mubr.f32.mxu0 0.0
  %4995 = vmatmul.mubr.f32.gmra.mxu0 %v4917
  %v4996 = vpop.f32.mrf.mxu0
  %v4997 = vadd.f32 %v4911, %v4996
  %v4998 = vpop.f32.mrf.mxu0
  %4999 = vmatprep.mubr.f32.mxu0 0.0
  %5000 = vmatmul.mubr.f32.gmra.mxu0 %v4920
  %v5001 = vpop.f32.mrf.mxu0
  %v5002 = vadd.f32 %v4911, %v5001
  %v5003 = vpop.f32.mrf.mxu0
  %5004 = vmatprep.mubr.f32.mxu0 0.0
  %5005 = vmatmul.mubr.f32.gmra.mxu0 %v4923
  %v5006 = vpop.f32.mrf.mxu0
  %v5007 = vadd.f32 %v4911, %v5006
  %v5008 = vpop.f32.mrf.mxu0
  %5009 = vdwg.mxu0
  %v5010 = vmax.f32 %v4992, 0.0
  %v5011 = vmax.f32 %v4997, 0.0
  %v5012 = vmax.f32 %v5002, 0.0
  %v5013 = vmax.f32 %v5007, 0.0
  %s5014 = scalar_lea.vmem %s8, 64
  %v5015 = vld [vmem:[%s5014] sm:$0xff]
  %v5016 = vld [vmem:[%s5014 + $0x8] sm:$0xff]
  %v5017 = vld [vmem:[%s5014 + $0x10] sm:$0xff]
  %v5018 = vld [vmem:[%s5014 + $0x18] sm:$0xff]
  %v5019 = vld [vmem:[%s5014 + $0x20] sm:$0xff]
  %v5020 = vld [vmem:[%s5014 + $0x28] sm:$0xff]
  %v5021 = vld [vmem:[%s5014 + $0x30] sm:$0xff]
  %v5022 = vld [vmem:[%s5014 + $0x38] sm:$0xff]
  %s5023 = scalar_lea.vmem %s9, 1
  %v5024 = vld [vmem:[%s5023] sm:$0x1]
  %v5026 = vlaneseq
  %v5027 = vshrl.u32 %v5026, 7
  %v5028 = vsub.s32 0, %v5027
  %v5029 = vrot.slane %v5024, %v5028
  %v5032 = vsel %vm2531, %v5010, 0
  %v5035 = vsel %vm2531, %v5011, 0
  %v5038 = vsel %vm2531, %v5012, 0
  %v5041 = vsel %vm2531, %v5013, 0
  %5043 = vmatprep.subr.mxu0 0.0
  %5044 = vmatpush1.msra.mxu0 0.0
  %5045 = vmatprep.subr.mxu0 0.0
  %5046 = vmatpush1.msra.mxu0 0.0
  %5047 = vmatprep.subr.mxu0 0.0
  %5048 = vmatpush1.msra.mxu0 0.0
  %5049 = vmatprep.subr.mxu0 0.0
  %5050 = vmatpush1.msra.mxu0 0.0
  %5051 = vmatprep.subr.mxu0 0.0
  %5052 = vmatpush1.msra.mxu0 0.0
  %5053 = vmatprep.subr.mxu0 0.0
  %5054 = vmatpush1.msra.mxu0 0.0
  %5055 = vmatprep.subr.mxu0 0.0
  %5056 = vmatpush1.msra.mxu0 0.0
  %5057 = vmatprep.subr.mxu0 0.0
  %5058 = vmatpush1.msra.mxu0 0.0
  %5059 = vmatprep.subr.mxu0 0.0
  %5060 = vmatpush1.msra.mxu0 %v5022
  %5061 = vmatprep.subr.mxu0 0.0
  %5062 = vmatpush1.msra.mxu0 %v5021
  %5063 = vmatprep.subr.mxu0 0.0
  %5064 = vmatpush1.msra.mxu0 %v5020
  %5065 = vmatprep.subr.mxu0 0.0
  %5066 = vmatpush1.msra.mxu0 %v5019
  %5067 = vmatprep.subr.mxu0 0.0
  %5068 = vmatpush1.msra.mxu0 %v5018
  %5069 = vmatprep.subr.mxu0 0.0
  %5070 = vmatpush1.msra.mxu0 %v5017
  %5071 = vmatprep.subr.mxu0 0.0
  %5072 = vmatpush1.msra.mxu0 %v5016
  %5073 = vmatprep.subr.mxu0 0.0
  %5074 = vmatpush1.msra.mxu0 %v5015
  %5075 = vmatprep.subr.mxu0 0.0
  %5076 = vmatpush2.msra.mxu0 0.0
  %5077 = vmatprep.subr.mxu0 0.0
  %5078 = vmatpush2.msra.mxu0 0.0
  %5079 = vmatprep.subr.mxu0 0.0
  %5080 = vmatpush2.msra.mxu0 0.0
  %5081 = vmatprep.subr.mxu0 0.0
  %5082 = vmatpush2.msra.mxu0 0.0
  %5083 = vmatprep.subr.mxu0 0.0
  %5084 = vmatpush2.msra.mxu0 0.0
  %5085 = vmatprep.subr.mxu0 0.0
  %5086 = vmatpush2.msra.mxu0 0.0
  %5087 = vmatprep.subr.mxu0 0.0
  %5088 = vmatpush2.msra.mxu0 0.0
  %5089 = vmatprep.subr.mxu0 0.0
  %5090 = vmatpush2.msra.mxu0 0.0
  %5091 = vmatprep.subr.mxu0 0.0
  %5092 = vmatpush2.msra.mxu0 0.0
  %5093 = vmatprep.subr.mxu0 0.0
  %5094 = vmatpush2.msra.mxu0 0.0
  %5095 = vmatprep.subr.mxu0 0.0
  %5096 = vmatpush2.msra.mxu0 0.0
  %5097 = vmatprep.subr.mxu0 0.0
  %5098 = vmatpush2.msra.mxu0 0.0
  %5099 = vmatprep.subr.mxu0 0.0
  %5100 = vmatpush2.msra.mxu0 0.0
  %5101 = vmatprep.subr.mxu0 0.0
  %5102 = vmatpush2.msra.mxu0 0.0
  %5103 = vmatprep.subr.mxu0 0.0
  %5104 = vmatpush2.msra.mxu0 0.0
  %5105 = vmatprep.subr.mxu0 0.0
  %5106 = vmatpush2.msra.mxu0 0.0
  %5107 = vmatprep.mubr.f32.mxu0 0.0
  %5108 = vmatmul.mubr.f32.gmra.mxu0 %v5032
  %v5109 = vpop.f32.mrf.mxu0
  %v5110 = vadd.f32 %v5029, %v5109
  %v5111 = vpop.f32.mrf.mxu0
  %5112 = vmatprep.mubr.f32.mxu0 0.0
  %5113 = vmatmul.mubr.f32.gmra.mxu0 %v5035
  %v5114 = vpop.f32.mrf.mxu0
  %v5115 = vadd.f32 %v5029, %v5114
  %v5116 = vpop.f32.mrf.mxu0
  %5117 = vmatprep.mubr.f32.mxu0 0.0
  %5118 = vmatmul.mubr.f32.gmra.mxu0 %v5038
  %v5119 = vpop.f32.mrf.mxu0
  %v5120 = vadd.f32 %v5029, %v5119
  %v5121 = vpop.f32.mrf.mxu0
  %5122 = vmatprep.mubr.f32.mxu0 0.0
  %5123 = vmatmul.mubr.f32.gmra.mxu0 %v5041
  %v5124 = vpop.f32.mrf.mxu0
  %v5125 = vadd.f32 %v5029, %v5124
  %v5126 = vpop.f32.mrf.mxu0
  %5127 = vdwg.mxu0
  %v5128 = vadd.f32 %v5110, %v4836
  %v5129 = vadd.f32 %v5115, %v4837
  %v5130 = vadd.f32 %v5120, %v4838
  %v5131 = vadd.f32 %v5125, %v4839
  %v5132 = vld [vmem:[%s12] sm:$0x1]
  %v5133 = vld [vmem:[%s13] sm:$0x1]
  %v5134 = vsel %vm83, %v5128, 0.0
  %5135 = vadd.xlane.f32.xlu0 %v5134
  %v5136 = vpop.xlane.xlu0 %5135
  %v5137 = vsel %vm83, %v5129, 0.0
  %5138 = vadd.xlane.f32.xlu0 %v5137
  %v5139 = vpop.xlane.xlu0 %5138
  %v5140 = vsel %vm83, %v5130, 0.0
  %5141 = vadd.xlane.f32.xlu0 %v5140
  %v5142 = vpop.xlane.xlu0 %5141
  %v5143 = vsel %vm83, %v5131, 0.0
  %5144 = vadd.xlane.f32.xlu0 %v5143
  %v5145 = vpop.xlane.xlu0 %5144
  %v5146 = vmul.f32 %v5136, %v162
  %v5147 = vmul.f32 %v5139, %v162
  %v5148 = vmul.f32 %v5142, %v162
  %v5149 = vmul.f32 %v5145, %v162
  %v5150 = vsub.f32 %v5128, %v5146
  %v5151 = vsub.f32 %v5129, %v5147
  %v5152 = vsub.f32 %v5130, %v5148
  %v5153 = vsub.f32 %v5131, %v5149
  %v5154 = vmul.f32 %v5150, %v5150
  %v5155 = vmul.f32 %v5151, %v5151
  %v5156 = vmul.f32 %v5152, %v5152
  %v5157 = vmul.f32 %v5153, %v5153
  %v5158 = vsel %vm83, %v5154, 0.0
  %5159 = vadd.xlane.f32.xlu0 %v5158
  %v5160 = vpop.xlane.xlu0 %5159
  %v5161 = vsel %vm83, %v5155, 0.0
  %5162 = vadd.xlane.f32.xlu0 %v5161
  %v5163 = vpop.xlane.xlu0 %5162
  %v5164 = vsel %vm83, %v5156, 0.0
  %5165 = vadd.xlane.f32.xlu0 %v5164
  %v5166 = vpop.xlane.xlu0 %5165
  %v5167 = vsel %vm83, %v5157, 0.0
  %5168 = vadd.xlane.f32.xlu0 %v5167
  %v5169 = vpop.xlane.xlu0 %5168
  %v5170 = vmul.f32 %v5160, %v162
  %v5171 = vmul.f32 %v5163, %v162
  %v5172 = vmul.f32 %v5166, %v162
  %v5173 = vmul.f32 %v5169, %v162
  %v5174 = vadd.f32 %v5170, 1e-05
  %v5175 = vadd.f32 %v5171, 1e-05
  %v5176 = vadd.f32 %v5172, 1e-05
  %v5177 = vadd.f32 %v5173, 1e-05
  %v5178 = vrsqrt.pop %v5174
  %v5179 = vrsqrt.pop %v5175
  %v5180 = vrsqrt.pop %v5176
  %v5181 = vrsqrt.pop %v5177
  %v5182 = vmul.f32 %v5150, %v5178
  %v5183 = vmul.f32 %v5151, %v5179
  %v5184 = vmul.f32 %v5152, %v5180
  %v5185 = vmul.f32 %v5153, %v5181
  %v5187 = vlaneseq
  %v5188 = vshrl.u32 %v5187, 7
  %v5189 = vsub.s32 0, %v5188
  %v5190 = vrot.slane %v5132, %v5189
  %v5192 = vmul.f32 %v5182, %v5190
  %v5193 = vmul.f32 %v5183, %v5190
  %v5194 = vmul.f32 %v5184, %v5190
  %v5195 = vmul.f32 %v5185, %v5190
  %v5197 = vlaneseq
  %v5198 = vshrl.u32 %v5197, 7
  %v5199 = vsub.s32 0, %v5198
  %v5200 = vrot.slane %v5133, %v5199
  %v5202 = vadd.f32 %v5192, %v5200
  %v5203 = vadd.f32 %v5193, %v5200
  %v5204 = vadd.f32 %v5194, %v5200
  %v5205 = vadd.f32 %v5195, %v5200
  %5206 = vxpose.xlu0.b32.start [1/16] %v5202, 128
  %5207 = vxpose.xlu0.b32.cont [2/16] %v5203, 128
  %5208 = vxpose.xlu0.b32.cont [3/16] 0.0, 128
  %5209 = vxpose.xlu0.b32.cont [4/16] 0.0, 128
  %5210 = vxpose.xlu0.b32.cont [5/16] 0.0, 128
  %5211 = vxpose.xlu0.b32.cont [6/16] 0.0, 128
  %5212 = vxpose.xlu0.b32.cont [7/16] 0.0, 128
  %5213 = vxpose.xlu0.b32.cont [8/16] 0.0, 128
  %5214 = vxpose.xlu0.b32.cont [9/16] 0.0, 128
  %5215 = vxpose.xlu0.b32.cont [10/16] 0.0, 128
  %5216 = vxpose.xlu0.b32.cont [11/16] 0.0, 128
  %5217 = vxpose.xlu0.b32.cont [12/16] 0.0, 128
  %5218 = vxpose.xlu0.b32.cont [13/16] 0.0, 128
  %5219 = vxpose.xlu0.b32.cont [14/16] 0.0, 128
  %5220 = vxpose.xlu0.b32.cont [15/16] 0.0, 128
  %5221 = vxpose.xlu0.b32.end [16/16] 0.0, 128
  %v5222 = vpop.trf.xlu0
  %v5223 = vpop.trf.xlu0
  %v5224 = vpop.trf.xlu0
  %v5225 = vpop.trf.xlu0
  %v5226 = vpop.trf.xlu0
  %v5227 = vpop.trf.xlu0
  %v5228 = vpop.trf.xlu0
  %v5229 = vpop.trf.xlu0
  %v5230 = vpop.trf.xlu0
  %v5231 = vpop.trf.xlu0
  %v5232 = vpop.trf.xlu0
  %v5233 = vpop.trf.xlu0
  %v5234 = vpop.trf.xlu0
  %v5235 = vpop.trf.xlu0
  %v5236 = vpop.trf.xlu0
  %v5237 = vpop.trf.xlu0
  %5238 = vst.msk [vmem:[%s14] sm:$0xff] %vm514, %v5222
  %5239 = vst.msk [vmem:[%s14 + $0x8] sm:$0xff] %vm514, %v5223
  %5240 = vst.msk [vmem:[%s14 + $0x10] sm:$0xff] %vm514, %v5224
  %5241 = vst.msk [vmem:[%s14 + $0x18] sm:$0xff] %vm514, %v5225
  %5242 = vxpose.xlu0.b32.start [1/16] %v5204, 128
  %5243 = vxpose.xlu0.b32.cont [2/16] %v5205, 128
  %5244 = vxpose.xlu0.b32.cont [3/16] 0.0, 128
  %5245 = vxpose.xlu0.b32.cont [4/16] 0.0, 128
  %5246 = vxpose.xlu0.b32.cont [5/16] 0.0, 128
  %5247 = vxpose.xlu0.b32.cont [6/16] 0.0, 128
  %5248 = vxpose.xlu0.b32.cont [7/16] 0.0, 128
  %5249 = vxpose.xlu0.b32.cont [8/16] 0.0, 128
  %5250 = vxpose.xlu0.b32.cont [9/16] 0.0, 128
  %5251 = vxpose.xlu0.b32.cont [10/16] 0.0, 128
  %5252 = vxpose.xlu0.b32.cont [11/16] 0.0, 128
  %5253 = vxpose.xlu0.b32.cont [12/16] 0.0, 128
  %5254 = vxpose.xlu0.b32.cont [13/16] 0.0, 128
  %5255 = vxpose.xlu0.b32.cont [14/16] 0.0, 128
  %5256 = vxpose.xlu0.b32.cont [15/16] 0.0, 128
  %5257 = vxpose.xlu0.b32.end [16/16] 0.0, 128
  %v5258 = vpop.trf.xlu0
  %v5259 = vpop.trf.xlu0
  %v5260 = vpop.trf.xlu0
  %v5261 = vpop.trf.xlu0
  %v5262 = vpop.trf.xlu0
  %v5263 = vpop.trf.xlu0
  %v5264 = vpop.trf.xlu0
  %v5265 = vpop.trf.xlu0
  %v5266 = vpop.trf.xlu0
  %v5267 = vpop.trf.xlu0
  %v5268 = vpop.trf.xlu0
  %v5269 = vpop.trf.xlu0
  %v5270 = vpop.trf.xlu0
  %v5271 = vpop.trf.xlu0
  %v5272 = vpop.trf.xlu0
  %v5273 = vpop.trf.xlu0
  %s5274 = scalar_lea.vmem %s14, 32
  %5275 = vst.msk [vmem:[%s5274] sm:$0xff] %vm514, %v5258
  %5276 = vst.msk [vmem:[%s5274 + $0x8] sm:$0xff] %vm514, %v5259
  %5277 = vst.msk [vmem:[%s5274 + $0x10] sm:$0xff] %vm514, %v5260
  %5278 = vst.msk [vmem:[%s5274 + $0x18] sm:$0xff] %vm514, %v5261
  // Predicated region
  $region58: #{tpu_custom_call.1} parent=0 // pred_check
    _
  $region59: #{tpu_custom_call.1} parent=0 // pred_check_branch
    %5280 = sbr.rel (0) target = $region61
  $region60: #{tpu_custom_call.1} parent=0 // pred_region
    _
  $region61: #{tpu_custom_call.1} parent=0 // pred_fallthru
    _
  // Predicated region
  $region62: #{tpu_custom_call.1} parent=0 // pred_check
    _
  $region63: #{tpu_custom_call.1} parent=0 // pred_check_branch
    %5282 = sbr.rel (0) target = $region65
  $region64: #{tpu_custom_call.1} parent=0 // pred_region
    _
  $region65: #{tpu_custom_call.1} parent=0 // pred_fallthru
    _

</llo_original>
